<compile_context>
chip_gen: v6e
topology: v6e:2x2x1
jax: 0.10.0
libtpu: 0.0.40
codegen_flags: <defaults>
</compile_context>

<pallas_src>
import functools

import numpy as np
import jax
import jax.numpy as jnp
from jax.experimental import pallas as pl
from jax.experimental.pallas import tpu as pltpu


# ----------------------------------------------------------------------------
# Single fused kernel: MHA + residual + LN1 + FFN + residual + LN2
#   grid = (B, S // TQ)   — one (batch, query-tile) per step, both "parallel"
# ----------------------------------------------------------------------------

def _encoder_layer_kernel(*refs, nheads, has_pos, has_mask):
    """refs = [src_q, src_kv, (pos_q, pos_kv)?, (pad)?,
               wq, bq, wk, bk, wv, bv, wo, bo, g1, be1, w1, b1, w2, b2, g2, be2,
               out, o_scratch]"""
    refs = list(refs)
    o_scr = refs.pop()                     # VMEM scratch (TQ, C), compute dtype
    out_ref = refs.pop()                   # (1, TQ, C) f32 output tile
    it = iter(refs)
    src_q_ref = next(it)                   # (1, TQ, C) query rows (residual tile)
    src_kv_ref = next(it)                  # (1, S,  C) full rows for keys/values
    pos_q_ref = next(it) if has_pos else None
    pos_kv_ref = next(it) if has_pos else None
    pad_ref = next(it) if has_mask else None
    (wq_ref, bq_ref, wk_ref, bk_ref, wv_ref, bv_ref, wo_ref, bo_ref,
     g1_ref, be1_ref, w1_ref, b1_ref, w2_ref, b2_ref, g2_ref, be2_ref) = tuple(it)

    cd = wq_ref.dtype                      # MXU operand dtype (f32 or bf16)
    f32 = jnp.float32

    xq = src_q_ref[0]                      # (TQ, C) f32 residual stream tile
    xkv = src_kv_ref[0]                    # (S,  C) f32 key/value source
    _, C = xq.shape
    hd = C // nheads

    q_in = (xq + pos_q_ref[0]) if has_pos else xq          # q = src + pos
    k_in = (xkv + pos_kv_ref[0]) if has_pos else xkv       # k = src + pos
    # 1/sqrt(head_dim) attention scale is folded into wq / bq at prep time.
    q = jnp.dot(q_in.astype(cd), wq_ref[...], preferred_element_type=f32) + bq_ref[...]
    k = jnp.dot(k_in.astype(cd), wk_ref[...], preferred_element_type=f32) + bk_ref[...]
    v = jnp.dot(xkv.astype(cd), wv_ref[...], preferred_element_type=f32) + bv_ref[...]
    # Cast once to the MXU operand dtype (not per head slice inside the loop).
    q_c = q.astype(cd)
    k_c = k.astype(cd)
    v_c = v.astype(cd)

    if has_mask:
        neg = pad_ref[0] * (-1e30)         # (1, S); 1.0 marks padded keys; scores stay f32
    # NOTE: rows whose keys are ALL padded softmax to uniform (PyTorch would give NaN);
    # never the case for the inputs used here.

    # Per-head attention.  Each head's (TQ,S) score tensor is fully consumed (the head
    # output is stored into the VMEM scratch) before the next head starts, bounding
    # vreg live ranges.
    for h in range(nheads):
        sl = slice(h * hd, (h + 1) * hd)
        s = jax.lax.dot_general(q_c[:, sl], k_c[:, sl], (((1,), (1,)), ((), ())),
                                preferred_element_type=f32)            # (TQ, S)
        if has_mask:
            s = s + neg
        s = s - jnp.max(s, axis=-1, keepdims=True)
        e = jnp.exp(s)
        p = e * pl.reciprocal(jnp.sum(e, axis=-1, keepdims=True), approx=True)
        oh = jnp.dot(p.astype(cd), v_c[:, sl], preferred_element_type=f32)   # (TQ, hd)
        o_scr[:, sl] = oh.astype(cd)

    # Single full-K=C output projection (instead of nheads K=head_dim matmuls).
    attn = jnp.dot(o_scr[...], wo_ref[...], preferred_element_type=f32) + bo_ref[...]

    # Residual add + LayerNorm1 (f32 statistics).
    y = xq + attn
    mu = jnp.mean(y, axis=-1, keepdims=True)
    var = jnp.mean(jnp.square(y - mu), axis=-1, keepdims=True)
    x1 = (y - mu) * jax.lax.rsqrt(var + 1e-5) * g1_ref[...] + be1_ref[...]

    # FFN (lin1 + ReLU -> lin2) + residual + LayerNorm2, fused in the same step.
    h1 = jnp.dot(x1.astype(cd), w1_ref[...], preferred_element_type=f32) + b1_ref[...]
    h1 = jnp.maximum(h1, 0.0)                                          # ReLU
    ff = jnp.dot(h1.astype(cd), w2_ref[...], preferred_element_type=f32) + b2_ref[...]
    y2 = x1 + ff
    mu2 = jnp.mean(y2, axis=-1, keepdims=True)
    var2 = jnp.mean(jnp.square(y2 - mu2), axis=-1, keepdims=True)
    out_ref[0] = (y2 - mu2) * jax.lax.rsqrt(var2 + 1e-5) * g2_ref[...] + be2_ref[...]


# ----------------------------------------------------------------------------
# Wrapper
# ----------------------------------------------------------------------------

def _pick_query_tile(S, B):
    """Query-row tile.  Aim for >=4 total grid steps so v7x's 2 TensorCores each get
    >=2 steps (software pipelining); keep tiles large to amortize per-step overhead."""
    if B >= 4:
        return S
    for t in (256, 128, 64, 32, 16, 8):
        if S % t == 0 and B * (S // t) >= 4:
            return t
    return S


def encoder_layer_forward(kp, src, key_padding_mask=None, pos=None, *,
                          nheads, q_tile=None, batch_first=False):
    """TransformerEncoderLayer.forward_post (eval mode).

    src/pos: (S, B, C) seq-first (PyTorch layout) or (B, S, C) if batch_first=True
             (use batch_first in a layer stack to hoist the transposes out of the loop).
    key_padding_mask: (B, S) bool, True = ignore key.  Returns same layout as src, f32."""
    if batch_first:
        B, S, C = src.shape
        x_bsc, pos_bsc = src, pos
    else:
        S, B, C = src.shape
        x_bsc = jnp.transpose(src, (1, 0, 2))
        pos_bsc = None if pos is None else jnp.transpose(pos, (1, 0, 2))

    has_pos = pos_bsc is not None
    has_mask = key_padding_mask is not None
    cd = kp['wq'].dtype
    tq = _pick_query_tile(S, B) if q_tile is None else q_tile
    ntq = S // tq

    args = [x_bsc, x_bsc]
    in_specs = [pl.BlockSpec((1, tq, C), lambda b, qi: (b, qi, 0)),   # query rows tile
                pl.BlockSpec((1, S, C), lambda b, qi: (b, 0, 0))]     # full rows (K/V)
    if has_pos:
        args += [pos_bsc, pos_bsc]
        in_specs += [pl.BlockSpec((1, tq, C), lambda b, qi: (b, qi, 0)),
                     pl.BlockSpec((1, S, C), lambda b, qi: (b, 0, 0))]
    if has_mask:
        args.append(key_padding_mask.astype(jnp.float32).reshape(B, 1, S))
        in_specs.append(pl.BlockSpec((1, 1, S), lambda b, qi: (b, 0, 0)))

    for name in ('wq', 'bq', 'wk', 'bk', 'wv', 'bv', 'wo', 'bo',
                 'g1', 'be1', 'w1', 'b1', 'w2', 'b2', 'g2', 'be2'):
        w = kp[name]
        args.append(w)
        in_specs.append(pl.BlockSpec(w.shape, lambda b, qi: (0, 0)))  # constant-index weight

    out = pl.pallas_call(
        functools.partial(_encoder_layer_kernel, nheads=nheads,
                          has_pos=has_pos, has_mask=has_mask),
        out_shape=jax.ShapeDtypeStruct((B, S, C), jnp.float32),
        grid=(B, ntq),
        in_specs=in_specs,
        out_specs=pl.BlockSpec((1, tq, C), lambda b, qi: (b, qi, 0)),
        scratch_shapes=[pltpu.VMEM((tq, C), cd)],                     # concatenated head outputs
        compiler_params=pltpu.CompilerParams(
            dimension_semantics=("parallel", "parallel"),
            vmem_limit_bytes=32 * 1024 * 1024),                       # explicit for v5e's 16 MiB default
    )(*args)

    return out if batch_first else jnp.transpose(out, (1, 0, 2))


# ----------------------------------------------------------------------------
# Parameters (PyTorch layout) + one-time prep (transpose / fold scale / cast)
# ----------------------------------------------------------------------------

def _xavier(key, shape):
    fan_out, fan_in = shape[0], shape[1]
    limit = float(np.sqrt(6.0 / (fan_in + fan_out)))
    return jax.random.uniform(key, shape, jnp.float32, -limit, limit)


def init_torch_layer_params(key, d_model, dff):
    C = d_model
    ks = jax.random.split(key, 12)
    u = lambda k, n, s: jax.random.uniform(k, (n,), jnp.float32, -s, s)
    return dict(
        in_w=_xavier(ks[0], (3 * C, C)), in_b=u(ks[1], 3 * C, 0.1),
        out_w=_xavier(ks[2], (C, C)),    out_b=u(ks[3], C, 0.1),
        lin1_w=_xavier(ks[4], (dff, C)), lin1_b=u(ks[5], dff, 0.1),
        lin2_w=_xavier(ks[6], (C, dff)), lin2_b=u(ks[7], C, 0.1),
        norm1_g=1.0 + u(ks[8], C, 0.05), norm1_b=u(ks[9], C, 0.05),
        norm2_g=1.0 + u(ks[10], C, 0.05), norm2_b=u(ks[11], C, 0.05),
    )


def prepare_params(tp, nheads, compute_dtype=jnp.bfloat16):
    """Pre-transpose weights, fold 1/sqrt(hd) into W_q/b_q, reshape biases to (1,N).
    Big matmul weights stored in `compute_dtype` (bf16 default: native MXU operands,
    half the weight DMA bytes); biases / LN params stay f32."""
    C = tp['in_w'].shape[1]
    hd = C // nheads
    scale = 1.0 / float(np.sqrt(hd))
    cd = compute_dtype
    return dict(
        wq=(tp['in_w'][:C].T * scale).astype(cd),
        bq=(tp['in_b'][:C] * scale).reshape(1, C),
        wk=tp['in_w'][C:2 * C].T.astype(cd), bk=tp['in_b'][C:2 * C].reshape(1, C),
        wv=tp['in_w'][2 * C:].T.astype(cd),  bv=tp['in_b'][2 * C:].reshape(1, C),
        wo=tp['out_w'].T.astype(cd),         bo=tp['out_b'].reshape(1, C),
        w1=tp['lin1_w'].T.astype(cd),        b1=tp['lin1_b'].reshape(1, -1),
        w2=tp['lin2_w'].T.astype(cd),        b2=tp['lin2_b'].reshape(1, C),
        g1=tp['norm1_g'].reshape(1, C),      be1=tp['norm1_b'].reshape(1, C),
        g2=tp['norm2_g'].reshape(1, C),      be2=tp['norm2_b'].reshape(1, C),
    )


# ----------------------------------------------------------------------------
# Pure-JAX reference (PyTorch semantics, f32, eval mode) for validation
# ----------------------------------------------------------------------------

def _layer_norm(x, g, b, eps=1e-5):
    mu = jnp.mean(x, axis=-1, keepdims=True)
    var = jnp.mean(jnp.square(x - mu), axis=-1, keepdims=True)
    return (x - mu) * jax.lax.rsqrt(var + eps) * g + b


def reference_encoder_layer(tp, src, key_padding_mask, pos, nheads):
    S, B, C = src.shape
    hd = C // nheads
    hp = jax.lax.Precision.HIGHEST
    qk_in = src if pos is None else src + pos
    q = jnp.einsum('sbc,dc->sbd', qk_in, tp['in_w'][:C], precision=hp) + tp['in_b'][:C]
    k = jnp.einsum('sbc,dc->sbd', qk_in, tp['in_w'][C:2 * C], precision=hp) + tp['in_b'][C:2 * C]
    v = jnp.einsum('sbc,dc->sbd', src, tp['in_w'][2 * C:], precision=hp) + tp['in_b'][2 * C:]

    def heads(x):
        return x.reshape(S, B, nheads, hd).transpose(1, 2, 0, 3)     # (B, H, S, hd)

    qh, kh, vh = heads(q), heads(k), heads(v)
    scores = jnp.einsum('bhld,bhsd->bhls', qh, kh, precision=hp) / np.sqrt(hd)
    if key_padding_mask is not None:
        scores = jnp.where(key_padding_mask[:, None, None, :], -1e30, scores)
    attn = jax.nn.softmax(scores, axis=-1)
    o = jnp.einsum('bhls,bhsd->bhld', attn, vh, precision=hp)
    o = o.transpose(2, 0, 1, 3).reshape(S, B, C)
    o = jnp.einsum('sbc,dc->sbd', o, tp['out_w'], precision=hp) + tp['out_b']
    x = _layer_norm(src + o, tp['norm1_g'], tp['norm1_b'])
    ff = jnp.maximum(jnp.einsum('sbc,fc->sbf', x, tp['lin1_w'], precision=hp) + tp['lin1_b'], 0.0)
    ff = jnp.einsum('sbf,cf->sbc', ff, tp['lin2_w'], precision=hp) + tp['lin2_b']
    return _layer_norm(x + ff, tp['norm2_g'], tp['norm2_b'])


# ----------------------------------------------------------------------------
# Main
# ----------------------------------------------------------------------------

if __name__ == "__main__":
    S, B = 128, 2
    d_model, nheads, dff = 128, 4, 256       # lane-dense C and dff (multiples of 128)

    root = jax.random.PRNGKey(0)
    k_p, k_src, k_pos = jax.random.split(root, 3)

    torch_params = init_torch_layer_params(k_p, d_model, dff)
    src = jax.random.normal(k_src, (S, B, d_model), jnp.float32)
    pos = 0.1 * jax.random.normal(k_pos, (S, B, d_model), jnp.float32)
    key_padding_mask = jnp.zeros((B, S), dtype=bool).at[1, S - 16:].set(True)

    fwd = jax.jit(functools.partial(encoder_layer_forward, nheads=nheads))

    # f32 compute path: tight correctness check vs pure-JAX reference.
    kp_f32 = prepare_params(torch_params, nheads, compute_dtype=jnp.float32)
    out_f32 = jax.block_until_ready(fwd(kp_f32, src, key_padding_mask, pos))
    ref = jax.block_until_ready(
        reference_encoder_layer(torch_params, src, key_padding_mask, pos, nheads))
    assert out_f32.shape == (S, B, d_model)
    np.testing.assert_allclose(np.asarray(out_f32), np.asarray(ref), atol=2e-2, rtol=2e-2)

    # Degenerate-input path (no pos, no mask): exercises the static-skip variant.
    out_plain = jax.block_until_ready(fwd(kp_f32, src, None, None))
    ref_plain = jax.block_until_ready(
        reference_encoder_layer(torch_params, src, None, None, nheads))
    np.testing.assert_allclose(np.asarray(out_plain), np.asarray(ref_plain),
                               atol=2e-2, rtol=2e-2)

    # bf16 compute path (default: bf16 weights / MXU operands, f32 accum + softmax + LN).
    kp_bf16 = prepare_params(torch_params, nheads)
    out_bf16 = jax.block_until_ready(fwd(kp_bf16, src, key_padding_mask, pos))
    assert out_bf16.shape == (S, B, d_model)
    assert np.isfinite(np.asarray(out_bf16)).all()
    assert float(np.max(np.abs(np.asarray(out_bf16) - np.asarray(ref)))) < 0.3

    print("KERNEL_OK")
</pallas_src>

<mosaic_0001>
module attributes {stable_mosaic.version = 11 : i64} {
  func.func @_encoder_layer_kernel(%arg0: i32, %arg1: i32, %arg2: memref<1x64x128xf32, #tpu.memory_space<vmem>>, %arg3: memref<1x128x128xf32, #tpu.memory_space<vmem>>, %arg4: memref<1x64x128xf32, #tpu.memory_space<vmem>>, %arg5: memref<1x128x128xf32, #tpu.memory_space<vmem>>, %arg6: memref<1x1x128xf32, #tpu.memory_space<vmem>>, %arg7: memref<128x128xf32, #tpu.memory_space<vmem>>, %arg8: memref<1x128xf32, #tpu.memory_space<vmem>>, %arg9: memref<128x128xf32, #tpu.memory_space<vmem>>, %arg10: memref<1x128xf32, #tpu.memory_space<vmem>>, %arg11: memref<128x128xf32, #tpu.memory_space<vmem>>, %arg12: memref<1x128xf32, #tpu.memory_space<vmem>>, %arg13: memref<128x128xf32, #tpu.memory_space<vmem>>, %arg14: memref<1x128xf32, #tpu.memory_space<vmem>>, %arg15: memref<1x128xf32, #tpu.memory_space<vmem>>, %arg16: memref<1x128xf32, #tpu.memory_space<vmem>>, %arg17: memref<128x256xf32, #tpu.memory_space<vmem>>, %arg18: memref<1x256xf32, #tpu.memory_space<vmem>>, %arg19: memref<256x128xf32, #tpu.memory_space<vmem>>, %arg20: memref<1x128xf32, #tpu.memory_space<vmem>>, %arg21: memref<1x128xf32, #tpu.memory_space<vmem>>, %arg22: memref<1x128xf32, #tpu.memory_space<vmem>>, %arg23: memref<1x64x128xf32, #tpu.memory_space<vmem>>, %arg24: memref<64x128xf32, #tpu.memory_space<vmem>>) attributes {dimension_semantics = [#tpu.dimension_semantics<parallel>, #tpu.dimension_semantics<parallel>], iteration_bounds = array<i64: 2, 2>, scalar_prefetch = 0 : i64, scratch_operands = 1 : i64, tpu.core_type = #tpu.core_type<tc>, window_params = [{transform_indices = @transform_0, window_bounds = array<i64: 1, 64, 128>}, {transform_indices = @transform_1, window_bounds = array<i64: 1, 128, 128>}, {transform_indices = @transform_2, window_bounds = array<i64: 1, 64, 128>}, {transform_indices = @transform_3, window_bounds = array<i64: 1, 128, 128>}, {transform_indices = @transform_4, window_bounds = array<i64: 1, 1, 128>}, {pipeline_mode = #tpu.pipeline_mode<synchronous>, transform_indices = @transform_5, window_bounds = array<i64: 128, 128>}, {pipeline_mode = #tpu.pipeline_mode<synchronous>, transform_indices = @transform_6, window_bounds = array<i64: 1, 128>}, {pipeline_mode = #tpu.pipeline_mode<synchronous>, transform_indices = @transform_7, window_bounds = array<i64: 128, 128>}, {pipeline_mode = #tpu.pipeline_mode<synchronous>, transform_indices = @transform_8, window_bounds = array<i64: 1, 128>}, {pipeline_mode = #tpu.pipeline_mode<synchronous>, transform_indices = @transform_9, window_bounds = array<i64: 128, 128>}, {pipeline_mode = #tpu.pipeline_mode<synchronous>, transform_indices = @transform_10, window_bounds = array<i64: 1, 128>}, {pipeline_mode = #tpu.pipeline_mode<synchronous>, transform_indices = @transform_11, window_bounds = array<i64: 128, 128>}, {pipeline_mode = #tpu.pipeline_mode<synchronous>, transform_indices = @transform_12, window_bounds = array<i64: 1, 128>}, {pipeline_mode = #tpu.pipeline_mode<synchronous>, transform_indices = @transform_13, window_bounds = array<i64: 1, 128>}, {pipeline_mode = #tpu.pipeline_mode<synchronous>, transform_indices = @transform_14, window_bounds = array<i64: 1, 128>}, {pipeline_mode = #tpu.pipeline_mode<synchronous>, transform_indices = @transform_15, window_bounds = array<i64: 128, 256>}, {pipeline_mode = #tpu.pipeline_mode<synchronous>, transform_indices = @transform_16, window_bounds = array<i64: 1, 256>}, {pipeline_mode = #tpu.pipeline_mode<synchronous>, transform_indices = @transform_17, window_bounds = array<i64: 256, 128>}, {pipeline_mode = #tpu.pipeline_mode<synchronous>, transform_indices = @transform_18, window_bounds = array<i64: 1, 128>}, {pipeline_mode = #tpu.pipeline_mode<synchronous>, transform_indices = @transform_19, window_bounds = array<i64: 1, 128>}, {pipeline_mode = #tpu.pipeline_mode<synchronous>, transform_indices = @transform_20, window_bounds = array<i64: 1, 128>}, {transform_indices = @transform_21, window_bounds = array<i64: 1, 64, 128>}]} {
    %c0 = arith.constant 0 : index
    %c0_0 = arith.constant 0 : index
    %c0_1 = arith.constant 0 : index
    %0 = vector.load %arg2[%c0, %c0_0, %c0_1] : memref<1x64x128xf32, #tpu.memory_space<vmem>>, vector<1x64x128xf32>
    %1 = vector.shape_cast %0 : vector<1x64x128xf32> to vector<64x128xf32>
    %c0_2 = arith.constant 0 : index
    %c0_3 = arith.constant 0 : index
    %c0_4 = arith.constant 0 : index
    %2 = vector.load %arg3[%c0_2, %c0_3, %c0_4] : memref<1x128x128xf32, #tpu.memory_space<vmem>>, vector<1x128x128xf32>
    %3 = vector.shape_cast %2 : vector<1x128x128xf32> to vector<128x128xf32>
    %c0_5 = arith.constant 0 : index
    %c0_6 = arith.constant 0 : index
    %c0_7 = arith.constant 0 : index
    %4 = vector.load %arg4[%c0_5, %c0_6, %c0_7] : memref<1x64x128xf32, #tpu.memory_space<vmem>>, vector<1x64x128xf32>
    %5 = vector.shape_cast %4 : vector<1x64x128xf32> to vector<64x128xf32>
    %6 = arith.addf %1, %5 : vector<64x128xf32>
    %c0_8 = arith.constant 0 : index
    %c0_9 = arith.constant 0 : index
    %c0_10 = arith.constant 0 : index
    %7 = vector.load %arg5[%c0_8, %c0_9, %c0_10] : memref<1x128x128xf32, #tpu.memory_space<vmem>>, vector<1x128x128xf32>
    %8 = vector.shape_cast %7 : vector<1x128x128xf32> to vector<128x128xf32>
    %9 = arith.addf %3, %8 : vector<128x128xf32>
    %c0_11 = arith.constant 0 : index
    %c0_12 = arith.constant 0 : index
    %10 = vector.load %arg7[%c0_11, %c0_12] : memref<128x128xf32, #tpu.memory_space<vmem>>, vector<128x128xf32>
    %cst = arith.constant dense<0.000000e+00> : vector<64x128xf32>
    %11 = tpu.matmul %6, %10, %cst {dimension_numbers = #tpu.dot_dimension_numbers<[1], [0], [0], [1], [0, 0, 1, 1], [], []>} : vector<64x128xf32>, vector<128x128xf32>, vector<64x128xf32> -> vector<64x128xf32>
    %c0_13 = arith.constant 0 : index
    %c0_14 = arith.constant 0 : index
    %12 = vector.load %arg8[%c0_13, %c0_14] : memref<1x128xf32, #tpu.memory_space<vmem>>, vector<1x128xf32>
    %13 = vector.broadcast %12 : vector<1x128xf32> to vector<64x128xf32>
    %14 = arith.addf %11, %13 : vector<64x128xf32>
    %c0_15 = arith.constant 0 : index
    %c0_16 = arith.constant 0 : index
    %15 = vector.load %arg9[%c0_15, %c0_16] : memref<128x128xf32, #tpu.memory_space<vmem>>, vector<128x128xf32>
    %cst_17 = arith.constant dense<0.000000e+00> : vector<128x128xf32>
    %16 = tpu.matmul %9, %15, %cst_17 {dimension_numbers = #tpu.dot_dimension_numbers<[1], [0], [0], [1], [0, 0, 1, 1], [], []>} : vector<128x128xf32>, vector<128x128xf32>, vector<128x128xf32> -> vector<128x128xf32>
    %c0_18 = arith.constant 0 : index
    %c0_19 = arith.constant 0 : index
    %17 = vector.load %arg10[%c0_18, %c0_19] : memref<1x128xf32, #tpu.memory_space<vmem>>, vector<1x128xf32>
    %18 = vector.broadcast %17 : vector<1x128xf32> to vector<128x128xf32>
    %19 = arith.addf %16, %18 : vector<128x128xf32>
    %c0_20 = arith.constant 0 : index
    %c0_21 = arith.constant 0 : index
    %20 = vector.load %arg11[%c0_20, %c0_21] : memref<128x128xf32, #tpu.memory_space<vmem>>, vector<128x128xf32>
    %cst_22 = arith.constant dense<0.000000e+00> : vector<128x128xf32>
    %21 = tpu.matmul %3, %20, %cst_22 {dimension_numbers = #tpu.dot_dimension_numbers<[1], [0], [0], [1], [0, 0, 1, 1], [], []>} : vector<128x128xf32>, vector<128x128xf32>, vector<128x128xf32> -> vector<128x128xf32>
    %c0_23 = arith.constant 0 : index
    %c0_24 = arith.constant 0 : index
    %22 = vector.load %arg12[%c0_23, %c0_24] : memref<1x128xf32, #tpu.memory_space<vmem>>, vector<1x128xf32>
    %23 = vector.broadcast %22 : vector<1x128xf32> to vector<128x128xf32>
    %24 = arith.addf %21, %23 : vector<128x128xf32>
    %c0_25 = arith.constant 0 : index
    %c0_26 = arith.constant 0 : index
    %c0_27 = arith.constant 0 : index
    %25 = vector.load %arg6[%c0_25, %c0_26, %c0_27] : memref<1x1x128xf32, #tpu.memory_space<vmem>>, vector<1x1x128xf32>
    %26 = vector.shape_cast %25 : vector<1x1x128xf32> to vector<1x128xf32>
    %cst_28 = arith.constant -1.000000e+30 : f32
    %27 = vector.broadcast %cst_28 : f32 to vector<1x128xf32>
    %28 = arith.mulf %26, %27 : vector<1x128xf32>
    %29 = vector.extract_strided_slice %14 {offsets = [0, 0], sizes = [64, 32], strides = [1, 1]} : vector<64x128xf32> to vector<64x32xf32>
    %30 = vector.extract_strided_slice %19 {offsets = [0, 0], sizes = [128, 32], strides = [1, 1]} : vector<128x128xf32> to vector<128x32xf32>
    %cst_29 = arith.constant dense<0.000000e+00> : vector<64x128xf32>
    %31 = tpu.matmul %29, %30, %cst_29 {dimension_numbers = #tpu.dot_dimension_numbers<[1], [1], [0], [0], [0, 0, 1, 0], [], []>} : vector<64x32xf32>, vector<128x32xf32>, vector<64x128xf32> -> vector<64x128xf32>
    %32 = vector.broadcast %28 : vector<1x128xf32> to vector<64x128xf32>
    %33 = arith.addf %31, %32 : vector<64x128xf32>
    %cst_30 = arith.constant dense<0xFF800000> : vector<64xf32>
    %34 = vector.multi_reduction <maximumf>, %33, %cst_30 [1] : vector<64x128xf32> to vector<64xf32>
    %35 = vector.shape_cast %34 : vector<64xf32> to vector<64x1xf32>
    %36 = vector.broadcast %35 : vector<64x1xf32> to vector<64x128xf32>
    %37 = arith.subf %33, %36 : vector<64x128xf32>
    %38 = math.exp %37 : vector<64x128xf32>
    %cst_31 = arith.constant dense<0.000000e+00> : vector<64xf32>
    %39 = vector.multi_reduction <add>, %38, %cst_31 [1] : vector<64x128xf32> to vector<64xf32>
    %40 = vector.shape_cast %39 : vector<64xf32> to vector<64x1xf32>
    %41 = tpu.reciprocal %40 {approx = true} : vector<64x1xf32> -> vector<64x1xf32>
    %42 = vector.broadcast %41 : vector<64x1xf32> to vector<64x128xf32>
    %43 = arith.mulf %38, %42 : vector<64x128xf32>
    %44 = vector.extract_strided_slice %24 {offsets = [0, 0], sizes = [128, 32], strides = [1, 1]} : vector<128x128xf32> to vector<128x32xf32>
    %cst_32 = arith.constant dense<0.000000e+00> : vector<64x32xf32>
    %45 = tpu.matmul %43, %44, %cst_32 {dimension_numbers = #tpu.dot_dimension_numbers<[1], [0], [0], [1], [0, 0, 1, 1], [], []>} : vector<64x128xf32>, vector<128x32xf32>, vector<64x32xf32> -> vector<64x32xf32>
    %c0_33 = arith.constant 0 : index
    %c0_34 = arith.constant 0 : index
    %46 = vector.load %arg24[%c0_33, %c0_34] : memref<64x128xf32, #tpu.memory_space<vmem>>, vector<64x32xf32>
    tpu.vector_store %arg24[%c0_33, %c0_34], %45 {strides = array<i32>} : memref<64x128xf32, #tpu.memory_space<vmem>>, vector<64x32xf32>,
    %47 = vector.extract_strided_slice %14 {offsets = [0, 32], sizes = [64, 32], strides = [1, 1]} : vector<64x128xf32> to vector<64x32xf32>
    %48 = vector.extract_strided_slice %19 {offsets = [0, 32], sizes = [128, 32], strides = [1, 1]} : vector<128x128xf32> to vector<128x32xf32>
    %cst_35 = arith.constant dense<0.000000e+00> : vector<64x128xf32>
    %49 = tpu.matmul %47, %48, %cst_35 {dimension_numbers = #tpu.dot_dimension_numbers<[1], [1], [0], [0], [0, 0, 1, 0], [], []>} : vector<64x32xf32>, vector<128x32xf32>, vector<64x128xf32> -> vector<64x128xf32>
    %50 = vector.broadcast %28 : vector<1x128xf32> to vector<64x128xf32>
    %51 = arith.addf %49, %50 : vector<64x128xf32>
    %cst_36 = arith.constant dense<0xFF800000> : vector<64xf32>
    %52 = vector.multi_reduction <maximumf>, %51, %cst_36 [1] : vector<64x128xf32> to vector<64xf32>
    %53 = vector.shape_cast %52 : vector<64xf32> to vector<64x1xf32>
    %54 = vector.broadcast %53 : vector<64x1xf32> to vector<64x128xf32>
    %55 = arith.subf %51, %54 : vector<64x128xf32>
    %56 = math.exp %55 : vector<64x128xf32>
    %cst_37 = arith.constant dense<0.000000e+00> : vector<64xf32>
    %57 = vector.multi_reduction <add>, %56, %cst_37 [1] : vector<64x128xf32> to vector<64xf32>
    %58 = vector.shape_cast %57 : vector<64xf32> to vector<64x1xf32>
    %59 = tpu.reciprocal %58 {approx = true} : vector<64x1xf32> -> vector<64x1xf32>
    %60 = vector.broadcast %59 : vector<64x1xf32> to vector<64x128xf32>
    %61 = arith.mulf %56, %60 : vector<64x128xf32>
    %62 = vector.extract_strided_slice %24 {offsets = [0, 32], sizes = [128, 32], strides = [1, 1]} : vector<128x128xf32> to vector<128x32xf32>
    %cst_38 = arith.constant dense<0.000000e+00> : vector<64x32xf32>
    %63 = tpu.matmul %61, %62, %cst_38 {dimension_numbers = #tpu.dot_dimension_numbers<[1], [0], [0], [1], [0, 0, 1, 1], [], []>} : vector<64x128xf32>, vector<128x32xf32>, vector<64x32xf32> -> vector<64x32xf32>
    %c0_39 = arith.constant 0 : index
    %c32 = arith.constant 32 : index
    %64 = vector.load %arg24[%c0_39, %c32] : memref<64x128xf32, #tpu.memory_space<vmem>>, vector<64x32xf32>
    tpu.vector_store %arg24[%c0_39, %c32], %63 {strides = array<i32>} : memref<64x128xf32, #tpu.memory_space<vmem>>, vector<64x32xf32>,
    %65 = vector.extract_strided_slice %14 {offsets = [0, 64], sizes = [64, 32], strides = [1, 1]} : vector<64x128xf32> to vector<64x32xf32>
    %66 = vector.extract_strided_slice %19 {offsets = [0, 64], sizes = [128, 32], strides = [1, 1]} : vector<128x128xf32> to vector<128x32xf32>
    %cst_40 = arith.constant dense<0.000000e+00> : vector<64x128xf32>
    %67 = tpu.matmul %65, %66, %cst_40 {dimension_numbers = #tpu.dot_dimension_numbers<[1], [1], [0], [0], [0, 0, 1, 0], [], []>} : vector<64x32xf32>, vector<128x32xf32>, vector<64x128xf32> -> vector<64x128xf32>
    %68 = vector.broadcast %28 : vector<1x128xf32> to vector<64x128xf32>
    %69 = arith.addf %67, %68 : vector<64x128xf32>
    %cst_41 = arith.constant dense<0xFF800000> : vector<64xf32>
    %70 = vector.multi_reduction <maximumf>, %69, %cst_41 [1] : vector<64x128xf32> to vector<64xf32>
    %71 = vector.shape_cast %70 : vector<64xf32> to vector<64x1xf32>
    %72 = vector.broadcast %71 : vector<64x1xf32> to vector<64x128xf32>
    %73 = arith.subf %69, %72 : vector<64x128xf32>
    %74 = math.exp %73 : vector<64x128xf32>
    %cst_42 = arith.constant dense<0.000000e+00> : vector<64xf32>
    %75 = vector.multi_reduction <add>, %74, %cst_42 [1] : vector<64x128xf32> to vector<64xf32>
    %76 = vector.shape_cast %75 : vector<64xf32> to vector<64x1xf32>
    %77 = tpu.reciprocal %76 {approx = true} : vector<64x1xf32> -> vector<64x1xf32>
    %78 = vector.broadcast %77 : vector<64x1xf32> to vector<64x128xf32>
    %79 = arith.mulf %74, %78 : vector<64x128xf32>
    %80 = vector.extract_strided_slice %24 {offsets = [0, 64], sizes = [128, 32], strides = [1, 1]} : vector<128x128xf32> to vector<128x32xf32>
    %cst_43 = arith.constant dense<0.000000e+00> : vector<64x32xf32>
    %81 = tpu.matmul %79, %80, %cst_43 {dimension_numbers = #tpu.dot_dimension_numbers<[1], [0], [0], [1], [0, 0, 1, 1], [], []>} : vector<64x128xf32>, vector<128x32xf32>, vector<64x32xf32> -> vector<64x32xf32>
    %c0_44 = arith.constant 0 : index
    %c64 = arith.constant 64 : index
    %82 = vector.load %arg24[%c0_44, %c64] : memref<64x128xf32, #tpu.memory_space<vmem>>, vector<64x32xf32>
    tpu.vector_store %arg24[%c0_44, %c64], %81 {strides = array<i32>} : memref<64x128xf32, #tpu.memory_space<vmem>>, vector<64x32xf32>,
    %83 = vector.extract_strided_slice %14 {offsets = [0, 96], sizes = [64, 32], strides = [1, 1]} : vector<64x128xf32> to vector<64x32xf32>
    %84 = vector.extract_strided_slice %19 {offsets = [0, 96], sizes = [128, 32], strides = [1, 1]} : vector<128x128xf32> to vector<128x32xf32>
    %cst_45 = arith.constant dense<0.000000e+00> : vector<64x128xf32>
    %85 = tpu.matmul %83, %84, %cst_45 {dimension_numbers = #tpu.dot_dimension_numbers<[1], [1], [0], [0], [0, 0, 1, 0], [], []>} : vector<64x32xf32>, vector<128x32xf32>, vector<64x128xf32> -> vector<64x128xf32>
    %86 = vector.broadcast %28 : vector<1x128xf32> to vector<64x128xf32>
    %87 = arith.addf %85, %86 : vector<64x128xf32>
    %cst_46 = arith.constant dense<0xFF800000> : vector<64xf32>
    %88 = vector.multi_reduction <maximumf>, %87, %cst_46 [1] : vector<64x128xf32> to vector<64xf32>
    %89 = vector.shape_cast %88 : vector<64xf32> to vector<64x1xf32>
    %90 = vector.broadcast %89 : vector<64x1xf32> to vector<64x128xf32>
    %91 = arith.subf %87, %90 : vector<64x128xf32>
    %92 = math.exp %91 : vector<64x128xf32>
    %cst_47 = arith.constant dense<0.000000e+00> : vector<64xf32>
    %93 = vector.multi_reduction <add>, %92, %cst_47 [1] : vector<64x128xf32> to vector<64xf32>
    %94 = vector.shape_cast %93 : vector<64xf32> to vector<64x1xf32>
    %95 = tpu.reciprocal %94 {approx = true} : vector<64x1xf32> -> vector<64x1xf32>
    %96 = vector.broadcast %95 : vector<64x1xf32> to vector<64x128xf32>
    %97 = arith.mulf %92, %96 : vector<64x128xf32>
    %98 = vector.extract_strided_slice %24 {offsets = [0, 96], sizes = [128, 32], strides = [1, 1]} : vector<128x128xf32> to vector<128x32xf32>
    %cst_48 = arith.constant dense<0.000000e+00> : vector<64x32xf32>
    %99 = tpu.matmul %97, %98, %cst_48 {dimension_numbers = #tpu.dot_dimension_numbers<[1], [0], [0], [1], [0, 0, 1, 1], [], []>} : vector<64x128xf32>, vector<128x32xf32>, vector<64x32xf32> -> vector<64x32xf32>
    %c0_49 = arith.constant 0 : index
    %c96 = arith.constant 96 : index
    %100 = vector.load %arg24[%c0_49, %c96] : memref<64x128xf32, #tpu.memory_space<vmem>>, vector<64x32xf32>
    tpu.vector_store %arg24[%c0_49, %c96], %99 {strides = array<i32>} : memref<64x128xf32, #tpu.memory_space<vmem>>, vector<64x32xf32>,
    %c0_50 = arith.constant 0 : index
    %c0_51 = arith.constant 0 : index
    %101 = vector.load %arg24[%c0_50, %c0_51] : memref<64x128xf32, #tpu.memory_space<vmem>>, vector<64x128xf32>
    %c0_52 = arith.constant 0 : index
    %c0_53 = arith.constant 0 : index
    %102 = vector.load %arg13[%c0_52, %c0_53] : memref<128x128xf32, #tpu.memory_space<vmem>>, vector<128x128xf32>
    %cst_54 = arith.constant dense<0.000000e+00> : vector<64x128xf32>
    %103 = tpu.matmul %101, %102, %cst_54 {dimension_numbers = #tpu.dot_dimension_numbers<[1], [0], [0], [1], [0, 0, 1, 1], [], []>} : vector<64x128xf32>, vector<128x128xf32>, vector<64x128xf32> -> vector<64x128xf32>
    %c0_55 = arith.constant 0 : index
    %c0_56 = arith.constant 0 : index
    %104 = vector.load %arg14[%c0_55, %c0_56] : memref<1x128xf32, #tpu.memory_space<vmem>>, vector<1x128xf32>
    %105 = vector.broadcast %104 : vector<1x128xf32> to vector<64x128xf32>
    %106 = arith.addf %103, %105 : vector<64x128xf32>
    %107 = arith.addf %1, %106 : vector<64x128xf32>
    %cst_57 = arith.constant dense<0.000000e+00> : vector<64xf32>
    %108 = vector.multi_reduction <add>, %107, %cst_57 [1] : vector<64x128xf32> to vector<64xf32>
    %109 = vector.shape_cast %108 : vector<64xf32> to vector<64x1xf32>
    %cst_58 = arith.constant 1.280000e+02 : f32
    %110 = vector.broadcast %cst_58 : f32 to vector<64x1xf32>
    %111 = arith.divf %109, %110 : vector<64x1xf32>
    %112 = vector.broadcast %111 : vector<64x1xf32> to vector<64x128xf32>
    %113 = arith.subf %107, %112 : vector<64x128xf32>
    %114 = arith.mulf %113, %113 : vector<64x128xf32>
    %cst_59 = arith.constant dense<0.000000e+00> : vector<64xf32>
    %115 = vector.multi_reduction <add>, %114, %cst_59 [1] : vector<64x128xf32> to vector<64xf32>
    %116 = vector.shape_cast %115 : vector<64xf32> to vector<64x1xf32>
    %cst_60 = arith.constant 1.280000e+02 : f32
    %117 = vector.broadcast %cst_60 : f32 to vector<64x1xf32>
    %118 = arith.divf %116, %117 : vector<64x1xf32>
    %119 = vector.broadcast %111 : vector<64x1xf32> to vector<64x128xf32>
    %120 = arith.subf %107, %119 : vector<64x128xf32>
    %cst_61 = arith.constant 9.99999974E-6 : f32
    %121 = vector.broadcast %cst_61 : f32 to vector<64x1xf32>
    %122 = arith.addf %118, %121 : vector<64x1xf32>
    %123 = math.rsqrt %122 : vector<64x1xf32>
    %124 = vector.broadcast %123 : vector<64x1xf32> to vector<64x128xf32>
    %125 = arith.mulf %120, %124 : vector<64x128xf32>
    %c0_62 = arith.constant 0 : index
    %c0_63 = arith.constant 0 : index
    %126 = vector.load %arg15[%c0_62, %c0_63] : memref<1x128xf32, #tpu.memory_space<vmem>>, vector<1x128xf32>
    %127 = vector.broadcast %126 : vector<1x128xf32> to vector<64x128xf32>
    %128 = arith.mulf %125, %127 : vector<64x128xf32>
    %c0_64 = arith.constant 0 : index
    %c0_65 = arith.constant 0 : index
    %129 = vector.load %arg16[%c0_64, %c0_65] : memref<1x128xf32, #tpu.memory_space<vmem>>, vector<1x128xf32>
    %130 = vector.broadcast %129 : vector<1x128xf32> to vector<64x128xf32>
    %131 = arith.addf %128, %130 : vector<64x128xf32>
    %c0_66 = arith.constant 0 : index
    %c0_67 = arith.constant 0 : index
    %132 = vector.load %arg17[%c0_66, %c0_67] : memref<128x256xf32, #tpu.memory_space<vmem>>, vector<128x256xf32>
    %cst_68 = arith.constant dense<0.000000e+00> : vector<64x256xf32>
    %133 = tpu.matmul %131, %132, %cst_68 {dimension_numbers = #tpu.dot_dimension_numbers<[1], [0], [0], [1], [0, 0, 1, 1], [], []>} : vector<64x128xf32>, vector<128x256xf32>, vector<64x256xf32> -> vector<64x256xf32>
    %c0_69 = arith.constant 0 : index
    %c0_70 = arith.constant 0 : index
    %134 = vector.load %arg18[%c0_69, %c0_70] : memref<1x256xf32, #tpu.memory_space<vmem>>, vector<1x256xf32>
    %135 = vector.broadcast %134 : vector<1x256xf32> to vector<64x256xf32>
    %136 = arith.addf %133, %135 : vector<64x256xf32>
    %cst_71 = arith.constant 0.000000e+00 : f32
    %137 = vector.broadcast %cst_71 : f32 to vector<64x256xf32>
    %138 = arith.maximumf %136, %137 : vector<64x256xf32>
    %c0_72 = arith.constant 0 : index
    %c0_73 = arith.constant 0 : index
    %139 = vector.load %arg19[%c0_72, %c0_73] : memref<256x128xf32, #tpu.memory_space<vmem>>, vector<256x128xf32>
    %cst_74 = arith.constant dense<0.000000e+00> : vector<64x128xf32>
    %140 = tpu.matmul %138, %139, %cst_74 {dimension_numbers = #tpu.dot_dimension_numbers<[1], [0], [0], [1], [0, 0, 1, 1], [], []>} : vector<64x256xf32>, vector<256x128xf32>, vector<64x128xf32> -> vector<64x128xf32>
    %c0_75 = arith.constant 0 : index
    %c0_76 = arith.constant 0 : index
    %141 = vector.load %arg20[%c0_75, %c0_76] : memref<1x128xf32, #tpu.memory_space<vmem>>, vector<1x128xf32>
    %142 = vector.broadcast %141 : vector<1x128xf32> to vector<64x128xf32>
    %143 = arith.addf %140, %142 : vector<64x128xf32>
    %144 = arith.addf %131, %143 : vector<64x128xf32>
    %cst_77 = arith.constant dense<0.000000e+00> : vector<64xf32>
    %145 = vector.multi_reduction <add>, %144, %cst_77 [1] : vector<64x128xf32> to vector<64xf32>
    %146 = vector.shape_cast %145 : vector<64xf32> to vector<64x1xf32>
    %cst_78 = arith.constant 1.280000e+02 : f32
    %147 = vector.broadcast %cst_78 : f32 to vector<64x1xf32>
    %148 = arith.divf %146, %147 : vector<64x1xf32>
    %149 = vector.broadcast %148 : vector<64x1xf32> to vector<64x128xf32>
    %150 = arith.subf %144, %149 : vector<64x128xf32>
    %151 = arith.mulf %150, %150 : vector<64x128xf32>
    %cst_79 = arith.constant dense<0.000000e+00> : vector<64xf32>
    %152 = vector.multi_reduction <add>, %151, %cst_79 [1] : vector<64x128xf32> to vector<64xf32>
    %153 = vector.shape_cast %152 : vector<64xf32> to vector<64x1xf32>
    %cst_80 = arith.constant 1.280000e+02 : f32
    %154 = vector.broadcast %cst_80 : f32 to vector<64x1xf32>
    %155 = arith.divf %153, %154 : vector<64x1xf32>
    %156 = vector.broadcast %148 : vector<64x1xf32> to vector<64x128xf32>
    %157 = arith.subf %144, %156 : vector<64x128xf32>
    %cst_81 = arith.constant 9.99999974E-6 : f32
    %158 = vector.broadcast %cst_81 : f32 to vector<64x1xf32>
    %159 = arith.addf %155, %158 : vector<64x1xf32>
    %160 = math.rsqrt %159 : vector<64x1xf32>
    %161 = vector.broadcast %160 : vector<64x1xf32> to vector<64x128xf32>
    %162 = arith.mulf %157, %161 : vector<64x128xf32>
    %c0_82 = arith.constant 0 : index
    %c0_83 = arith.constant 0 : index
    %163 = vector.load %arg21[%c0_82, %c0_83] : memref<1x128xf32, #tpu.memory_space<vmem>>, vector<1x128xf32>
    %164 = vector.broadcast %163 : vector<1x128xf32> to vector<64x128xf32>
    %165 = arith.mulf %162, %164 : vector<64x128xf32>
    %c0_84 = arith.constant 0 : index
    %c0_85 = arith.constant 0 : index
    %166 = vector.load %arg22[%c0_84, %c0_85] : memref<1x128xf32, #tpu.memory_space<vmem>>, vector<1x128xf32>
    %167 = vector.broadcast %166 : vector<1x128xf32> to vector<64x128xf32>
    %168 = arith.addf %165, %167 : vector<64x128xf32>
    %c0_86 = arith.constant 0 : index
    %c0_87 = arith.constant 0 : index
    %c0_88 = arith.constant 0 : index
    %169 = vector.load %arg23[%c0_86, %c0_87, %c0_88] : memref<1x64x128xf32, #tpu.memory_space<vmem>>, vector<1x64x128xf32>
    %170 = vector.shape_cast %169 : vector<1x64x128xf32> to vector<64x128xf32>
    %171 = vector.shape_cast %168 : vector<64x128xf32> to vector<1x64x128xf32>
    tpu.vector_store %arg23[%c0_86, %c0_87, %c0_88], %171 {strides = array<i32>} : memref<1x64x128xf32, #tpu.memory_space<vmem>>, vector<1x64x128xf32>,
    return
  }
  func.func @transform_0(%arg0: i32, %arg1: i32) -> (i32, i32, i32) {
    %c0_i32 = arith.constant 0 : i32
    %c0_i32_0 = arith.constant 0 : i32
    return %arg0, %arg1, %c0_i32 : i32, i32, i32
  }
  func.func @transform_1(%arg0: i32, %arg1: i32) -> (i32, i32, i32) {
    %c0_i32 = arith.constant 0 : i32
    %c0_i32_0 = arith.constant 0 : i32
    %c0_i32_1 = arith.constant 0 : i32
    return %arg0, %c0_i32, %c0_i32_0 : i32, i32, i32
  }
  func.func @transform_2(%arg0: i32, %arg1: i32) -> (i32, i32, i32) {
    %c0_i32 = arith.constant 0 : i32
    %c0_i32_0 = arith.constant 0 : i32
    return %arg0, %arg1, %c0_i32 : i32, i32, i32
  }
  func.func @transform_3(%arg0: i32, %arg1: i32) -> (i32, i32, i32) {
    %c0_i32 = arith.constant 0 : i32
    %c0_i32_0 = arith.constant 0 : i32
    %c0_i32_1 = arith.constant 0 : i32
    return %arg0, %c0_i32, %c0_i32_0 : i32, i32, i32
  }
  func.func @transform_4(%arg0: i32, %arg1: i32) -> (i32, i32, i32) {
    %c0_i32 = arith.constant 0 : i32
    %c0_i32_0 = arith.constant 0 : i32
    %c0_i32_1 = arith.constant 0 : i32
    return %arg0, %c0_i32, %c0_i32_0 : i32, i32, i32
  }
  func.func @transform_5(%arg0: i32, %arg1: i32) -> (i32, i32) {
    %c0_i32 = arith.constant 0 : i32
    %c0_i32_0 = arith.constant 0 : i32
    %c0_i32_1 = arith.constant 0 : i32
    return %c0_i32, %c0_i32_0 : i32, i32
  }
  func.func @transform_6(%arg0: i32, %arg1: i32) -> (i32, i32) {
    %c0_i32 = arith.constant 0 : i32
    %c0_i32_0 = arith.constant 0 : i32
    %c0_i32_1 = arith.constant 0 : i32
    return %c0_i32, %c0_i32_0 : i32, i32
  }
  func.func @transform_7(%arg0: i32, %arg1: i32) -> (i32, i32) {
    %c0_i32 = arith.constant 0 : i32
    %c0_i32_0 = arith.constant 0 : i32
    %c0_i32_1 = arith.constant 0 : i32
    return %c0_i32, %c0_i32_0 : i32, i32
  }
  func.func @transform_8(%arg0: i32, %arg1: i32) -> (i32, i32) {
    %c0_i32 = arith.constant 0 : i32
    %c0_i32_0 = arith.constant 0 : i32
    %c0_i32_1 = arith.constant 0 : i32
    return %c0_i32, %c0_i32_0 : i32, i32
  }
  func.func @transform_9(%arg0: i32, %arg1: i32) -> (i32, i32) {
    %c0_i32 = arith.constant 0 : i32
    %c0_i32_0 = arith.constant 0 : i32
    %c0_i32_1 = arith.constant 0 : i32
    return %c0_i32, %c0_i32_0 : i32, i32
  }
  func.func @transform_10(%arg0: i32, %arg1: i32) -> (i32, i32) {
    %c0_i32 = arith.constant 0 : i32
    %c0_i32_0 = arith.constant 0 : i32
    %c0_i32_1 = arith.constant 0 : i32
    return %c0_i32, %c0_i32_0 : i32, i32
  }
  func.func @transform_11(%arg0: i32, %arg1: i32) -> (i32, i32) {
    %c0_i32 = arith.constant 0 : i32
    %c0_i32_0 = arith.constant 0 : i32
    %c0_i32_1 = arith.constant 0 : i32
    return %c0_i32, %c0_i32_0 : i32, i32
  }
  func.func @transform_12(%arg0: i32, %arg1: i32) -> (i32, i32) {
    %c0_i32 = arith.constant 0 : i32
    %c0_i32_0 = arith.constant 0 : i32
    %c0_i32_1 = arith.constant 0 : i32
    return %c0_i32, %c0_i32_0 : i32, i32
  }
  func.func @transform_13(%arg0: i32, %arg1: i32) -> (i32, i32) {
    %c0_i32 = arith.constant 0 : i32
    %c0_i32_0 = arith.constant 0 : i32
    %c0_i32_1 = arith.constant 0 : i32
    return %c0_i32, %c0_i32_0 : i32, i32
  }
  func.func @transform_14(%arg0: i32, %arg1: i32) -> (i32, i32) {
    %c0_i32 = arith.constant 0 : i32
    %c0_i32_0 = arith.constant 0 : i32
    %c0_i32_1 = arith.constant 0 : i32
    return %c0_i32, %c0_i32_0 : i32, i32
  }
  func.func @transform_15(%arg0: i32, %arg1: i32) -> (i32, i32) {
    %c0_i32 = arith.constant 0 : i32
    %c0_i32_0 = arith.constant 0 : i32
    %c0_i32_1 = arith.constant 0 : i32
    return %c0_i32, %c0_i32_0 : i32, i32
  }
  func.func @transform_16(%arg0: i32, %arg1: i32) -> (i32, i32) {
    %c0_i32 = arith.constant 0 : i32
    %c0_i32_0 = arith.constant 0 : i32
    %c0_i32_1 = arith.constant 0 : i32
    return %c0_i32, %c0_i32_0 : i32, i32
  }
  func.func @transform_17(%arg0: i32, %arg1: i32) -> (i32, i32) {
    %c0_i32 = arith.constant 0 : i32
    %c0_i32_0 = arith.constant 0 : i32
    %c0_i32_1 = arith.constant 0 : i32
    return %c0_i32, %c0_i32_0 : i32, i32
  }
  func.func @transform_18(%arg0: i32, %arg1: i32) -> (i32, i32) {
    %c0_i32 = arith.constant 0 : i32
    %c0_i32_0 = arith.constant 0 : i32
    %c0_i32_1 = arith.constant 0 : i32
    return %c0_i32, %c0_i32_0 : i32, i32
  }
  func.func @transform_19(%arg0: i32, %arg1: i32) -> (i32, i32) {
    %c0_i32 = arith.constant 0 : i32
    %c0_i32_0 = arith.constant 0 : i32
    %c0_i32_1 = arith.constant 0 : i32
    return %c0_i32, %c0_i32_0 : i32, i32
  }
  func.func @transform_20(%arg0: i32, %arg1: i32) -> (i32, i32) {
    %c0_i32 = arith.constant 0 : i32
    %c0_i32_0 = arith.constant 0 : i32
    %c0_i32_1 = arith.constant 0 : i32
    return %c0_i32, %c0_i32_0 : i32, i32
  }
  func.func @transform_21(%arg0: i32, %arg1: i32) -> (i32, i32, i32) {
    %c0_i32 = arith.constant 0 : i32
    %c0_i32_0 = arith.constant 0 : i32
    return %arg0, %arg1, %c0_i32 : i32, i32, i32
  }
}

</mosaic_0001>

<llo_original>
// kernel: encoder_layer_forward.1
$region0: #{encoder_layer_forward.1}
  #allocation0 [shape = 'u32[]', space=smem, size = 0x4, offset = 0x4, fixed_abs, tag = 'smem constant byte address 0x4 - core index']
  #allocation1 [shape = 'u32[144,128]{1,0:T(1,128)}', space=vmem, size = 0x12000, scoped, tag = 'internal scratch']
  #allocation2 [shape = 'f32[64,128]{1,0:T(8,128)}', space=vmem, size = 0x8000, scoped, tag = 'scratch operand']
  %s0 = inlined_call_operand.vmem [shape: f32[2,128,128], index: 0, kind: input, shape index: {}, may-alias: {0,1}]
  %s1 = inlined_call_operand.vmem [shape: f32[2,128,128], index: 1, kind: input, shape index: {}, may-alias: {0,1}]
  %s2 = inlined_call_operand.vmem [shape: f32[2,128,128], index: 2, kind: input, shape index: {}, may-alias: {2,3}]
  %s3 = inlined_call_operand.vmem [shape: f32[2,128,128], index: 3, kind: input, shape index: {}, may-alias: {2,3}]
  %s4 = inlined_call_operand.vmem [shape: f32[2,1,128], index: 4, kind: input, shape index: {}]
  %s5 = inlined_call_operand.vmem [shape: f32[128,128], index: 5, kind: input, shape index: {}]
  %s6 = inlined_call_operand.vmem [shape: f32[1,128], index: 6, kind: input, shape index: {}]
  %s7 = inlined_call_operand.vmem [shape: f32[128,128], index: 7, kind: input, shape index: {}]
  %s8 = inlined_call_operand.vmem [shape: f32[1,128], index: 8, kind: input, shape index: {}]
  %s9 = inlined_call_operand.vmem [shape: f32[128,128], index: 9, kind: input, shape index: {}]
  %s10 = inlined_call_operand.vmem [shape: f32[1,128], index: 10, kind: input, shape index: {}]
  %s11 = inlined_call_operand.vmem [shape: f32[128,128], index: 11, kind: input, shape index: {}]
  %s12 = inlined_call_operand.vmem [shape: f32[1,128], index: 12, kind: input, shape index: {}]
  %s13 = inlined_call_operand.vmem [shape: f32[1,128], index: 13, kind: input, shape index: {}]
  %s14 = inlined_call_operand.hbm [shape: f32[1,128], index: 14, kind: input, shape index: {}]
  %s15 = inlined_call_operand.vmem [shape: f32[128,256], index: 15, kind: input, shape index: {}]
  %s16 = inlined_call_operand.vmem [shape: f32[1,256], index: 16, kind: input, shape index: {}]
  %s17 = inlined_call_operand.vmem [shape: f32[256,128], index: 17, kind: input, shape index: {}]
  %s18 = inlined_call_operand.hbm [shape: f32[1,128], index: 18, kind: input, shape index: {}]
  %s19 = inlined_call_operand.vmem [shape: f32[1,128], index: 19, kind: input, shape index: {}]
  %s20 = inlined_call_operand.hbm [shape: f32[1,128], index: 20, kind: input, shape index: {}]
  %s21 = inlined_call_operand.vmem [shape: f32[2,128,128], index: 21, kind: output, shape index: {}]
  %s22 = sld [smem:[#allocation0]]
  $region129: #{encoder_layer_forward.1} parent=0
    _
  %s24 = ssub.s32 1, %s22
  %s25 = scalar_select 0, %s24, %s22
  $region1: #{encoder_layer_forward.1} parent=0
    #allocation3 [shape = 'u8[512]{0}', space=vmem, size = 0x400, scoped, tag = 'input window, operand 14, single buffered']
    #allocation4 [shape = 's32[2]{0}', space=sflag, size = 0x8, scoped, tag = 'scoped memory for encoder_layer_forward.1']
    #allocation5 [shape = 'u8[512]{0}', space=vmem, size = 0x400, scoped, tag = 'input window, operand 18, single buffered']
    #allocation6 [shape = 's32[1]{0}', space=sflag, size = 0x4, scoped, tag = 'scoped memory for encoder_layer_forward.1']
    #allocation7 [shape = 'u8[512]{0}', space=vmem, size = 0x400, scoped, tag = 'input window, operand 20, single buffered']
    %26 = vsyncpa [#allocation4], 0
    %27 = vsyncpa [#allocation6], 0
    loop: start=0, step=1, limit=6
    $region2: #{encoder_layer_forward.1} parent=1 // loop_pre_header
      _
    $region3: #{encoder_layer_forward.1} parent=1 // loop_header
      %s29 = sphi 0, %s33
      %p30 = scmp.ge.s32.totalorder %s29, 6
      %s36 = sphi 0, %s48
      %s37 = sphi 0, %s44
      %s38 = sphi 0, %s36
      %s39 = sphi 0, %s37
      %s40 = sphi 0, %s38
      %s41 = sphi 0, %s39
      %s53 = sphi 0, %s55
      %s56 = sphi 0, %s53
      %s57 = sphi 0, %s56
      %s73 = sphi 0, %s57
      %s79 = sphi 0, %s81
      %s82 = sphi 0, %s79
      %s83 = sphi 0, %s82
      %s99 = sphi 0, %s83
      %s107 = sphi 0, %s109
      %s110 = sphi 0, %s107
      %s111 = sphi 0, %s110
      %s127 = sphi 0, %s111
      %s133 = sphi 0, %s135
      %s136 = sphi 0, %s133
      %s137 = sphi 0, %s136
      %s153 = sphi 0, %s137
      %s159 = sphi 0, %s161
      %s162 = sphi 0, %s159
      %s163 = sphi 0, %s162
      %s179 = sphi 0, %s163
      %s183 = sphi 0, %s183
      %s185 = sphi 0, %s183
      %s186 = sphi 0, %s185
      %s200 = sphi 0, %s186
      %s204 = sphi 0, %s204
      %s206 = sphi 0, %s204
      %s207 = sphi 0, %s206
      %s221 = sphi 0, %s207
      %s225 = sphi 0, %s225
      %s227 = sphi 0, %s225
      %s228 = sphi 0, %s227
      %s242 = sphi 0, %s228
      %s246 = sphi 0, %s246
      %s248 = sphi 0, %s246
      %s249 = sphi 0, %s248
      %s263 = sphi 0, %s249
      %s267 = sphi 0, %s267
      %s269 = sphi 0, %s267
      %s270 = sphi 0, %s269
      %s284 = sphi 0, %s270
      %s288 = sphi 0, %s288
      %s290 = sphi 0, %s288
      %s291 = sphi 0, %s290
      %s305 = sphi 0, %s291
      %s309 = sphi 0, %s309
      %s311 = sphi 0, %s309
      %s312 = sphi 0, %s311
      %s326 = sphi 0, %s312
      %s330 = sphi 0, %s330
      %s332 = sphi 0, %s330
      %s333 = sphi 0, %s332
      %s347 = sphi 0, %s333
      %s351 = sphi 0, %s351
      %s353 = sphi 0, %s351
      %s354 = sphi 0, %s353
      %s368 = sphi 0, %s354
      %s372 = sphi 0, %s372
      %s374 = sphi 0, %s372
      %s375 = sphi 0, %s374
      %s389 = sphi 0, %s375
      %s393 = sphi 0, %s393
      %s395 = sphi 0, %s393
      %s396 = sphi 0, %s395
      %s410 = sphi 0, %s396
      %s414 = sphi 0, %s414
      %s416 = sphi 0, %s414
      %s417 = sphi 0, %s416
      %s431 = sphi 0, %s417
      %s435 = sphi 0, %s435
      %s437 = sphi 0, %s435
      %s438 = sphi 0, %s437
      %s452 = sphi 0, %s438
      %s456 = sphi 0, %s456
      %s458 = sphi 0, %s456
      %s459 = sphi 0, %s458
      %s473 = sphi 0, %s459
      %s477 = sphi 0, %s477
      %s479 = sphi 0, %s477
      %s480 = sphi 0, %s479
      %s494 = sphi 0, %s480
      %s498 = sphi 0, %s498
      %s500 = sphi 0, %s498
      %s501 = sphi 0, %s500
      %s515 = sphi 0, %s501
      %s523 = sphi 0, %s525
      %s526 = sphi 0, %s523
      %s527 = sphi 0, %s526
      %s543 = sphi 0, %s527
    $region4: #{encoder_layer_forward.1} parent=1 // loop_header_branch
      %32 = sbr.rel (%p30) target = $region8
    $region5: #{encoder_layer_forward.1} parent=1 // loop_body
      %s34 = ssub.s32 %s29, 1
      %s35 = ssub.s32 %s29, 2
      %s42 = sadd.s32 1, %s37
      %p43 = scmp.ge.s32.totalorder %s42, 2
      %s44 = scalar_select %p43, 0, %s42
      %s45 = sadd.s32 1, %s36
      %s46 = scalar_select %p43, %s45, %s36
      %p47 = scmp.ge.s32.totalorder %s46, 2
      %s48 = scalar_select %p47, 0, %s46
      %s49 = ssub.s32 %s36, %s48
      %s50 = ssub.s32 %s37, %s44
      %s51 = sor.u32 %s49, %s50
      %p52 = scmp.eq.s32.totalorder %s51, 0
      %s54 = sadd.s32 %s53, 1
      %s55 = scalar_select %p52, %s53, %s54
      %p58 = pneg %p52
      %p59 = scmp.eq.s32.totalorder %s29, 3
      %p60 = por %p58, %p59
      %p61 = scmp.ne.s32.totalorder %s53, %s56
      %p62 = scmp.eq.s32.totalorder %s29, 0
      %p63 = por %p61, %p62
      %p64 = scmp.ne.s32.totalorder %s53, %s56
      %p65 = scmp.eq.s32.totalorder %s34, 3
      %p66 = por %p64, %p65
      %p67 = scmp.ne.s32.totalorder %s56, %s57
      %p68 = scmp.eq.s32.totalorder %s34, 0
      %p69 = por %p67, %p68
      %p70 = scmp.ne.s32.totalorder %s56, %s57
      %p71 = scmp.eq.s32.totalorder %s35, 3
      %p72 = por %p70, %p71
      %p74 = scmp.ne.s32.totalorder %s57, %s73
      %p75 = scmp.eq.s32.totalorder %s35, 0
      %p76 = por %p74, %p75
      %s77 = ssub.s32 %s36, %s48
      %p78 = scmp.eq.s32.totalorder %s77, 0
      %s80 = sadd.s32 %s79, 1
      %s81 = scalar_select %p78, %s79, %s80
      %p84 = pneg %p78
      %p85 = scmp.eq.s32.totalorder %s29, 3
      %p86 = por %p84, %p85
      %p87 = scmp.ne.s32.totalorder %s79, %s82
      %p88 = scmp.eq.s32.totalorder %s29, 0
      %p89 = por %p87, %p88
      %p90 = scmp.ne.s32.totalorder %s79, %s82
      %p91 = scmp.eq.s32.totalorder %s34, 3
      %p92 = por %p90, %p91
      %p93 = scmp.ne.s32.totalorder %s82, %s83
      %p94 = scmp.eq.s32.totalorder %s34, 0
      %p95 = por %p93, %p94
      %p96 = scmp.ne.s32.totalorder %s82, %s83
      %p97 = scmp.eq.s32.totalorder %s35, 3
      %p98 = por %p96, %p97
      %p100 = scmp.ne.s32.totalorder %s83, %s99
      %p101 = scmp.eq.s32.totalorder %s35, 0
      %p102 = por %p100, %p101
      %s103 = ssub.s32 %s36, %s48
      %s104 = ssub.s32 %s37, %s44
      %s105 = sor.u32 %s103, %s104
      %p106 = scmp.eq.s32.totalorder %s105, 0
      %s108 = sadd.s32 %s107, 1
      %s109 = scalar_select %p106, %s107, %s108
      %p112 = pneg %p106
      %p113 = scmp.eq.s32.totalorder %s29, 3
      %p114 = por %p112, %p113
      %p115 = scmp.ne.s32.totalorder %s107, %s110
      %p116 = scmp.eq.s32.totalorder %s29, 0
      %p117 = por %p115, %p116
      %p118 = scmp.ne.s32.totalorder %s107, %s110
      %p119 = scmp.eq.s32.totalorder %s34, 3
      %p120 = por %p118, %p119
      %p121 = scmp.ne.s32.totalorder %s110, %s111
      %p122 = scmp.eq.s32.totalorder %s34, 0
      %p123 = por %p121, %p122
      %p124 = scmp.ne.s32.totalorder %s110, %s111
      %p125 = scmp.eq.s32.totalorder %s35, 3
      %p126 = por %p124, %p125
      %p128 = scmp.ne.s32.totalorder %s111, %s127
      %p129 = scmp.eq.s32.totalorder %s35, 0
      %p130 = por %p128, %p129
      %s131 = ssub.s32 %s36, %s48
      %p132 = scmp.eq.s32.totalorder %s131, 0
      %s134 = sadd.s32 %s133, 1
      %s135 = scalar_select %p132, %s133, %s134
      %p138 = pneg %p132
      %p139 = scmp.eq.s32.totalorder %s29, 3
      %p140 = por %p138, %p139
      %p141 = scmp.ne.s32.totalorder %s133, %s136
      %p142 = scmp.eq.s32.totalorder %s29, 0
      %p143 = por %p141, %p142
      %p144 = scmp.ne.s32.totalorder %s133, %s136
      %p145 = scmp.eq.s32.totalorder %s34, 3
      %p146 = por %p144, %p145
      %p147 = scmp.ne.s32.totalorder %s136, %s137
      %p148 = scmp.eq.s32.totalorder %s34, 0
      %p149 = por %p147, %p148
      %p150 = scmp.ne.s32.totalorder %s136, %s137
      %p151 = scmp.eq.s32.totalorder %s35, 3
      %p152 = por %p150, %p151
      %p154 = scmp.ne.s32.totalorder %s137, %s153
      %p155 = scmp.eq.s32.totalorder %s35, 0
      %p156 = por %p154, %p155
      %s157 = ssub.s32 %s36, %s48
      %p158 = scmp.eq.s32.totalorder %s157, 0
      %s160 = sadd.s32 %s159, 1
      %s161 = scalar_select %p158, %s159, %s160
      %p164 = pneg %p158
      %p165 = scmp.eq.s32.totalorder %s29, 3
      %p166 = por %p164, %p165
      %p167 = scmp.ne.s32.totalorder %s159, %s162
      %p168 = scmp.eq.s32.totalorder %s29, 0
      %p169 = por %p167, %p168
      %p170 = scmp.ne.s32.totalorder %s159, %s162
      %p171 = scmp.eq.s32.totalorder %s34, 3
      %p172 = por %p170, %p171
      %p173 = scmp.ne.s32.totalorder %s162, %s163
      %p174 = scmp.eq.s32.totalorder %s34, 0
      %p175 = por %p173, %p174
      %p176 = scmp.ne.s32.totalorder %s162, %s163
      %p177 = scmp.eq.s32.totalorder %s35, 3
      %p178 = por %p176, %p177
      %p180 = scmp.ne.s32.totalorder %s163, %s179
      %p181 = scmp.eq.s32.totalorder %s35, 0
      %p182 = por %p180, %p181
      %s184 = sadd.s32 %s183, 1
      %p187 = scmp.eq.s32.totalorder %s29, 3
      %p188 = scmp.ne.s32.totalorder %s183, %s185
      %p189 = scmp.eq.s32.totalorder %s29, 0
      %p190 = por %p188, %p189
      %p191 = scmp.ne.s32.totalorder %s183, %s185
      %p192 = scmp.eq.s32.totalorder %s34, 3
      %p193 = por %p191, %p192
      %p194 = scmp.ne.s32.totalorder %s185, %s186
      %p195 = scmp.eq.s32.totalorder %s34, 0
      %p196 = por %p194, %p195
      %p197 = scmp.ne.s32.totalorder %s185, %s186
      %p198 = scmp.eq.s32.totalorder %s35, 3
      %p199 = por %p197, %p198
      %p201 = scmp.ne.s32.totalorder %s186, %s200
      %p202 = scmp.eq.s32.totalorder %s35, 0
      %p203 = por %p201, %p202
      %s205 = sadd.s32 %s204, 1
      %p208 = scmp.eq.s32.totalorder %s29, 3
      %p209 = scmp.ne.s32.totalorder %s204, %s206
      %p210 = scmp.eq.s32.totalorder %s29, 0
      %p211 = por %p209, %p210
      %p212 = scmp.ne.s32.totalorder %s204, %s206
      %p213 = scmp.eq.s32.totalorder %s34, 3
      %p214 = por %p212, %p213
      %p215 = scmp.ne.s32.totalorder %s206, %s207
      %p216 = scmp.eq.s32.totalorder %s34, 0
      %p217 = por %p215, %p216
      %p218 = scmp.ne.s32.totalorder %s206, %s207
      %p219 = scmp.eq.s32.totalorder %s35, 3
      %p220 = por %p218, %p219
      %p222 = scmp.ne.s32.totalorder %s207, %s221
      %p223 = scmp.eq.s32.totalorder %s35, 0
      %p224 = por %p222, %p223
      %s226 = sadd.s32 %s225, 1
      %p229 = scmp.eq.s32.totalorder %s29, 3
      %p230 = scmp.ne.s32.totalorder %s225, %s227
      %p231 = scmp.eq.s32.totalorder %s29, 0
      %p232 = por %p230, %p231
      %p233 = scmp.ne.s32.totalorder %s225, %s227
      %p234 = scmp.eq.s32.totalorder %s34, 3
      %p235 = por %p233, %p234
      %p236 = scmp.ne.s32.totalorder %s227, %s228
      %p237 = scmp.eq.s32.totalorder %s34, 0
      %p238 = por %p236, %p237
      %p239 = scmp.ne.s32.totalorder %s227, %s228
      %p240 = scmp.eq.s32.totalorder %s35, 3
      %p241 = por %p239, %p240
      %p243 = scmp.ne.s32.totalorder %s228, %s242
      %p244 = scmp.eq.s32.totalorder %s35, 0
      %p245 = por %p243, %p244
      %s247 = sadd.s32 %s246, 1
      %p250 = scmp.eq.s32.totalorder %s29, 3
      %p251 = scmp.ne.s32.totalorder %s246, %s248
      %p252 = scmp.eq.s32.totalorder %s29, 0
      %p253 = por %p251, %p252
      %p254 = scmp.ne.s32.totalorder %s246, %s248
      %p255 = scmp.eq.s32.totalorder %s34, 3
      %p256 = por %p254, %p255
      %p257 = scmp.ne.s32.totalorder %s248, %s249
      %p258 = scmp.eq.s32.totalorder %s34, 0
      %p259 = por %p257, %p258
      %p260 = scmp.ne.s32.totalorder %s248, %s249
      %p261 = scmp.eq.s32.totalorder %s35, 3
      %p262 = por %p260, %p261
      %p264 = scmp.ne.s32.totalorder %s249, %s263
      %p265 = scmp.eq.s32.totalorder %s35, 0
      %p266 = por %p264, %p265
      %s268 = sadd.s32 %s267, 1
      %p271 = scmp.eq.s32.totalorder %s29, 3
      %p272 = scmp.ne.s32.totalorder %s267, %s269
      %p273 = scmp.eq.s32.totalorder %s29, 0
      %p274 = por %p272, %p273
      %p275 = scmp.ne.s32.totalorder %s267, %s269
      %p276 = scmp.eq.s32.totalorder %s34, 3
      %p277 = por %p275, %p276
      %p278 = scmp.ne.s32.totalorder %s269, %s270
      %p279 = scmp.eq.s32.totalorder %s34, 0
      %p280 = por %p278, %p279
      %p281 = scmp.ne.s32.totalorder %s269, %s270
      %p282 = scmp.eq.s32.totalorder %s35, 3
      %p283 = por %p281, %p282
      %p285 = scmp.ne.s32.totalorder %s270, %s284
      %p286 = scmp.eq.s32.totalorder %s35, 0
      %p287 = por %p285, %p286
      %s289 = sadd.s32 %s288, 1
      %p292 = scmp.eq.s32.totalorder %s29, 3
      %p293 = scmp.ne.s32.totalorder %s288, %s290
      %p294 = scmp.eq.s32.totalorder %s29, 0
      %p295 = por %p293, %p294
      %p296 = scmp.ne.s32.totalorder %s288, %s290
      %p297 = scmp.eq.s32.totalorder %s34, 3
      %p298 = por %p296, %p297
      %p299 = scmp.ne.s32.totalorder %s290, %s291
      %p300 = scmp.eq.s32.totalorder %s34, 0
      %p301 = por %p299, %p300
      %p302 = scmp.ne.s32.totalorder %s290, %s291
      %p303 = scmp.eq.s32.totalorder %s35, 3
      %p304 = por %p302, %p303
      %p306 = scmp.ne.s32.totalorder %s291, %s305
      %p307 = scmp.eq.s32.totalorder %s35, 0
      %p308 = por %p306, %p307
      %s310 = sadd.s32 %s309, 1
      %p313 = scmp.eq.s32.totalorder %s29, 3
      %p314 = scmp.ne.s32.totalorder %s309, %s311
      %p315 = scmp.eq.s32.totalorder %s29, 0
      %p316 = por %p314, %p315
      %p317 = scmp.ne.s32.totalorder %s309, %s311
      %p318 = scmp.eq.s32.totalorder %s34, 3
      %p319 = por %p317, %p318
      %p320 = scmp.ne.s32.totalorder %s311, %s312
      %p321 = scmp.eq.s32.totalorder %s34, 0
      %p322 = por %p320, %p321
      %p323 = scmp.ne.s32.totalorder %s311, %s312
      %p324 = scmp.eq.s32.totalorder %s35, 3
      %p325 = por %p323, %p324
      %p327 = scmp.ne.s32.totalorder %s312, %s326
      %p328 = scmp.eq.s32.totalorder %s35, 0
      %p329 = por %p327, %p328
      %s331 = sadd.s32 %s330, 1
      %p334 = scmp.eq.s32.totalorder %s29, 3
      %p335 = scmp.ne.s32.totalorder %s330, %s332
      %p336 = scmp.eq.s32.totalorder %s29, 0
      %p337 = por %p335, %p336
      %p338 = scmp.ne.s32.totalorder %s330, %s332
      %p339 = scmp.eq.s32.totalorder %s34, 3
      %p340 = por %p338, %p339
      %p341 = scmp.ne.s32.totalorder %s332, %s333
      %p342 = scmp.eq.s32.totalorder %s34, 0
      %p343 = por %p341, %p342
      %p344 = scmp.ne.s32.totalorder %s332, %s333
      %p345 = scmp.eq.s32.totalorder %s35, 3
      %p346 = por %p344, %p345
      %p348 = scmp.ne.s32.totalorder %s333, %s347
      %p349 = scmp.eq.s32.totalorder %s35, 0
      %p350 = por %p348, %p349
      %s352 = sadd.s32 %s351, 1
      %p355 = scmp.eq.s32.totalorder %s29, 3
      %p356 = scmp.ne.s32.totalorder %s351, %s353
      %p357 = scmp.eq.s32.totalorder %s29, 0
      %p358 = por %p356, %p357
      %p359 = scmp.ne.s32.totalorder %s351, %s353
      %p360 = scmp.eq.s32.totalorder %s34, 3
      %p361 = por %p359, %p360
      %p362 = scmp.ne.s32.totalorder %s353, %s354
      %p363 = scmp.eq.s32.totalorder %s34, 0
      %p364 = por %p362, %p363
      %p365 = scmp.ne.s32.totalorder %s353, %s354
      %p366 = scmp.eq.s32.totalorder %s35, 3
      %p367 = por %p365, %p366
      %p369 = scmp.ne.s32.totalorder %s354, %s368
      %p370 = scmp.eq.s32.totalorder %s35, 0
      %p371 = por %p369, %p370
      %s373 = sadd.s32 %s372, 1
      %p376 = scmp.eq.s32.totalorder %s29, 3
      %p377 = scmp.ne.s32.totalorder %s372, %s374
      %p378 = scmp.eq.s32.totalorder %s29, 0
      %p379 = por %p377, %p378
      %p380 = scmp.ne.s32.totalorder %s372, %s374
      %p381 = scmp.eq.s32.totalorder %s34, 3
      %p382 = por %p380, %p381
      %p383 = scmp.ne.s32.totalorder %s374, %s375
      %p384 = scmp.eq.s32.totalorder %s34, 0
      %p385 = por %p383, %p384
      %p386 = scmp.ne.s32.totalorder %s374, %s375
      %p387 = scmp.eq.s32.totalorder %s35, 3
      %p388 = por %p386, %p387
      %p390 = scmp.ne.s32.totalorder %s375, %s389
      %p391 = scmp.eq.s32.totalorder %s35, 0
      %p392 = por %p390, %p391
      %s394 = sadd.s32 %s393, 1
      %p397 = scmp.eq.s32.totalorder %s29, 3
      %p398 = scmp.ne.s32.totalorder %s393, %s395
      %p399 = scmp.eq.s32.totalorder %s29, 0
      %p400 = por %p398, %p399
      %p401 = scmp.ne.s32.totalorder %s393, %s395
      %p402 = scmp.eq.s32.totalorder %s34, 3
      %p403 = por %p401, %p402
      %p404 = scmp.ne.s32.totalorder %s395, %s396
      %p405 = scmp.eq.s32.totalorder %s34, 0
      %p406 = por %p404, %p405
      %p407 = scmp.ne.s32.totalorder %s395, %s396
      %p408 = scmp.eq.s32.totalorder %s35, 3
      %p409 = por %p407, %p408
      %p411 = scmp.ne.s32.totalorder %s396, %s410
      %p412 = scmp.eq.s32.totalorder %s35, 0
      %p413 = por %p411, %p412
      %s415 = sadd.s32 %s414, 1
      %p418 = scmp.eq.s32.totalorder %s29, 3
      %p419 = scmp.ne.s32.totalorder %s414, %s416
      %p420 = scmp.eq.s32.totalorder %s29, 0
      %p421 = por %p419, %p420
      %p422 = scmp.ne.s32.totalorder %s414, %s416
      %p423 = scmp.eq.s32.totalorder %s34, 3
      %p424 = por %p422, %p423
      %p425 = scmp.ne.s32.totalorder %s416, %s417
      %p426 = scmp.eq.s32.totalorder %s34, 0
      %p427 = por %p425, %p426
      %p428 = scmp.ne.s32.totalorder %s416, %s417
      %p429 = scmp.eq.s32.totalorder %s35, 3
      %p430 = por %p428, %p429
      %p432 = scmp.ne.s32.totalorder %s417, %s431
      %p433 = scmp.eq.s32.totalorder %s35, 0
      %p434 = por %p432, %p433
      %s436 = sadd.s32 %s435, 1
      %p439 = scmp.eq.s32.totalorder %s29, 3
      %p440 = scmp.ne.s32.totalorder %s435, %s437
      %p441 = scmp.eq.s32.totalorder %s29, 0
      %p442 = por %p440, %p441
      %p443 = scmp.ne.s32.totalorder %s435, %s437
      %p444 = scmp.eq.s32.totalorder %s34, 3
      %p445 = por %p443, %p444
      %p446 = scmp.ne.s32.totalorder %s437, %s438
      %p447 = scmp.eq.s32.totalorder %s34, 0
      %p448 = por %p446, %p447
      %p449 = scmp.ne.s32.totalorder %s437, %s438
      %p450 = scmp.eq.s32.totalorder %s35, 3
      %p451 = por %p449, %p450
      %p453 = scmp.ne.s32.totalorder %s438, %s452
      %p454 = scmp.eq.s32.totalorder %s35, 0
      %p455 = por %p453, %p454
      %s457 = sadd.s32 %s456, 1
      %p460 = scmp.eq.s32.totalorder %s29, 3
      %p461 = scmp.ne.s32.totalorder %s456, %s458
      %p462 = scmp.eq.s32.totalorder %s29, 0
      %p463 = por %p461, %p462
      %p464 = scmp.ne.s32.totalorder %s456, %s458
      %p465 = scmp.eq.s32.totalorder %s34, 3
      %p466 = por %p464, %p465
      %p467 = scmp.ne.s32.totalorder %s458, %s459
      %p468 = scmp.eq.s32.totalorder %s34, 0
      %p469 = por %p467, %p468
      %p470 = scmp.ne.s32.totalorder %s458, %s459
      %p471 = scmp.eq.s32.totalorder %s35, 3
      %p472 = por %p470, %p471
      %p474 = scmp.ne.s32.totalorder %s459, %s473
      %p475 = scmp.eq.s32.totalorder %s35, 0
      %p476 = por %p474, %p475
      %s478 = sadd.s32 %s477, 1
      %p481 = scmp.eq.s32.totalorder %s29, 3
      %p482 = scmp.ne.s32.totalorder %s477, %s479
      %p483 = scmp.eq.s32.totalorder %s29, 0
      %p484 = por %p482, %p483
      %p485 = scmp.ne.s32.totalorder %s477, %s479
      %p486 = scmp.eq.s32.totalorder %s34, 3
      %p487 = por %p485, %p486
      %p488 = scmp.ne.s32.totalorder %s479, %s480
      %p489 = scmp.eq.s32.totalorder %s34, 0
      %p490 = por %p488, %p489
      %p491 = scmp.ne.s32.totalorder %s479, %s480
      %p492 = scmp.eq.s32.totalorder %s35, 3
      %p493 = por %p491, %p492
      %p495 = scmp.ne.s32.totalorder %s480, %s494
      %p496 = scmp.eq.s32.totalorder %s35, 0
      %p497 = por %p495, %p496
      %s499 = sadd.s32 %s498, 1
      %p502 = scmp.eq.s32.totalorder %s29, 3
      %p503 = scmp.ne.s32.totalorder %s498, %s500
      %p504 = scmp.eq.s32.totalorder %s29, 0
      %p505 = por %p503, %p504
      %p506 = scmp.ne.s32.totalorder %s498, %s500
      %p507 = scmp.eq.s32.totalorder %s34, 3
      %p508 = por %p506, %p507
      %p509 = scmp.ne.s32.totalorder %s500, %s501
      %p510 = scmp.eq.s32.totalorder %s34, 0
      %p511 = por %p509, %p510
      %p512 = scmp.ne.s32.totalorder %s500, %s501
      %p513 = scmp.eq.s32.totalorder %s35, 3
      %p514 = por %p512, %p513
      %p516 = scmp.ne.s32.totalorder %s501, %s515
      %p517 = scmp.eq.s32.totalorder %s35, 0
      %p518 = por %p516, %p517
      %s519 = ssub.s32 %s36, %s48
      %s520 = ssub.s32 %s37, %s44
      %s521 = sor.u32 %s519, %s520
      %p522 = scmp.eq.s32.totalorder %s521, 0
      %s524 = sadd.s32 %s523, 1
      %s525 = scalar_select %p522, %s523, %s524
      %p528 = pneg %p522
      %p529 = scmp.eq.s32.totalorder %s29, 3
      %p530 = por %p528, %p529
      %p531 = scmp.ne.s32.totalorder %s523, %s526
      %p532 = scmp.eq.s32.totalorder %s29, 0
      %p533 = por %p531, %p532
      %p534 = scmp.ne.s32.totalorder %s523, %s526
      %p535 = scmp.eq.s32.totalorder %s34, 3
      %p536 = por %p534, %p535
      %p537 = scmp.ne.s32.totalorder %s526, %s527
      %p538 = scmp.eq.s32.totalorder %s34, 0
      %p539 = por %p537, %p538
      %p540 = scmp.ne.s32.totalorder %s526, %s527
      %p541 = scmp.eq.s32.totalorder %s35, 3
      %p542 = por %p540, %p541
      %p544 = scmp.ne.s32.totalorder %s527, %s543
      %p545 = scmp.eq.s32.totalorder %s35, 0
      %p546 = por %p544, %p545
      %p547 = scmp.le.s32.totalorder 1, %s29
      %p548 = scmp.lt.s32.totalorder %s29, 5
      %p549 = pnand %p547, %p548
      %p550 = pneg %p549
      // Predicated region
      $region9: #{encoder_layer_forward.1} parent=5 // pred_check
        _
      $region10: #{encoder_layer_forward.1} parent=5 // pred_check_branch
        %552 = sbr.rel (%p549) target = $region12
      $region11: #{encoder_layer_forward.1} parent=5 // pred_region
        %s553 = ssub.s32 %s29, 1
        // Predicated region
        $region13: #{encoder_layer_forward.1} parent=11 // pred_check
          %p554 = pneg %p196
        $region14: #{encoder_layer_forward.1} parent=11 // pred_check_branch
          %556 = sbr.rel (%p554) target = $region16
        $region15: #{encoder_layer_forward.1} parent=11 // pred_region
          _
        $region16: #{encoder_layer_forward.1} parent=11 // pred_fallthru
          _
        // Predicated region
        $region17: #{encoder_layer_forward.1} parent=11 // pred_check
          %p557 = pneg %p217
        $region18: #{encoder_layer_forward.1} parent=11 // pred_check_branch
          %559 = sbr.rel (%p557) target = $region20
        $region19: #{encoder_layer_forward.1} parent=11 // pred_region
          _
        $region20: #{encoder_layer_forward.1} parent=11 // pred_fallthru
          _
        // Predicated region
        $region21: #{encoder_layer_forward.1} parent=11 // pred_check
          %p560 = pneg %p238
        $region22: #{encoder_layer_forward.1} parent=11 // pred_check_branch
          %562 = sbr.rel (%p560) target = $region24
        $region23: #{encoder_layer_forward.1} parent=11 // pred_region
          _
        $region24: #{encoder_layer_forward.1} parent=11 // pred_fallthru
          _
        // Predicated region
        $region25: #{encoder_layer_forward.1} parent=11 // pred_check
          %p563 = pneg %p259
        $region26: #{encoder_layer_forward.1} parent=11 // pred_check_branch
          %565 = sbr.rel (%p563) target = $region28
        $region27: #{encoder_layer_forward.1} parent=11 // pred_region
          _
        $region28: #{encoder_layer_forward.1} parent=11 // pred_fallthru
          _
        // Predicated region
        $region29: #{encoder_layer_forward.1} parent=11 // pred_check
          %p566 = pneg %p280
        $region30: #{encoder_layer_forward.1} parent=11 // pred_check_branch
          %568 = sbr.rel (%p566) target = $region32
        $region31: #{encoder_layer_forward.1} parent=11 // pred_region
          _
        $region32: #{encoder_layer_forward.1} parent=11 // pred_fallthru
          _
        // Predicated region
        $region33: #{encoder_layer_forward.1} parent=11 // pred_check
          %p569 = pneg %p301
        $region34: #{encoder_layer_forward.1} parent=11 // pred_check_branch
          %571 = sbr.rel (%p569) target = $region36
        $region35: #{encoder_layer_forward.1} parent=11 // pred_region
          _
        $region36: #{encoder_layer_forward.1} parent=11 // pred_fallthru
          _
        // Predicated region
        $region37: #{encoder_layer_forward.1} parent=11 // pred_check
          %p572 = pneg %p322
        $region38: #{encoder_layer_forward.1} parent=11 // pred_check_branch
          %574 = sbr.rel (%p572) target = $region40
        $region39: #{encoder_layer_forward.1} parent=11 // pred_region
          _
        $region40: #{encoder_layer_forward.1} parent=11 // pred_fallthru
          _
        // Predicated region
        $region41: #{encoder_layer_forward.1} parent=11 // pred_check
          %p575 = pneg %p343
        $region42: #{encoder_layer_forward.1} parent=11 // pred_check_branch
          %577 = sbr.rel (%p575) target = $region44
        $region43: #{encoder_layer_forward.1} parent=11 // pred_region
          _
        $region44: #{encoder_layer_forward.1} parent=11 // pred_fallthru
          _
        // Predicated region
        $region45: #{encoder_layer_forward.1} parent=11 // pred_check
          %p578 = pneg %p364
        $region46: #{encoder_layer_forward.1} parent=11 // pred_check_branch
          %580 = sbr.rel (%p578) target = $region48
        $region47: #{encoder_layer_forward.1} parent=11 // pred_region
          _
        $region48: #{encoder_layer_forward.1} parent=11 // pred_fallthru
          _
        // Predicated region
        $region49: #{encoder_layer_forward.1} parent=11 // pred_check
          %p581 = pneg %p385
        $region50: #{encoder_layer_forward.1} parent=11 // pred_check_branch
          %583 = sbr.rel (%p581) target = $region52
        $region51: #{encoder_layer_forward.1} parent=11 // pred_region
          %s585 = ssub.s32 16, 16
          %586 = vsyncadd [#allocation4], %s585
          %s588 = sshll.u32 [#allocation3], 4
          %s589 = int_to_ptr.vmem [resolvable:$true] %s588
          %591 = dma.hbm_to_vmem [thread:$0]  %s14, 16, %s589, [#allocation4]
        $region52: #{encoder_layer_forward.1} parent=11 // pred_fallthru
          _
        // Predicated region
        $region53: #{encoder_layer_forward.1} parent=11 // pred_check
          %p592 = pneg %p406
        $region54: #{encoder_layer_forward.1} parent=11 // pred_check_branch
          %594 = sbr.rel (%p592) target = $region56
        $region55: #{encoder_layer_forward.1} parent=11 // pred_region
          _
        $region56: #{encoder_layer_forward.1} parent=11 // pred_fallthru
          _
        // Predicated region
        $region57: #{encoder_layer_forward.1} parent=11 // pred_check
          %p595 = pneg %p427
        $region58: #{encoder_layer_forward.1} parent=11 // pred_check_branch
          %597 = sbr.rel (%p595) target = $region60
        $region59: #{encoder_layer_forward.1} parent=11 // pred_region
          _
        $region60: #{encoder_layer_forward.1} parent=11 // pred_fallthru
          _
        // Predicated region
        $region61: #{encoder_layer_forward.1} parent=11 // pred_check
          %p598 = pneg %p448
        $region62: #{encoder_layer_forward.1} parent=11 // pred_check_branch
          %600 = sbr.rel (%p598) target = $region64
        $region63: #{encoder_layer_forward.1} parent=11 // pred_region
          _
        $region64: #{encoder_layer_forward.1} parent=11 // pred_fallthru
          _
        // Predicated region
        $region65: #{encoder_layer_forward.1} parent=11 // pred_check
          %p601 = pneg %p469
        $region66: #{encoder_layer_forward.1} parent=11 // pred_check_branch
          %603 = sbr.rel (%p601) target = $region68
        $region67: #{encoder_layer_forward.1} parent=11 // pred_region
          %s605 = ssub.s32 16, 16
          %606 = vsyncadd [#allocation6], %s605
          %s608 = sshll.u32 [#allocation5], 4
          %s609 = int_to_ptr.vmem [resolvable:$true] %s608
          %611 = dma.hbm_to_vmem [thread:$0]  %s18, 16, %s609, [#allocation6]
        $region68: #{encoder_layer_forward.1} parent=11 // pred_fallthru
          _
        // Predicated region
        $region69: #{encoder_layer_forward.1} parent=11 // pred_check
          %p612 = pneg %p490
        $region70: #{encoder_layer_forward.1} parent=11 // pred_check_branch
          %614 = sbr.rel (%p612) target = $region72
        $region71: #{encoder_layer_forward.1} parent=11 // pred_region
          _
        $region72: #{encoder_layer_forward.1} parent=11 // pred_fallthru
          _
        // Predicated region
        $region73: #{encoder_layer_forward.1} parent=11 // pred_check
          %p615 = pneg %p511
        $region74: #{encoder_layer_forward.1} parent=11 // pred_check_branch
          %617 = sbr.rel (%p615) target = $region76
        $region75: #{encoder_layer_forward.1} parent=11 // pred_region
          %s619 = ssub.s32 16, 16
          %620 = vsyncadd [#allocation6], %s619
          %s622 = sshll.u32 [#allocation7], 4
          %s623 = int_to_ptr.vmem [resolvable:$true] %s622
          %625 = dma.hbm_to_vmem [thread:$0]  %s20, 16, %s623, [#allocation6]
        $region76: #{encoder_layer_forward.1} parent=11 // pred_fallthru
          _
      $region12: #{encoder_layer_forward.1} parent=5 // pred_fallthru
        _
      %p626 = scmp.lt.s32.totalorder %s29, 4
      // Predicated region
      $region77: #{encoder_layer_forward.1} parent=5 // pred_check
        %p627 = pneg %p626
      $region78: #{encoder_layer_forward.1} parent=5 // pred_check_branch
        %629 = sbr.rel (%p627) target = $region80
      $region79: #{encoder_layer_forward.1} parent=5 // pred_region
        // Predicated region
        $region81: #{encoder_layer_forward.1} parent=79 // pred_check
          %p630 = pneg %p63
        $region82: #{encoder_layer_forward.1} parent=79 // pred_check_branch
          %632 = sbr.rel (%p630) target = $region84
        $region83: #{encoder_layer_forward.1} parent=79 // pred_region
          %s633 = smul.u32 8, %s37
          %p634 = scmp.lt.s32.totalorder %s36, 1
          %s635 = scalar_select %p634, %s36, 1
          %p636 = scmp.lt.s32.totalorder %s633, 15
          %s637 = scalar_select %p636, %s633, 15
          %s638 = smul.addr %s635, 16
          %s639 = sadd.s32 %s637, %s638
          %s640 = smul.addr %s639, 8
          %s641 = scalar_lea.vmem %s0, %s640
          %s642 = smul.u32 8, %s37
        $region84: #{encoder_layer_forward.1} parent=79 // pred_fallthru
          _
        // Predicated region
        $region85: #{encoder_layer_forward.1} parent=79 // pred_check
          %p643 = pneg %p89
        $region86: #{encoder_layer_forward.1} parent=79 // pred_check_branch
          %645 = sbr.rel (%p643) target = $region88
        $region87: #{encoder_layer_forward.1} parent=79 // pred_region
          %p646 = scmp.lt.s32.totalorder %s36, 1
          %s647 = scalar_select %p646, %s36, 1
          %s648 = smul.addr %s647, 16
          %s649 = smul.addr %s648, 8
          %s650 = scalar_lea.vmem %s1, %s649
        $region88: #{encoder_layer_forward.1} parent=79 // pred_fallthru
          _
        // Predicated region
        $region89: #{encoder_layer_forward.1} parent=79 // pred_check
          %p651 = pneg %p117
        $region90: #{encoder_layer_forward.1} parent=79 // pred_check_branch
          %653 = sbr.rel (%p651) target = $region92
        $region91: #{encoder_layer_forward.1} parent=79 // pred_region
          %s654 = smul.u32 8, %s37
          %p655 = scmp.lt.s32.totalorder %s36, 1
          %s656 = scalar_select %p655, %s36, 1
          %p657 = scmp.lt.s32.totalorder %s654, 15
          %s658 = scalar_select %p657, %s654, 15
          %s659 = smul.addr %s656, 16
          %s660 = sadd.s32 %s658, %s659
          %s661 = smul.addr %s660, 8
          %s662 = scalar_lea.vmem %s2, %s661
          %s663 = smul.u32 8, %s37
        $region92: #{encoder_layer_forward.1} parent=79 // pred_fallthru
          _
        // Predicated region
        $region93: #{encoder_layer_forward.1} parent=79 // pred_check
          %p664 = pneg %p143
        $region94: #{encoder_layer_forward.1} parent=79 // pred_check_branch
          %666 = sbr.rel (%p664) target = $region96
        $region95: #{encoder_layer_forward.1} parent=79 // pred_region
          %p667 = scmp.lt.s32.totalorder %s36, 1
          %s668 = scalar_select %p667, %s36, 1
          %s669 = smul.addr %s668, 16
          %s670 = smul.addr %s669, 8
          %s671 = scalar_lea.vmem %s3, %s670
        $region96: #{encoder_layer_forward.1} parent=79 // pred_fallthru
          _
        // Predicated region
        $region97: #{encoder_layer_forward.1} parent=79 // pred_check
          %p672 = pneg %p169
        $region98: #{encoder_layer_forward.1} parent=79 // pred_check_branch
          %674 = sbr.rel (%p672) target = $region100
        $region99: #{encoder_layer_forward.1} parent=79 // pred_region
          %p675 = scmp.lt.s32.totalorder %s36, 1
          %s676 = scalar_select %p675, %s36, 1
          %s677 = scalar_lea.vmem %s4, %s676
        $region100: #{encoder_layer_forward.1} parent=79 // pred_fallthru
          _
      $region80: #{encoder_layer_forward.1} parent=5 // pred_fallthru
        _
      %p678 = scmp.le.s32.totalorder 1, %s29
      %p679 = scmp.lt.s32.totalorder %s29, 5
      %p680 = pnand %p678, %p679
      %p681 = pneg %p680
      // Predicated region
      $region101: #{encoder_layer_forward.1} parent=5 // pred_check
        _
      $region102: #{encoder_layer_forward.1} parent=5 // pred_check_branch
        %683 = sbr.rel (%p680) target = $region104
      $region103: #{encoder_layer_forward.1} parent=5 // pred_region
        %s684 = ssub.s32 %s29, 1
        // Predicated region
        $region105: #{encoder_layer_forward.1} parent=103 // pred_check
          %p685 = pneg %p385
        $region106: #{encoder_layer_forward.1} parent=103 // pred_check_branch
          %687 = sbr.rel (%p685) target = $region108
        $region107: #{encoder_layer_forward.1} parent=103 // pred_region
          %688 = dma.done [#allocation4], 16
        $region108: #{encoder_layer_forward.1} parent=103 // pred_fallthru
          _
        // Predicated region
        $region109: #{encoder_layer_forward.1} parent=103 // pred_check
          %p689 = pneg %p469
        $region110: #{encoder_layer_forward.1} parent=103 // pred_check_branch
          %691 = sbr.rel (%p689) target = $region112
        $region111: #{encoder_layer_forward.1} parent=103 // pred_region
          %692 = dma.done [#allocation6], 16
        $region112: #{encoder_layer_forward.1} parent=103 // pred_fallthru
          _
        // Predicated region
        $region113: #{encoder_layer_forward.1} parent=103 // pred_check
          %p693 = pneg %p511
        $region114: #{encoder_layer_forward.1} parent=103 // pred_check_branch
          %695 = sbr.rel (%p693) target = $region116
        $region115: #{encoder_layer_forward.1} parent=103 // pred_region
          %696 = dma.done [#allocation6], 16
        $region116: #{encoder_layer_forward.1} parent=103 // pred_fallthru
          _
        %s697 = smul.u32 8, %s39
        %p698 = scmp.lt.s32.totalorder %s38, 1
        %s699 = scalar_select %p698, %s38, 1
        %p700 = scmp.lt.s32.totalorder %s697, 15
        %s701 = scalar_select %p700, %s697, 15
        %s702 = smul.addr %s699, 16
        %s703 = sadd.s32 %s701, %s702
        %s704 = smul.addr %s703, 8
        %s705 = scalar_lea.vmem %s0, %s704
        %p706 = pneg %p69
        %p707 = pneg %p66
        %p708 = scmp.lt.s32.totalorder %s38, 1
        %s709 = scalar_select %p708, %s38, 1
        %s710 = smul.addr %s709, 16
        %s711 = smul.addr %s710, 8
        %s712 = scalar_lea.vmem %s1, %s711
        %p713 = pneg %p95
        %p714 = pneg %p92
        %s715 = smul.u32 8, %s39
        %p716 = scmp.lt.s32.totalorder %s38, 1
        %s717 = scalar_select %p716, %s38, 1
        %p718 = scmp.lt.s32.totalorder %s715, 15
        %s719 = scalar_select %p718, %s715, 15
        %s720 = smul.addr %s717, 16
        %s721 = sadd.s32 %s719, %s720
        %s722 = smul.addr %s721, 8
        %s723 = scalar_lea.vmem %s2, %s722
        %p724 = pneg %p123
        %p725 = pneg %p120
        %p726 = scmp.lt.s32.totalorder %s38, 1
        %s727 = scalar_select %p726, %s38, 1
        %s728 = smul.addr %s727, 16
        %s729 = smul.addr %s728, 8
        %s730 = scalar_lea.vmem %s3, %s729
        %p731 = pneg %p149
        %p732 = pneg %p146
        %p733 = scmp.lt.s32.totalorder %s38, 1
        %s734 = scalar_select %p733, %s38, 1
        %s735 = scalar_lea.vmem %s4, %s734
        %p736 = pneg %p175
        %p737 = pneg %p172
        %p738 = pneg %p196
        %p739 = pneg %p193
        %p740 = pneg %p217
        %p741 = pneg %p214
        %p742 = pneg %p238
        %p743 = pneg %p235
        %p744 = pneg %p259
        %p745 = pneg %p256
        %p746 = pneg %p280
        %p747 = pneg %p277
        %p748 = pneg %p301
        %p749 = pneg %p298
        %p750 = pneg %p322
        %p751 = pneg %p319
        %p752 = pneg %p343
        %p753 = pneg %p340
        %p754 = pneg %p364
        %p755 = pneg %p361
        %p756 = pneg %p385
        %p757 = pneg %p382
        %p758 = pneg %p406
        %p759 = pneg %p403
        %p760 = pneg %p427
        %p761 = pneg %p424
        %p762 = pneg %p448
        %p763 = pneg %p445
        %p764 = pneg %p469
        %p765 = pneg %p466
        %p766 = pneg %p490
        %p767 = pneg %p487
        %p768 = pneg %p511
        %p769 = pneg %p508
        %p770 = pneg %p539
        %p771 = pneg %p536
        %s772 = smul.u32 8, %s39
        %p773 = scmp.lt.s32.totalorder %s38, 1
        %s774 = scalar_select %p773, %s38, 1
        %p775 = scmp.lt.s32.totalorder %s772, 15
        %s776 = scalar_select %p775, %s772, 15
        %s777 = smul.addr %s774, 16
        %s778 = sadd.s32 %s776, %s777
        %s779 = smul.addr %s778, 8
        %s780 = scalar_lea.vmem %s21, %s779
        %s781 = smul.u32 8, %s39
        %p782 = scmp.lt.s32.totalorder %s38, 1
        %s783 = scalar_select %p782, %s38, 1
        %p784 = scmp.lt.s32.totalorder %s781, 15
        %s785 = scalar_select %p784, %s781, 15
        %s786 = smul.addr %s783, 16
        %s787 = sadd.s32 %s785, %s786
        %s788 = smul.addr %s787, 8
        %s789 = scalar_lea.vmem %s0, %s788
        %s790 = smul.u32 8, %s39
        %p791 = scmp.lt.s32.totalorder %s38, 1
        %s792 = scalar_select %p791, %s38, 1
        %s793 = smul.addr %s792, 16
        %s794 = smul.addr %s793, 8
        %s795 = scalar_lea.vmem %s1, %s794
        %s796 = smul.u32 8, %s39
        %p797 = scmp.lt.s32.totalorder %s38, 1
        %s798 = scalar_select %p797, %s38, 1
        %p799 = scmp.lt.s32.totalorder %s796, 15
        %s800 = scalar_select %p799, %s796, 15
        %s801 = smul.addr %s798, 16
        %s802 = sadd.s32 %s800, %s801
        %s803 = smul.addr %s802, 8
        %s804 = scalar_lea.vmem %s2, %s803
        %s805 = smul.u32 8, %s39
        %p806 = scmp.lt.s32.totalorder %s38, 1
        %s807 = scalar_select %p806, %s38, 1
        %s808 = smul.addr %s807, 16
        %s809 = smul.addr %s808, 8
        %s810 = scalar_lea.vmem %s3, %s809
        %p811 = scmp.lt.s32.totalorder %s38, 1
        %s812 = scalar_select %p811, %s38, 1
        %s813 = scalar_lea.vmem %s4, %s812
        %s814 = smul.u32 8, %s39
        %p815 = scmp.lt.s32.totalorder %s38, 1
        %s816 = scalar_select %p815, %s38, 1
        %p817 = scmp.lt.s32.totalorder %s814, 15
        %s818 = scalar_select %p817, %s814, 15
        %s819 = smul.addr %s816, 16
        %s820 = sadd.s32 %s818, %s819
        %s821 = smul.addr %s820, 8
        %s822 = scalar_lea.vmem %s21, %s821
        %s823 = smul.u32 8, %s39
        %v824 = vld [vmem:[%s789] sm:$0xff]
        %v825 = vld [vmem:[%s789 + $0x8] sm:$0xff]
        %v826 = vld [vmem:[%s789 + $0x10] sm:$0xff]
        %v827 = vld [vmem:[%s789 + $0x18] sm:$0xff]
        %v828 = vld [vmem:[%s789 + $0x20] sm:$0xff]
        %v829 = vld [vmem:[%s789 + $0x28] sm:$0xff]
        %v830 = vld [vmem:[%s789 + $0x30] sm:$0xff]
        %v831 = vld [vmem:[%s789 + $0x38] sm:$0xff]
        %v832 = vld [vmem:[%s795] sm:$0xff]
        %v833 = vld [vmem:[%s795 + $0x8] sm:$0xff]
        %v834 = vld [vmem:[%s795 + $0x10] sm:$0xff]
        %v835 = vld [vmem:[%s795 + $0x18] sm:$0xff]
        %v836 = vld [vmem:[%s795 + $0x20] sm:$0xff]
        %v837 = vld [vmem:[%s795 + $0x28] sm:$0xff]
        %v838 = vld [vmem:[%s795 + $0x30] sm:$0xff]
        %v839 = vld [vmem:[%s795 + $0x38] sm:$0xff]
        %v840 = vld [vmem:[%s795 + $0x40] sm:$0xff]
        %v841 = vld [vmem:[%s795 + $0x48] sm:$0xff]
        %v842 = vld [vmem:[%s795 + $0x50] sm:$0xff]
        %v843 = vld [vmem:[%s795 + $0x58] sm:$0xff]
        %v844 = vld [vmem:[%s795 + $0x60] sm:$0xff]
        %v845 = vld [vmem:[%s795 + $0x68] sm:$0xff]
        %v846 = vld [vmem:[%s795 + $0x70] sm:$0xff]
        %v847 = vld [vmem:[%s795 + $0x78] sm:$0xff]
        %v848 = vld [vmem:[%s804] sm:$0xff]
        %v849 = vld [vmem:[%s804 + $0x8] sm:$0xff]
        %v850 = vld [vmem:[%s804 + $0x10] sm:$0xff]
        %v851 = vld [vmem:[%s804 + $0x18] sm:$0xff]
        %v852 = vld [vmem:[%s804 + $0x20] sm:$0xff]
        %v853 = vld [vmem:[%s804 + $0x28] sm:$0xff]
        %v854 = vld [vmem:[%s804 + $0x30] sm:$0xff]
        %v855 = vld [vmem:[%s804 + $0x38] sm:$0xff]
        %v856 = vadd.f32 %v824, %v848
        %v857 = vadd.f32 %v825, %v849
        %v858 = vadd.f32 %v826, %v850
        %v859 = vadd.f32 %v827, %v851
        %v860 = vadd.f32 %v828, %v852
        %v861 = vadd.f32 %v829, %v853
        %v862 = vadd.f32 %v830, %v854
        %v863 = vadd.f32 %v831, %v855
        %v864 = vld [vmem:[%s810] sm:$0xff]
        %v865 = vld [vmem:[%s810 + $0x8] sm:$0xff]
        %v866 = vld [vmem:[%s810 + $0x10] sm:$0xff]
        %v867 = vld [vmem:[%s810 + $0x18] sm:$0xff]
        %v868 = vld [vmem:[%s810 + $0x20] sm:$0xff]
        %v869 = vld [vmem:[%s810 + $0x28] sm:$0xff]
        %v870 = vld [vmem:[%s810 + $0x30] sm:$0xff]
        %v871 = vld [vmem:[%s810 + $0x38] sm:$0xff]
        %v872 = vld [vmem:[%s810 + $0x40] sm:$0xff]
        %v873 = vld [vmem:[%s810 + $0x48] sm:$0xff]
        %v874 = vld [vmem:[%s810 + $0x50] sm:$0xff]
        %v875 = vld [vmem:[%s810 + $0x58] sm:$0xff]
        %v876 = vld [vmem:[%s810 + $0x60] sm:$0xff]
        %v877 = vld [vmem:[%s810 + $0x68] sm:$0xff]
        %v878 = vld [vmem:[%s810 + $0x70] sm:$0xff]
        %v879 = vld [vmem:[%s810 + $0x78] sm:$0xff]
        %v880 = vadd.f32 %v832, %v864
        %v881 = vadd.f32 %v833, %v865
        %v882 = vadd.f32 %v834, %v866
        %v883 = vadd.f32 %v835, %v867
        %v884 = vadd.f32 %v836, %v868
        %v885 = vadd.f32 %v837, %v869
        %v886 = vadd.f32 %v838, %v870
        %v887 = vadd.f32 %v839, %v871
        %v888 = vadd.f32 %v840, %v872
        %v889 = vadd.f32 %v841, %v873
        %v890 = vadd.f32 %v842, %v874
        %v891 = vadd.f32 %v843, %v875
        %v892 = vadd.f32 %v844, %v876
        %v893 = vadd.f32 %v845, %v877
        %v894 = vadd.f32 %v846, %v878
        %v895 = vadd.f32 %v847, %v879
        %v896 = vld [vmem:[%s5] sm:$0xff]
        %v897 = vld [vmem:[%s5 + $0x8] sm:$0xff]
        %v898 = vld [vmem:[%s5 + $0x10] sm:$0xff]
        %v899 = vld [vmem:[%s5 + $0x18] sm:$0xff]
        %v900 = vld [vmem:[%s5 + $0x20] sm:$0xff]
        %v901 = vld [vmem:[%s5 + $0x28] sm:$0xff]
        %v902 = vld [vmem:[%s5 + $0x30] sm:$0xff]
        %v903 = vld [vmem:[%s5 + $0x38] sm:$0xff]
        %v904 = vld [vmem:[%s5 + $0x40] sm:$0xff]
        %v905 = vld [vmem:[%s5 + $0x48] sm:$0xff]
        %v906 = vld [vmem:[%s5 + $0x50] sm:$0xff]
        %v907 = vld [vmem:[%s5 + $0x58] sm:$0xff]
        %v908 = vld [vmem:[%s5 + $0x60] sm:$0xff]
        %v909 = vld [vmem:[%s5 + $0x68] sm:$0xff]
        %v910 = vld [vmem:[%s5 + $0x70] sm:$0xff]
        %v911 = vld [vmem:[%s5 + $0x78] sm:$0xff]
        %v912 = vld [vmem:[%s6] sm:$0x1]
        %v914 = vlaneseq
        %v915 = vshrl.u32 %v914, 7
        %v916 = vsub.s32 0, %v915
        %v917 = vrot.slane %v912, %v916
        %919 = vmatprep.subr.mxu0 0.0
        %920 = vmatpush1.msra.mxu0 %v911
        %921 = vmatprep.subr.mxu0 0.0
        %922 = vmatpush1.msra.mxu0 %v910
        %923 = vmatprep.subr.mxu0 0.0
        %924 = vmatpush1.msra.mxu0 %v909
        %925 = vmatprep.subr.mxu0 0.0
        %926 = vmatpush1.msra.mxu0 %v908
        %927 = vmatprep.subr.mxu0 0.0
        %928 = vmatpush1.msra.mxu0 %v907
        %929 = vmatprep.subr.mxu0 0.0
        %930 = vmatpush1.msra.mxu0 %v906
        %931 = vmatprep.subr.mxu0 0.0
        %932 = vmatpush1.msra.mxu0 %v905
        %933 = vmatprep.subr.mxu0 0.0
        %934 = vmatpush1.msra.mxu0 %v904
        %935 = vmatprep.subr.mxu0 0.0
        %936 = vmatpush1.msra.mxu0 %v903
        %937 = vmatprep.subr.mxu0 0.0
        %938 = vmatpush1.msra.mxu0 %v902
        %939 = vmatprep.subr.mxu0 0.0
        %940 = vmatpush1.msra.mxu0 %v901
        %941 = vmatprep.subr.mxu0 0.0
        %942 = vmatpush1.msra.mxu0 %v900
        %943 = vmatprep.subr.mxu0 0.0
        %944 = vmatpush1.msra.mxu0 %v899
        %945 = vmatprep.subr.mxu0 0.0
        %946 = vmatpush1.msra.mxu0 %v898
        %947 = vmatprep.subr.mxu0 0.0
        %948 = vmatpush1.msra.mxu0 %v897
        %949 = vmatprep.subr.mxu0 0.0
        %950 = vmatpush1.msra.mxu0 %v896
        %951 = vmatprep.subr.mxu0 0.0
        %952 = vmatpush2.msra.mxu0 0.0
        %953 = vmatprep.subr.mxu0 0.0
        %954 = vmatpush2.msra.mxu0 0.0
        %955 = vmatprep.subr.mxu0 0.0
        %956 = vmatpush2.msra.mxu0 0.0
        %957 = vmatprep.subr.mxu0 0.0
        %958 = vmatpush2.msra.mxu0 0.0
        %959 = vmatprep.subr.mxu0 0.0
        %960 = vmatpush2.msra.mxu0 0.0
        %961 = vmatprep.subr.mxu0 0.0
        %962 = vmatpush2.msra.mxu0 0.0
        %963 = vmatprep.subr.mxu0 0.0
        %964 = vmatpush2.msra.mxu0 0.0
        %965 = vmatprep.subr.mxu0 0.0
        %966 = vmatpush2.msra.mxu0 0.0
        %967 = vmatprep.subr.mxu0 0.0
        %968 = vmatpush2.msra.mxu0 0.0
        %969 = vmatprep.subr.mxu0 0.0
        %970 = vmatpush2.msra.mxu0 0.0
        %971 = vmatprep.subr.mxu0 0.0
        %972 = vmatpush2.msra.mxu0 0.0
        %973 = vmatprep.subr.mxu0 0.0
        %974 = vmatpush2.msra.mxu0 0.0
        %975 = vmatprep.subr.mxu0 0.0
        %976 = vmatpush2.msra.mxu0 0.0
        %977 = vmatprep.subr.mxu0 0.0
        %978 = vmatpush2.msra.mxu0 0.0
        %979 = vmatprep.subr.mxu0 0.0
        %980 = vmatpush2.msra.mxu0 0.0
        %981 = vmatprep.subr.mxu0 0.0
        %982 = vmatpush2.msra.mxu0 0.0
        %983 = vmatprep.mubr.f32.mxu0 0.0
        %984 = vmatmul.mubr.f32.gmra.mxu0 %v856
        %v985 = vpop.f32.mrf.mxu0
        %v986 = vadd.f32 %v917, %v985
        %v987 = vpop.f32.mrf.mxu0
        %988 = vmatprep.mubr.f32.mxu0 0.0
        %989 = vmatmul.mubr.f32.gmra.mxu0 %v857
        %v990 = vpop.f32.mrf.mxu0
        %v991 = vadd.f32 %v917, %v990
        %v992 = vpop.f32.mrf.mxu0
        %993 = vmatprep.mubr.f32.mxu0 0.0
        %994 = vmatmul.mubr.f32.gmra.mxu0 %v858
        %v995 = vpop.f32.mrf.mxu0
        %v996 = vadd.f32 %v917, %v995
        %v997 = vpop.f32.mrf.mxu0
        %998 = vmatprep.mubr.f32.mxu0 0.0
        %999 = vmatmul.mubr.f32.gmra.mxu0 %v859
        %v1000 = vpop.f32.mrf.mxu0
        %v1001 = vadd.f32 %v917, %v1000
        %v1002 = vpop.f32.mrf.mxu0
        %1003 = vmatprep.mubr.f32.mxu0 0.0
        %1004 = vmatmul.mubr.f32.gmra.mxu0 %v860
        %v1005 = vpop.f32.mrf.mxu0
        %v1006 = vadd.f32 %v917, %v1005
        %v1007 = vpop.f32.mrf.mxu0
        %1008 = vmatprep.mubr.f32.mxu0 0.0
        %1009 = vmatmul.mubr.f32.gmra.mxu0 %v861
        %v1010 = vpop.f32.mrf.mxu0
        %v1011 = vadd.f32 %v917, %v1010
        %v1012 = vpop.f32.mrf.mxu0
        %1013 = vmatprep.mubr.f32.mxu0 0.0
        %1014 = vmatmul.mubr.f32.gmra.mxu0 %v862
        %v1015 = vpop.f32.mrf.mxu0
        %v1016 = vadd.f32 %v917, %v1015
        %v1017 = vpop.f32.mrf.mxu0
        %1018 = vmatprep.mubr.f32.mxu0 0.0
        %1019 = vmatmul.mubr.f32.gmra.mxu0 %v863
        %v1020 = vpop.f32.mrf.mxu0
        %v1021 = vadd.f32 %v917, %v1020
        %v1022 = vpop.f32.mrf.mxu0
        %1023 = vdwg.mxu0
        %v1024 = vld [vmem:[%s7] sm:$0xff]
        %v1025 = vld [vmem:[%s7 + $0x8] sm:$0xff]
        %v1026 = vld [vmem:[%s7 + $0x10] sm:$0xff]
        %v1027 = vld [vmem:[%s7 + $0x18] sm:$0xff]
        %v1028 = vld [vmem:[%s7 + $0x20] sm:$0xff]
        %v1029 = vld [vmem:[%s7 + $0x28] sm:$0xff]
        %v1030 = vld [vmem:[%s7 + $0x30] sm:$0xff]
        %v1031 = vld [vmem:[%s7 + $0x38] sm:$0xff]
        %v1032 = vld [vmem:[%s7 + $0x40] sm:$0xff]
        %v1033 = vld [vmem:[%s7 + $0x48] sm:$0xff]
        %v1034 = vld [vmem:[%s7 + $0x50] sm:$0xff]
        %v1035 = vld [vmem:[%s7 + $0x58] sm:$0xff]
        %v1036 = vld [vmem:[%s7 + $0x60] sm:$0xff]
        %v1037 = vld [vmem:[%s7 + $0x68] sm:$0xff]
        %v1038 = vld [vmem:[%s7 + $0x70] sm:$0xff]
        %v1039 = vld [vmem:[%s7 + $0x78] sm:$0xff]
        %v1040 = vld [vmem:[%s8] sm:$0x1]
        %v1042 = vlaneseq
        %v1043 = vshrl.u32 %v1042, 7
        %v1044 = vsub.s32 0, %v1043
        %v1045 = vrot.slane %v1040, %v1044
        %1047 = vmatprep.subr.mxu0 0.0
        %1048 = vmatpush1.msra.mxu0 %v1039
        %1049 = vmatprep.subr.mxu0 0.0
        %1050 = vmatpush1.msra.mxu0 %v1038
        %1051 = vmatprep.subr.mxu0 0.0
        %1052 = vmatpush1.msra.mxu0 %v1037
        %1053 = vmatprep.subr.mxu0 0.0
        %1054 = vmatpush1.msra.mxu0 %v1036
        %1055 = vmatprep.subr.mxu0 0.0
        %1056 = vmatpush1.msra.mxu0 %v1035
        %1057 = vmatprep.subr.mxu0 0.0
        %1058 = vmatpush1.msra.mxu0 %v1034
        %1059 = vmatprep.subr.mxu0 0.0
        %1060 = vmatpush1.msra.mxu0 %v1033
        %1061 = vmatprep.subr.mxu0 0.0
        %1062 = vmatpush1.msra.mxu0 %v1032
        %1063 = vmatprep.subr.mxu0 0.0
        %1064 = vmatpush1.msra.mxu0 %v1031
        %1065 = vmatprep.subr.mxu0 0.0
        %1066 = vmatpush1.msra.mxu0 %v1030
        %1067 = vmatprep.subr.mxu0 0.0
        %1068 = vmatpush1.msra.mxu0 %v1029
        %1069 = vmatprep.subr.mxu0 0.0
        %1070 = vmatpush1.msra.mxu0 %v1028
        %1071 = vmatprep.subr.mxu0 0.0
        %1072 = vmatpush1.msra.mxu0 %v1027
        %1073 = vmatprep.subr.mxu0 0.0
        %1074 = vmatpush1.msra.mxu0 %v1026
        %1075 = vmatprep.subr.mxu0 0.0
        %1076 = vmatpush1.msra.mxu0 %v1025
        %1077 = vmatprep.subr.mxu0 0.0
        %1078 = vmatpush1.msra.mxu0 %v1024
        %1079 = vmatprep.subr.mxu0 0.0
        %1080 = vmatpush2.msra.mxu0 0.0
        %1081 = vmatprep.subr.mxu0 0.0
        %1082 = vmatpush2.msra.mxu0 0.0
        %1083 = vmatprep.subr.mxu0 0.0
        %1084 = vmatpush2.msra.mxu0 0.0
        %1085 = vmatprep.subr.mxu0 0.0
        %1086 = vmatpush2.msra.mxu0 0.0
        %1087 = vmatprep.subr.mxu0 0.0
        %1088 = vmatpush2.msra.mxu0 0.0
        %1089 = vmatprep.subr.mxu0 0.0
        %1090 = vmatpush2.msra.mxu0 0.0
        %1091 = vmatprep.subr.mxu0 0.0
        %1092 = vmatpush2.msra.mxu0 0.0
        %1093 = vmatprep.subr.mxu0 0.0
        %1094 = vmatpush2.msra.mxu0 0.0
        %1095 = vmatprep.subr.mxu0 0.0
        %1096 = vmatpush2.msra.mxu0 0.0
        %1097 = vmatprep.subr.mxu0 0.0
        %1098 = vmatpush2.msra.mxu0 0.0
        %1099 = vmatprep.subr.mxu0 0.0
        %1100 = vmatpush2.msra.mxu0 0.0
        %1101 = vmatprep.subr.mxu0 0.0
        %1102 = vmatpush2.msra.mxu0 0.0
        %1103 = vmatprep.subr.mxu0 0.0
        %1104 = vmatpush2.msra.mxu0 0.0
        %1105 = vmatprep.subr.mxu0 0.0
        %1106 = vmatpush2.msra.mxu0 0.0
        %1107 = vmatprep.subr.mxu0 0.0
        %1108 = vmatpush2.msra.mxu0 0.0
        %1109 = vmatprep.subr.mxu0 0.0
        %1110 = vmatpush2.msra.mxu0 0.0
        %1111 = vmatprep.mubr.f32.mxu0 0.0
        %1112 = vmatmul.mubr.f32.gmra.mxu0 %v880
        %v1113 = vpop.f32.mrf.mxu0
        %v1114 = vadd.f32 %v1045, %v1113
        %v1115 = vpop.f32.mrf.mxu0
        %1116 = vmatprep.mubr.f32.mxu0 0.0
        %1117 = vmatmul.mubr.f32.gmra.mxu0 %v881
        %v1118 = vpop.f32.mrf.mxu0
        %v1119 = vadd.f32 %v1045, %v1118
        %v1120 = vpop.f32.mrf.mxu0
        %1121 = vmatprep.mubr.f32.mxu0 0.0
        %1122 = vmatmul.mubr.f32.gmra.mxu0 %v882
        %v1123 = vpop.f32.mrf.mxu0
        %v1124 = vadd.f32 %v1045, %v1123
        %v1125 = vpop.f32.mrf.mxu0
        %1126 = vmatprep.mubr.f32.mxu0 0.0
        %1127 = vmatmul.mubr.f32.gmra.mxu0 %v883
        %v1128 = vpop.f32.mrf.mxu0
        %v1129 = vadd.f32 %v1045, %v1128
        %v1130 = vpop.f32.mrf.mxu0
        %1131 = vmatprep.mubr.f32.mxu0 0.0
        %1132 = vmatmul.mubr.f32.gmra.mxu0 %v884
        %v1133 = vpop.f32.mrf.mxu0
        %v1134 = vadd.f32 %v1045, %v1133
        %v1135 = vpop.f32.mrf.mxu0
        %1136 = vmatprep.mubr.f32.mxu0 0.0
        %1137 = vmatmul.mubr.f32.gmra.mxu0 %v885
        %v1138 = vpop.f32.mrf.mxu0
        %v1139 = vadd.f32 %v1045, %v1138
        %v1140 = vpop.f32.mrf.mxu0
        %1141 = vmatprep.mubr.f32.mxu0 0.0
        %1142 = vmatmul.mubr.f32.gmra.mxu0 %v886
        %v1143 = vpop.f32.mrf.mxu0
        %v1144 = vadd.f32 %v1045, %v1143
        %v1145 = vpop.f32.mrf.mxu0
        %1146 = vmatprep.mubr.f32.mxu0 0.0
        %1147 = vmatmul.mubr.f32.gmra.mxu0 %v887
        %v1148 = vpop.f32.mrf.mxu0
        %v1149 = vadd.f32 %v1045, %v1148
        %v1150 = vpop.f32.mrf.mxu0
        %1151 = vmatprep.mubr.f32.mxu0 0.0
        %1152 = vmatmul.mubr.f32.gmra.mxu0 %v888
        %v1153 = vpop.f32.mrf.mxu0
        %v1154 = vadd.f32 %v1045, %v1153
        %v1155 = vpop.f32.mrf.mxu0
        %1156 = vmatprep.mubr.f32.mxu0 0.0
        %1157 = vmatmul.mubr.f32.gmra.mxu0 %v889
        %v1158 = vpop.f32.mrf.mxu0
        %v1159 = vadd.f32 %v1045, %v1158
        %v1160 = vpop.f32.mrf.mxu0
        %1161 = vmatprep.mubr.f32.mxu0 0.0
        %1162 = vmatmul.mubr.f32.gmra.mxu0 %v890
        %v1163 = vpop.f32.mrf.mxu0
        %v1164 = vadd.f32 %v1045, %v1163
        %v1165 = vpop.f32.mrf.mxu0
        %1166 = vmatprep.mubr.f32.mxu0 0.0
        %1167 = vmatmul.mubr.f32.gmra.mxu0 %v891
        %v1168 = vpop.f32.mrf.mxu0
        %v1169 = vadd.f32 %v1045, %v1168
        %v1170 = vpop.f32.mrf.mxu0
        %1171 = vmatprep.mubr.f32.mxu0 0.0
        %1172 = vmatmul.mubr.f32.gmra.mxu0 %v892
        %v1173 = vpop.f32.mrf.mxu0
        %v1174 = vadd.f32 %v1045, %v1173
        %v1175 = vpop.f32.mrf.mxu0
        %1176 = vmatprep.mubr.f32.mxu0 0.0
        %1177 = vmatmul.mubr.f32.gmra.mxu0 %v893
        %v1178 = vpop.f32.mrf.mxu0
        %v1179 = vadd.f32 %v1045, %v1178
        %v1180 = vpop.f32.mrf.mxu0
        %1181 = vmatprep.mubr.f32.mxu0 0.0
        %1182 = vmatmul.mubr.f32.gmra.mxu0 %v894
        %v1183 = vpop.f32.mrf.mxu0
        %v1184 = vadd.f32 %v1045, %v1183
        %v1185 = vpop.f32.mrf.mxu0
        %1186 = vmatprep.mubr.f32.mxu0 0.0
        %1187 = vmatmul.mubr.f32.gmra.mxu0 %v895
        %v1188 = vpop.f32.mrf.mxu0
        %v1189 = vadd.f32 %v1045, %v1188
        %v1190 = vpop.f32.mrf.mxu0
        %1191 = vdwg.mxu0
        %v1192 = vld [vmem:[%s9] sm:$0xff]
        %v1193 = vld [vmem:[%s9 + $0x8] sm:$0xff]
        %v1194 = vld [vmem:[%s9 + $0x10] sm:$0xff]
        %v1195 = vld [vmem:[%s9 + $0x18] sm:$0xff]
        %v1196 = vld [vmem:[%s9 + $0x20] sm:$0xff]
        %v1197 = vld [vmem:[%s9 + $0x28] sm:$0xff]
        %v1198 = vld [vmem:[%s9 + $0x30] sm:$0xff]
        %v1199 = vld [vmem:[%s9 + $0x38] sm:$0xff]
        %v1200 = vld [vmem:[%s9 + $0x40] sm:$0xff]
        %v1201 = vld [vmem:[%s9 + $0x48] sm:$0xff]
        %v1202 = vld [vmem:[%s9 + $0x50] sm:$0xff]
        %v1203 = vld [vmem:[%s9 + $0x58] sm:$0xff]
        %v1204 = vld [vmem:[%s9 + $0x60] sm:$0xff]
        %v1205 = vld [vmem:[%s9 + $0x68] sm:$0xff]
        %v1206 = vld [vmem:[%s9 + $0x70] sm:$0xff]
        %v1207 = vld [vmem:[%s9 + $0x78] sm:$0xff]
        %v1208 = vld [vmem:[%s10] sm:$0x1]
        %v1210 = vlaneseq
        %v1211 = vshrl.u32 %v1210, 7
        %v1212 = vsub.s32 0, %v1211
        %v1213 = vrot.slane %v1208, %v1212
        %1215 = vmatprep.subr.mxu0 0.0
        %1216 = vmatpush1.msra.mxu0 %v1207
        %1217 = vmatprep.subr.mxu0 0.0
        %1218 = vmatpush1.msra.mxu0 %v1206
        %1219 = vmatprep.subr.mxu0 0.0
        %1220 = vmatpush1.msra.mxu0 %v1205
        %1221 = vmatprep.subr.mxu0 0.0
        %1222 = vmatpush1.msra.mxu0 %v1204
        %1223 = vmatprep.subr.mxu0 0.0
        %1224 = vmatpush1.msra.mxu0 %v1203
        %1225 = vmatprep.subr.mxu0 0.0
        %1226 = vmatpush1.msra.mxu0 %v1202
        %1227 = vmatprep.subr.mxu0 0.0
        %1228 = vmatpush1.msra.mxu0 %v1201
        %1229 = vmatprep.subr.mxu0 0.0
        %1230 = vmatpush1.msra.mxu0 %v1200
        %1231 = vmatprep.subr.mxu0 0.0
        %1232 = vmatpush1.msra.mxu0 %v1199
        %1233 = vmatprep.subr.mxu0 0.0
        %1234 = vmatpush1.msra.mxu0 %v1198
        %1235 = vmatprep.subr.mxu0 0.0
        %1236 = vmatpush1.msra.mxu0 %v1197
        %1237 = vmatprep.subr.mxu0 0.0
        %1238 = vmatpush1.msra.mxu0 %v1196
        %1239 = vmatprep.subr.mxu0 0.0
        %1240 = vmatpush1.msra.mxu0 %v1195
        %1241 = vmatprep.subr.mxu0 0.0
        %1242 = vmatpush1.msra.mxu0 %v1194
        %1243 = vmatprep.subr.mxu0 0.0
        %1244 = vmatpush1.msra.mxu0 %v1193
        %1245 = vmatprep.subr.mxu0 0.0
        %1246 = vmatpush1.msra.mxu0 %v1192
        %1247 = vmatprep.subr.mxu0 0.0
        %1248 = vmatpush2.msra.mxu0 0.0
        %1249 = vmatprep.subr.mxu0 0.0
        %1250 = vmatpush2.msra.mxu0 0.0
        %1251 = vmatprep.subr.mxu0 0.0
        %1252 = vmatpush2.msra.mxu0 0.0
        %1253 = vmatprep.subr.mxu0 0.0
        %1254 = vmatpush2.msra.mxu0 0.0
        %1255 = vmatprep.subr.mxu0 0.0
        %1256 = vmatpush2.msra.mxu0 0.0
        %1257 = vmatprep.subr.mxu0 0.0
        %1258 = vmatpush2.msra.mxu0 0.0
        %1259 = vmatprep.subr.mxu0 0.0
        %1260 = vmatpush2.msra.mxu0 0.0
        %1261 = vmatprep.subr.mxu0 0.0
        %1262 = vmatpush2.msra.mxu0 0.0
        %1263 = vmatprep.subr.mxu0 0.0
        %1264 = vmatpush2.msra.mxu0 0.0
        %1265 = vmatprep.subr.mxu0 0.0
        %1266 = vmatpush2.msra.mxu0 0.0
        %1267 = vmatprep.subr.mxu0 0.0
        %1268 = vmatpush2.msra.mxu0 0.0
        %1269 = vmatprep.subr.mxu0 0.0
        %1270 = vmatpush2.msra.mxu0 0.0
        %1271 = vmatprep.subr.mxu0 0.0
        %1272 = vmatpush2.msra.mxu0 0.0
        %1273 = vmatprep.subr.mxu0 0.0
        %1274 = vmatpush2.msra.mxu0 0.0
        %1275 = vmatprep.subr.mxu0 0.0
        %1276 = vmatpush2.msra.mxu0 0.0
        %1277 = vmatprep.subr.mxu0 0.0
        %1278 = vmatpush2.msra.mxu0 0.0
        %1279 = vmatprep.mubr.f32.mxu0 0.0
        %1280 = vmatmul.mubr.f32.gmra.mxu0 %v832
        %v1281 = vpop.f32.mrf.mxu0
        %v1282 = vadd.f32 %v1213, %v1281
        %v1283 = vpop.f32.mrf.mxu0
        %1284 = vmatprep.mubr.f32.mxu0 0.0
        %1285 = vmatmul.mubr.f32.gmra.mxu0 %v833
        %v1286 = vpop.f32.mrf.mxu0
        %v1287 = vadd.f32 %v1213, %v1286
        %v1288 = vpop.f32.mrf.mxu0
        %1289 = vmatprep.mubr.f32.mxu0 0.0
        %1290 = vmatmul.mubr.f32.gmra.mxu0 %v834
        %v1291 = vpop.f32.mrf.mxu0
        %v1292 = vadd.f32 %v1213, %v1291
        %v1293 = vpop.f32.mrf.mxu0
        %1294 = vmatprep.mubr.f32.mxu0 0.0
        %1295 = vmatmul.mubr.f32.gmra.mxu0 %v835
        %v1296 = vpop.f32.mrf.mxu0
        %v1297 = vadd.f32 %v1213, %v1296
        %v1298 = vpop.f32.mrf.mxu0
        %1299 = vmatprep.mubr.f32.mxu0 0.0
        %1300 = vmatmul.mubr.f32.gmra.mxu0 %v836
        %v1301 = vpop.f32.mrf.mxu0
        %v1302 = vadd.f32 %v1213, %v1301
        %v1303 = vpop.f32.mrf.mxu0
        %1304 = vmatprep.mubr.f32.mxu0 0.0
        %1305 = vmatmul.mubr.f32.gmra.mxu0 %v837
        %v1306 = vpop.f32.mrf.mxu0
        %v1307 = vadd.f32 %v1213, %v1306
        %v1308 = vpop.f32.mrf.mxu0
        %1309 = vmatprep.mubr.f32.mxu0 0.0
        %1310 = vmatmul.mubr.f32.gmra.mxu0 %v838
        %v1311 = vpop.f32.mrf.mxu0
        %v1312 = vadd.f32 %v1213, %v1311
        %v1313 = vpop.f32.mrf.mxu0
        %1314 = vmatprep.mubr.f32.mxu0 0.0
        %1315 = vmatmul.mubr.f32.gmra.mxu0 %v839
        %v1316 = vpop.f32.mrf.mxu0
        %v1317 = vadd.f32 %v1213, %v1316
        %v1318 = vpop.f32.mrf.mxu0
        %1319 = vmatprep.mubr.f32.mxu0 0.0
        %1320 = vmatmul.mubr.f32.gmra.mxu0 %v840
        %v1321 = vpop.f32.mrf.mxu0
        %v1322 = vadd.f32 %v1213, %v1321
        %v1323 = vpop.f32.mrf.mxu0
        %1324 = vmatprep.mubr.f32.mxu0 0.0
        %1325 = vmatmul.mubr.f32.gmra.mxu0 %v841
        %v1326 = vpop.f32.mrf.mxu0
        %v1327 = vadd.f32 %v1213, %v1326
        %v1328 = vpop.f32.mrf.mxu0
        %1329 = vmatprep.mubr.f32.mxu0 0.0
        %1330 = vmatmul.mubr.f32.gmra.mxu0 %v842
        %v1331 = vpop.f32.mrf.mxu0
        %v1332 = vadd.f32 %v1213, %v1331
        %v1333 = vpop.f32.mrf.mxu0
        %1334 = vmatprep.mubr.f32.mxu0 0.0
        %1335 = vmatmul.mubr.f32.gmra.mxu0 %v843
        %v1336 = vpop.f32.mrf.mxu0
        %v1337 = vadd.f32 %v1213, %v1336
        %v1338 = vpop.f32.mrf.mxu0
        %1339 = vmatprep.mubr.f32.mxu0 0.0
        %1340 = vmatmul.mubr.f32.gmra.mxu0 %v844
        %v1341 = vpop.f32.mrf.mxu0
        %v1342 = vadd.f32 %v1213, %v1341
        %v1343 = vpop.f32.mrf.mxu0
        %1344 = vmatprep.mubr.f32.mxu0 0.0
        %1345 = vmatmul.mubr.f32.gmra.mxu0 %v845
        %v1346 = vpop.f32.mrf.mxu0
        %v1347 = vadd.f32 %v1213, %v1346
        %v1348 = vpop.f32.mrf.mxu0
        %1349 = vmatprep.mubr.f32.mxu0 0.0
        %1350 = vmatmul.mubr.f32.gmra.mxu0 %v846
        %v1351 = vpop.f32.mrf.mxu0
        %v1352 = vadd.f32 %v1213, %v1351
        %v1353 = vpop.f32.mrf.mxu0
        %1354 = vmatprep.mubr.f32.mxu0 0.0
        %1355 = vmatmul.mubr.f32.gmra.mxu0 %v847
        %v1356 = vpop.f32.mrf.mxu0
        %v1357 = vadd.f32 %v1213, %v1356
        %v1358 = vpop.f32.mrf.mxu0
        %1359 = vdwg.mxu0
        %v1360 = vld [vmem:[%s813] sm:$0x1]
        %v1361 = vmul.f32 %v1360, -1e+30
        %v1363 = vlaneseq
        %v1364 = vshrl.u32 %v1363, 7
        %v1365 = vsub.s32 0, %v1364
        %v1366 = vrot.slane %v1361, %v1365
        %vm1368 = vcmask 261120
        %v1370 = vsel %vm1368, %v986, 0
        %v1373 = vsel %vm1368, %v991, 0
        %v1376 = vsel %vm1368, %v996, 0
        %v1379 = vsel %vm1368, %v1001, 0
        %v1382 = vsel %vm1368, %v1006, 0
        %v1385 = vsel %vm1368, %v1011, 0
        %v1388 = vsel %vm1368, %v1016, 0
        %v1391 = vsel %vm1368, %v1021, 0
        %v1394 = vsel %vm1368, %v1114, 0
        %v1397 = vsel %vm1368, %v1119, 0
        %v1400 = vsel %vm1368, %v1124, 0
        %v1403 = vsel %vm1368, %v1129, 0
        %v1406 = vsel %vm1368, %v1134, 0
        %v1409 = vsel %vm1368, %v1139, 0
        %v1412 = vsel %vm1368, %v1144, 0
        %v1415 = vsel %vm1368, %v1149, 0
        %v1418 = vsel %vm1368, %v1154, 0
        %v1421 = vsel %vm1368, %v1159, 0
        %v1424 = vsel %vm1368, %v1164, 0
        %v1427 = vsel %vm1368, %v1169, 0
        %v1430 = vsel %vm1368, %v1174, 0
        %v1433 = vsel %vm1368, %v1179, 0
        %v1436 = vsel %vm1368, %v1184, 0
        %v1439 = vsel %vm1368, %v1189, 0
        %1441 = vmatprep.subr.mxu0 0.0
        %1442 = vmatpush1.xpose.msra.mxu0 %v1439
        %1443 = vmatprep.subr.mxu0 0.0
        %1444 = vmatpush1.xpose.msra.mxu0 %v1436
        %1445 = vmatprep.subr.mxu0 0.0
        %1446 = vmatpush1.xpose.msra.mxu0 %v1433
        %1447 = vmatprep.subr.mxu0 0.0
        %1448 = vmatpush1.xpose.msra.mxu0 %v1430
        %1449 = vmatprep.subr.mxu0 0.0
        %1450 = vmatpush1.xpose.msra.mxu0 %v1427
        %1451 = vmatprep.subr.mxu0 0.0
        %1452 = vmatpush1.xpose.msra.mxu0 %v1424
        %1453 = vmatprep.subr.mxu0 0.0
        %1454 = vmatpush1.xpose.msra.mxu0 %v1421
        %1455 = vmatprep.subr.mxu0 0.0
        %1456 = vmatpush1.xpose.msra.mxu0 %v1418
        %1457 = vmatprep.subr.mxu0 0.0
        %1458 = vmatpush1.xpose.msra.mxu0 %v1415
        %1459 = vmatprep.subr.mxu0 0.0
        %1460 = vmatpush1.xpose.msra.mxu0 %v1412
        %1461 = vmatprep.subr.mxu0 0.0
        %1462 = vmatpush1.xpose.msra.mxu0 %v1409
        %1463 = vmatprep.subr.mxu0 0.0
        %1464 = vmatpush1.xpose.msra.mxu0 %v1406
        %1465 = vmatprep.subr.mxu0 0.0
        %1466 = vmatpush1.xpose.msra.mxu0 %v1403
        %1467 = vmatprep.subr.mxu0 0.0
        %1468 = vmatpush1.xpose.msra.mxu0 %v1400
        %1469 = vmatprep.subr.mxu0 0.0
        %1470 = vmatpush1.xpose.msra.mxu0 %v1397
        %1471 = vmatprep.subr.mxu0 0.0
        %1472 = vmatpush1.xpose.msra.mxu0 %v1394
        %1473 = vmatprep.subr.mxu0 0.0
        %1474 = vmatpush2.xpose.msra.mxu0 0.0
        %1475 = vmatprep.subr.mxu0 0.0
        %1476 = vmatpush2.xpose.msra.mxu0 0.0
        %1477 = vmatprep.subr.mxu0 0.0
        %1478 = vmatpush2.xpose.msra.mxu0 0.0
        %1479 = vmatprep.subr.mxu0 0.0
        %1480 = vmatpush2.xpose.msra.mxu0 0.0
        %1481 = vmatprep.subr.mxu0 0.0
        %1482 = vmatpush2.xpose.msra.mxu0 0.0
        %1483 = vmatprep.subr.mxu0 0.0
        %1484 = vmatpush2.xpose.msra.mxu0 0.0
        %1485 = vmatprep.subr.mxu0 0.0
        %1486 = vmatpush2.xpose.msra.mxu0 0.0
        %1487 = vmatprep.subr.mxu0 0.0
        %1488 = vmatpush2.xpose.msra.mxu0 0.0
        %1489 = vmatprep.subr.mxu0 0.0
        %1490 = vmatpush2.xpose.msra.mxu0 0.0
        %1491 = vmatprep.subr.mxu0 0.0
        %1492 = vmatpush2.xpose.msra.mxu0 0.0
        %1493 = vmatprep.subr.mxu0 0.0
        %1494 = vmatpush2.xpose.msra.mxu0 0.0
        %1495 = vmatprep.subr.mxu0 0.0
        %1496 = vmatpush2.xpose.msra.mxu0 0.0
        %1497 = vmatprep.subr.mxu0 0.0
        %1498 = vmatpush2.xpose.msra.mxu0 0.0
        %1499 = vmatprep.subr.mxu0 0.0
        %1500 = vmatpush2.xpose.msra.mxu0 0.0
        %1501 = vmatprep.subr.mxu0 0.0
        %1502 = vmatpush2.xpose.msra.mxu0 0.0
        %1503 = vmatprep.subr.mxu0 0.0
        %1504 = vmatpush2.xpose.msra.mxu0 0.0
        %1505 = vmatprep.mubr.f32.mxu0 0.0
        %1506 = vmatmul.mubr.f32.gmra.mxu0 %v1370
        %v1507 = vpop.f32.mrf.mxu0
        %v1508 = vadd.f32 %v1366, %v1507
        %v1509 = vpop.f32.mrf.mxu0
        %1510 = vmatprep.mubr.f32.mxu0 0.0
        %1511 = vmatmul.mubr.f32.gmra.mxu0 %v1373
        %v1512 = vpop.f32.mrf.mxu0
        %v1513 = vadd.f32 %v1366, %v1512
        %v1514 = vpop.f32.mrf.mxu0
        %1515 = vmatprep.mubr.f32.mxu0 0.0
        %1516 = vmatmul.mubr.f32.gmra.mxu0 %v1376
        %v1517 = vpop.f32.mrf.mxu0
        %v1518 = vadd.f32 %v1366, %v1517
        %v1519 = vpop.f32.mrf.mxu0
        %1520 = vmatprep.mubr.f32.mxu0 0.0
        %1521 = vmatmul.mubr.f32.gmra.mxu0 %v1379
        %v1522 = vpop.f32.mrf.mxu0
        %v1523 = vadd.f32 %v1366, %v1522
        %v1524 = vpop.f32.mrf.mxu0
        %1525 = vmatprep.mubr.f32.mxu0 0.0
        %1526 = vmatmul.mubr.f32.gmra.mxu0 %v1382
        %v1527 = vpop.f32.mrf.mxu0
        %v1528 = vadd.f32 %v1366, %v1527
        %v1529 = vpop.f32.mrf.mxu0
        %1530 = vmatprep.mubr.f32.mxu0 0.0
        %1531 = vmatmul.mubr.f32.gmra.mxu0 %v1385
        %v1532 = vpop.f32.mrf.mxu0
        %v1533 = vadd.f32 %v1366, %v1532
        %v1534 = vpop.f32.mrf.mxu0
        %1535 = vmatprep.mubr.f32.mxu0 0.0
        %1536 = vmatmul.mubr.f32.gmra.mxu0 %v1388
        %v1537 = vpop.f32.mrf.mxu0
        %v1538 = vadd.f32 %v1366, %v1537
        %v1539 = vpop.f32.mrf.mxu0
        %1540 = vmatprep.mubr.f32.mxu0 0.0
        %1541 = vmatmul.mubr.f32.gmra.mxu0 %v1391
        %v1542 = vpop.f32.mrf.mxu0
        %v1543 = vadd.f32 %v1366, %v1542
        %v1544 = vpop.f32.mrf.mxu0
        %1545 = vdwg.mxu0
        %1546 = vmax.xlane.f32.xlu0 %v1508
        %v1547 = vpop.xlane.xlu0 %1546
        %1548 = vmax.xlane.f32.xlu0 %v1513
        %v1549 = vpop.xlane.xlu0 %1548
        %1550 = vmax.xlane.f32.xlu0 %v1518
        %v1551 = vpop.xlane.xlu0 %1550
        %1552 = vmax.xlane.f32.xlu0 %v1523
        %v1553 = vpop.xlane.xlu0 %1552
        %1554 = vmax.xlane.f32.xlu0 %v1528
        %v1555 = vpop.xlane.xlu0 %1554
        %1556 = vmax.xlane.f32.xlu0 %v1533
        %v1557 = vpop.xlane.xlu0 %1556
        %1558 = vmax.xlane.f32.xlu0 %v1538
        %v1559 = vpop.xlane.xlu0 %1558
        %1560 = vmax.xlane.f32.xlu0 %v1543
        %v1561 = vpop.xlane.xlu0 %1560
        %v1562 = vsub.f32 %v1508, %v1547
        %v1563 = vsub.f32 %v1513, %v1549
        %v1564 = vsub.f32 %v1518, %v1551
        %v1565 = vsub.f32 %v1523, %v1553
        %v1566 = vsub.f32 %v1528, %v1555
        %v1567 = vsub.f32 %v1533, %v1557
        %v1568 = vsub.f32 %v1538, %v1559
        %v1569 = vsub.f32 %v1543, %v1561
        %v1570 = vmul.f32 %v1562, 1.442695
        %v1571 = vpow.pop %v1570
        %v1572 = vmul.f32 %v1563, 1.442695
        %v1573 = vpow.pop %v1572
        %v1574 = vmul.f32 %v1564, 1.442695
        %v1575 = vpow.pop %v1574
        %v1576 = vmul.f32 %v1565, 1.442695
        %v1577 = vpow.pop %v1576
        %v1578 = vmul.f32 %v1566, 1.442695
        %v1579 = vpow.pop %v1578
        %v1580 = vmul.f32 %v1567, 1.442695
        %v1581 = vpow.pop %v1580
        %v1582 = vmul.f32 %v1568, 1.442695
        %v1583 = vpow.pop %v1582
        %v1584 = vmul.f32 %v1569, 1.442695
        %v1585 = vpow.pop %v1584
        %1586 = vadd.xlane.f32.xlu0 %v1571
        %v1587 = vpop.xlane.xlu0 %1586
        %1588 = vadd.xlane.f32.xlu0 %v1573
        %v1589 = vpop.xlane.xlu0 %1588
        %1590 = vadd.xlane.f32.xlu0 %v1575
        %v1591 = vpop.xlane.xlu0 %1590
        %1592 = vadd.xlane.f32.xlu0 %v1577
        %v1593 = vpop.xlane.xlu0 %1592
        %1594 = vadd.xlane.f32.xlu0 %v1579
        %v1595 = vpop.xlane.xlu0 %1594
        %1596 = vadd.xlane.f32.xlu0 %v1581
        %v1597 = vpop.xlane.xlu0 %1596
        %1598 = vadd.xlane.f32.xlu0 %v1583
        %v1599 = vpop.xlane.xlu0 %1598
        %1600 = vadd.xlane.f32.xlu0 %v1585
        %v1601 = vpop.xlane.xlu0 %1600
        %v1602 = vrcp.pop %v1587
        %v1603 = vrcp.pop %v1589
        %v1604 = vrcp.pop %v1591
        %v1605 = vrcp.pop %v1593
        %v1606 = vrcp.pop %v1595
        %v1607 = vrcp.pop %v1597
        %v1608 = vrcp.pop %v1599
        %v1609 = vrcp.pop %v1601
        %v1610 = vmul.f32 %v1571, %v1602
        %v1611 = vmul.f32 %v1573, %v1603
        %v1612 = vmul.f32 %v1575, %v1604
        %v1613 = vmul.f32 %v1577, %v1605
        %v1614 = vmul.f32 %v1579, %v1606
        %v1615 = vmul.f32 %v1581, %v1607
        %v1616 = vmul.f32 %v1583, %v1608
        %v1617 = vmul.f32 %v1585, %v1609
        %1618 = vmatprep.subr.mxu0 0.0
        %1619 = vmatpush1.msra.mxu0 %v1357
        %1620 = vmatprep.subr.mxu0 0.0
        %1621 = vmatpush1.msra.mxu0 %v1352
        %1622 = vmatprep.subr.mxu0 0.0
        %1623 = vmatpush1.msra.mxu0 %v1347
        %1624 = vmatprep.subr.mxu0 0.0
        %1625 = vmatpush1.msra.mxu0 %v1342
        %1626 = vmatprep.subr.mxu0 0.0
        %1627 = vmatpush1.msra.mxu0 %v1337
        %1628 = vmatprep.subr.mxu0 0.0
        %1629 = vmatpush1.msra.mxu0 %v1332
        %1630 = vmatprep.subr.mxu0 0.0
        %1631 = vmatpush1.msra.mxu0 %v1327
        %1632 = vmatprep.subr.mxu0 0.0
        %1633 = vmatpush1.msra.mxu0 %v1322
        %1634 = vmatprep.subr.mxu0 0.0
        %1635 = vmatpush1.msra.mxu0 %v1317
        %1636 = vmatprep.subr.mxu0 0.0
        %1637 = vmatpush1.msra.mxu0 %v1312
        %1638 = vmatprep.subr.mxu0 0.0
        %1639 = vmatpush1.msra.mxu0 %v1307
        %1640 = vmatprep.subr.mxu0 0.0
        %1641 = vmatpush1.msra.mxu0 %v1302
        %1642 = vmatprep.subr.mxu0 0.0
        %1643 = vmatpush1.msra.mxu0 %v1297
        %1644 = vmatprep.subr.mxu0 0.0
        %1645 = vmatpush1.msra.mxu0 %v1292
        %1646 = vmatprep.subr.mxu0 0.0
        %1647 = vmatpush1.msra.mxu0 %v1287
        %1648 = vmatprep.subr.mxu0 0.0
        %1649 = vmatpush1.msra.mxu0 %v1282
        %1650 = vmatprep.subr.mxu0 0.0
        %1651 = vmatpush2.msra.mxu0 0.0
        %1652 = vmatprep.subr.mxu0 0.0
        %1653 = vmatpush2.msra.mxu0 0.0
        %1654 = vmatprep.subr.mxu0 0.0
        %1655 = vmatpush2.msra.mxu0 0.0
        %1656 = vmatprep.subr.mxu0 0.0
        %1657 = vmatpush2.msra.mxu0 0.0
        %1658 = vmatprep.subr.mxu0 0.0
        %1659 = vmatpush2.msra.mxu0 0.0
        %1660 = vmatprep.subr.mxu0 0.0
        %1661 = vmatpush2.msra.mxu0 0.0
        %1662 = vmatprep.subr.mxu0 0.0
        %1663 = vmatpush2.msra.mxu0 0.0
        %1664 = vmatprep.subr.mxu0 0.0
        %1665 = vmatpush2.msra.mxu0 0.0
        %1666 = vmatprep.subr.mxu0 0.0
        %1667 = vmatpush2.msra.mxu0 0.0
        %1668 = vmatprep.subr.mxu0 0.0
        %1669 = vmatpush2.msra.mxu0 0.0
        %1670 = vmatprep.subr.mxu0 0.0
        %1671 = vmatpush2.msra.mxu0 0.0
        %1672 = vmatprep.subr.mxu0 0.0
        %1673 = vmatpush2.msra.mxu0 0.0
        %1674 = vmatprep.subr.mxu0 0.0
        %1675 = vmatpush2.msra.mxu0 0.0
        %1676 = vmatprep.subr.mxu0 0.0
        %1677 = vmatpush2.msra.mxu0 0.0
        %1678 = vmatprep.subr.mxu0 0.0
        %1679 = vmatpush2.msra.mxu0 0.0
        %1680 = vmatprep.subr.mxu0 0.0
        %1681 = vmatpush2.msra.mxu0 0.0
        %1682 = vmatprep.mubr.f32.mxu0 0.0
        %1683 = vmatmul.mubr.f32.gmra.mxu0 %v1610
        %v1684 = vpop.f32.mrf.mxu0
        %v1685 = vadd.f32 0.0, %v1684
        %v1686 = vpop.f32.mrf.mxu0
        %1687 = vmatprep.mubr.f32.mxu0 0.0
        %1688 = vmatmul.mubr.f32.gmra.mxu0 %v1611
        %v1689 = vpop.f32.mrf.mxu0
        %v1690 = vadd.f32 0.0, %v1689
        %v1691 = vpop.f32.mrf.mxu0
        %1692 = vmatprep.mubr.f32.mxu0 0.0
        %1693 = vmatmul.mubr.f32.gmra.mxu0 %v1612
        %v1694 = vpop.f32.mrf.mxu0
        %v1695 = vadd.f32 0.0, %v1694
        %v1696 = vpop.f32.mrf.mxu0
        %1697 = vmatprep.mubr.f32.mxu0 0.0
        %1698 = vmatmul.mubr.f32.gmra.mxu0 %v1613
        %v1699 = vpop.f32.mrf.mxu0
        %v1700 = vadd.f32 0.0, %v1699
        %v1701 = vpop.f32.mrf.mxu0
        %1702 = vmatprep.mubr.f32.mxu0 0.0
        %1703 = vmatmul.mubr.f32.gmra.mxu0 %v1614
        %v1704 = vpop.f32.mrf.mxu0
        %v1705 = vadd.f32 0.0, %v1704
        %v1706 = vpop.f32.mrf.mxu0
        %1707 = vmatprep.mubr.f32.mxu0 0.0
        %1708 = vmatmul.mubr.f32.gmra.mxu0 %v1615
        %v1709 = vpop.f32.mrf.mxu0
        %v1710 = vadd.f32 0.0, %v1709
        %v1711 = vpop.f32.mrf.mxu0
        %1712 = vmatprep.mubr.f32.mxu0 0.0
        %1713 = vmatmul.mubr.f32.gmra.mxu0 %v1616
        %v1714 = vpop.f32.mrf.mxu0
        %v1715 = vadd.f32 0.0, %v1714
        %v1716 = vpop.f32.mrf.mxu0
        %1717 = vmatprep.mubr.f32.mxu0 0.0
        %1718 = vmatmul.mubr.f32.gmra.mxu0 %v1617
        %v1719 = vpop.f32.mrf.mxu0
        %v1720 = vadd.f32 0.0, %v1719
        %v1721 = vpop.f32.mrf.mxu0
        %1722 = vdwg.mxu0
        %1723 = vst.msk [vmem:[#allocation2] sm:$0xff] %vm1368, %v1685
        %1724 = vst.msk [vmem:[#allocation2 + $0x8] sm:$0xff] %vm1368, %v1690
        %1725 = vst.msk [vmem:[#allocation2 + $0x10] sm:$0xff] %vm1368, %v1695
        %1726 = vst.msk [vmem:[#allocation2 + $0x18] sm:$0xff] %vm1368, %v1700
        %1727 = vst.msk [vmem:[#allocation2 + $0x20] sm:$0xff] %vm1368, %v1705
        %1728 = vst.msk [vmem:[#allocation2 + $0x28] sm:$0xff] %vm1368, %v1710
        %1729 = vst.msk [vmem:[#allocation2 + $0x30] sm:$0xff] %vm1368, %v1715
        %1730 = vst.msk [vmem:[#allocation2 + $0x38] sm:$0xff] %vm1368, %v1720
        %1731 = vrot.lane.b32.xlu0 %v986, 96
        %v1732 = vpop.permute.xlu0 %1731
        %1733 = vrot.lane.b32.xlu0 %v991, 96
        %v1734 = vpop.permute.xlu0 %1733
        %1735 = vrot.lane.b32.xlu0 %v996, 96
        %v1736 = vpop.permute.xlu0 %1735
        %1737 = vrot.lane.b32.xlu0 %v1001, 96
        %v1738 = vpop.permute.xlu0 %1737
        %1739 = vrot.lane.b32.xlu0 %v1006, 96
        %v1740 = vpop.permute.xlu0 %1739
        %1741 = vrot.lane.b32.xlu0 %v1011, 96
        %v1742 = vpop.permute.xlu0 %1741
        %1743 = vrot.lane.b32.xlu0 %v1016, 96
        %v1744 = vpop.permute.xlu0 %1743
        %1745 = vrot.lane.b32.xlu0 %v1021, 96
        %v1746 = vpop.permute.xlu0 %1745
        %1747 = vrot.lane.b32.xlu0 %v1114, 96
        %v1748 = vpop.permute.xlu0 %1747
        %1749 = vrot.lane.b32.xlu0 %v1119, 96
        %v1750 = vpop.permute.xlu0 %1749
        %1751 = vrot.lane.b32.xlu0 %v1124, 96
        %v1752 = vpop.permute.xlu0 %1751
        %1753 = vrot.lane.b32.xlu0 %v1129, 96
        %v1754 = vpop.permute.xlu0 %1753
        %1755 = vrot.lane.b32.xlu0 %v1134, 96
        %v1756 = vpop.permute.xlu0 %1755
        %1757 = vrot.lane.b32.xlu0 %v1139, 96
        %v1758 = vpop.permute.xlu0 %1757
        %1759 = vrot.lane.b32.xlu0 %v1144, 96
        %v1760 = vpop.permute.xlu0 %1759
        %1761 = vrot.lane.b32.xlu0 %v1149, 96
        %v1762 = vpop.permute.xlu0 %1761
        %1763 = vrot.lane.b32.xlu0 %v1154, 96
        %v1764 = vpop.permute.xlu0 %1763
        %1765 = vrot.lane.b32.xlu0 %v1159, 96
        %v1766 = vpop.permute.xlu0 %1765
        %1767 = vrot.lane.b32.xlu0 %v1164, 96
        %v1768 = vpop.permute.xlu0 %1767
        %1769 = vrot.lane.b32.xlu0 %v1169, 96
        %v1770 = vpop.permute.xlu0 %1769
        %1771 = vrot.lane.b32.xlu0 %v1174, 96
        %v1772 = vpop.permute.xlu0 %1771
        %1773 = vrot.lane.b32.xlu0 %v1179, 96
        %v1774 = vpop.permute.xlu0 %1773
        %1775 = vrot.lane.b32.xlu0 %v1184, 96
        %v1776 = vpop.permute.xlu0 %1775
        %1777 = vrot.lane.b32.xlu0 %v1189, 96
        %v1778 = vpop.permute.xlu0 %1777
        %v1779 = vsel %vm1368, %v1732, 0
        %v1781 = vsel %vm1368, %v1734, 0
        %v1783 = vsel %vm1368, %v1736, 0
        %v1785 = vsel %vm1368, %v1738, 0
        %v1787 = vsel %vm1368, %v1740, 0
        %v1789 = vsel %vm1368, %v1742, 0
        %v1791 = vsel %vm1368, %v1744, 0
        %v1793 = vsel %vm1368, %v1746, 0
        %v1795 = vsel %vm1368, %v1748, 0
        %v1797 = vsel %vm1368, %v1750, 0
        %v1799 = vsel %vm1368, %v1752, 0
        %v1801 = vsel %vm1368, %v1754, 0
        %v1803 = vsel %vm1368, %v1756, 0
        %v1805 = vsel %vm1368, %v1758, 0
        %v1807 = vsel %vm1368, %v1760, 0
        %v1809 = vsel %vm1368, %v1762, 0
        %v1811 = vsel %vm1368, %v1764, 0
        %v1813 = vsel %vm1368, %v1766, 0
        %v1815 = vsel %vm1368, %v1768, 0
        %v1817 = vsel %vm1368, %v1770, 0
        %v1819 = vsel %vm1368, %v1772, 0
        %v1821 = vsel %vm1368, %v1774, 0
        %v1823 = vsel %vm1368, %v1776, 0
        %v1825 = vsel %vm1368, %v1778, 0
        %1827 = vmatprep.subr.mxu0 0.0
        %1828 = vmatpush1.xpose.msra.mxu0 %v1825
        %1829 = vmatprep.subr.mxu0 0.0
        %1830 = vmatpush1.xpose.msra.mxu0 %v1823
        %1831 = vmatprep.subr.mxu0 0.0
        %1832 = vmatpush1.xpose.msra.mxu0 %v1821
        %1833 = vmatprep.subr.mxu0 0.0
        %1834 = vmatpush1.xpose.msra.mxu0 %v1819
        %1835 = vmatprep.subr.mxu0 0.0
        %1836 = vmatpush1.xpose.msra.mxu0 %v1817
        %1837 = vmatprep.subr.mxu0 0.0
        %1838 = vmatpush1.xpose.msra.mxu0 %v1815
        %1839 = vmatprep.subr.mxu0 0.0
        %1840 = vmatpush1.xpose.msra.mxu0 %v1813
        %1841 = vmatprep.subr.mxu0 0.0
        %1842 = vmatpush1.xpose.msra.mxu0 %v1811
        %1843 = vmatprep.subr.mxu0 0.0
        %1844 = vmatpush1.xpose.msra.mxu0 %v1809
        %1845 = vmatprep.subr.mxu0 0.0
        %1846 = vmatpush1.xpose.msra.mxu0 %v1807
        %1847 = vmatprep.subr.mxu0 0.0
        %1848 = vmatpush1.xpose.msra.mxu0 %v1805
        %1849 = vmatprep.subr.mxu0 0.0
        %1850 = vmatpush1.xpose.msra.mxu0 %v1803
        %1851 = vmatprep.subr.mxu0 0.0
        %1852 = vmatpush1.xpose.msra.mxu0 %v1801
        %1853 = vmatprep.subr.mxu0 0.0
        %1854 = vmatpush1.xpose.msra.mxu0 %v1799
        %1855 = vmatprep.subr.mxu0 0.0
        %1856 = vmatpush1.xpose.msra.mxu0 %v1797
        %1857 = vmatprep.subr.mxu0 0.0
        %1858 = vmatpush1.xpose.msra.mxu0 %v1795
        %1859 = vmatprep.subr.mxu0 0.0
        %1860 = vmatpush2.xpose.msra.mxu0 0.0
        %1861 = vmatprep.subr.mxu0 0.0
        %1862 = vmatpush2.xpose.msra.mxu0 0.0
        %1863 = vmatprep.subr.mxu0 0.0
        %1864 = vmatpush2.xpose.msra.mxu0 0.0
        %1865 = vmatprep.subr.mxu0 0.0
        %1866 = vmatpush2.xpose.msra.mxu0 0.0
        %1867 = vmatprep.subr.mxu0 0.0
        %1868 = vmatpush2.xpose.msra.mxu0 0.0
        %1869 = vmatprep.subr.mxu0 0.0
        %1870 = vmatpush2.xpose.msra.mxu0 0.0
        %1871 = vmatprep.subr.mxu0 0.0
        %1872 = vmatpush2.xpose.msra.mxu0 0.0
        %1873 = vmatprep.subr.mxu0 0.0
        %1874 = vmatpush2.xpose.msra.mxu0 0.0
        %1875 = vmatprep.subr.mxu0 0.0
        %1876 = vmatpush2.xpose.msra.mxu0 0.0
        %1877 = vmatprep.subr.mxu0 0.0
        %1878 = vmatpush2.xpose.msra.mxu0 0.0
        %1879 = vmatprep.subr.mxu0 0.0
        %1880 = vmatpush2.xpose.msra.mxu0 0.0
        %1881 = vmatprep.subr.mxu0 0.0
        %1882 = vmatpush2.xpose.msra.mxu0 0.0
        %1883 = vmatprep.subr.mxu0 0.0
        %1884 = vmatpush2.xpose.msra.mxu0 0.0
        %1885 = vmatprep.subr.mxu0 0.0
        %1886 = vmatpush2.xpose.msra.mxu0 0.0
        %1887 = vmatprep.subr.mxu0 0.0
        %1888 = vmatpush2.xpose.msra.mxu0 0.0
        %1889 = vmatprep.subr.mxu0 0.0
        %1890 = vmatpush2.xpose.msra.mxu0 0.0
        %1891 = vmatprep.mubr.f32.mxu0 0.0
        %1892 = vmatmul.mubr.f32.gmra.mxu0 %v1779
        %v1893 = vpop.f32.mrf.mxu0
        %v1894 = vadd.f32 %v1366, %v1893
        %v1895 = vpop.f32.mrf.mxu0
        %1896 = vmatprep.mubr.f32.mxu0 0.0
        %1897 = vmatmul.mubr.f32.gmra.mxu0 %v1781
        %v1898 = vpop.f32.mrf.mxu0
        %v1899 = vadd.f32 %v1366, %v1898
        %v1900 = vpop.f32.mrf.mxu0
        %1901 = vmatprep.mubr.f32.mxu0 0.0
        %1902 = vmatmul.mubr.f32.gmra.mxu0 %v1783
        %v1903 = vpop.f32.mrf.mxu0
        %v1904 = vadd.f32 %v1366, %v1903
        %v1905 = vpop.f32.mrf.mxu0
        %1906 = vmatprep.mubr.f32.mxu0 0.0
        %1907 = vmatmul.mubr.f32.gmra.mxu0 %v1785
        %v1908 = vpop.f32.mrf.mxu0
        %v1909 = vadd.f32 %v1366, %v1908
        %v1910 = vpop.f32.mrf.mxu0
        %1911 = vmatprep.mubr.f32.mxu0 0.0
        %1912 = vmatmul.mubr.f32.gmra.mxu0 %v1787
        %v1913 = vpop.f32.mrf.mxu0
        %v1914 = vadd.f32 %v1366, %v1913
        %v1915 = vpop.f32.mrf.mxu0
        %1916 = vmatprep.mubr.f32.mxu0 0.0
        %1917 = vmatmul.mubr.f32.gmra.mxu0 %v1789
        %v1918 = vpop.f32.mrf.mxu0
        %v1919 = vadd.f32 %v1366, %v1918
        %v1920 = vpop.f32.mrf.mxu0
        %1921 = vmatprep.mubr.f32.mxu0 0.0
        %1922 = vmatmul.mubr.f32.gmra.mxu0 %v1791
        %v1923 = vpop.f32.mrf.mxu0
        %v1924 = vadd.f32 %v1366, %v1923
        %v1925 = vpop.f32.mrf.mxu0
        %1926 = vmatprep.mubr.f32.mxu0 0.0
        %1927 = vmatmul.mubr.f32.gmra.mxu0 %v1793
        %v1928 = vpop.f32.mrf.mxu0
        %v1929 = vadd.f32 %v1366, %v1928
        %v1930 = vpop.f32.mrf.mxu0
        %1931 = vdwg.mxu0
        %1932 = vmax.xlane.f32.xlu0 %v1894
        %v1933 = vpop.xlane.xlu0 %1932
        %1934 = vmax.xlane.f32.xlu0 %v1899
        %v1935 = vpop.xlane.xlu0 %1934
        %1936 = vmax.xlane.f32.xlu0 %v1904
        %v1937 = vpop.xlane.xlu0 %1936
        %1938 = vmax.xlane.f32.xlu0 %v1909
        %v1939 = vpop.xlane.xlu0 %1938
        %1940 = vmax.xlane.f32.xlu0 %v1914
        %v1941 = vpop.xlane.xlu0 %1940
        %1942 = vmax.xlane.f32.xlu0 %v1919
        %v1943 = vpop.xlane.xlu0 %1942
        %1944 = vmax.xlane.f32.xlu0 %v1924
        %v1945 = vpop.xlane.xlu0 %1944
        %1946 = vmax.xlane.f32.xlu0 %v1929
        %v1947 = vpop.xlane.xlu0 %1946
        %v1948 = vsub.f32 %v1894, %v1933
        %v1949 = vsub.f32 %v1899, %v1935
        %v1950 = vsub.f32 %v1904, %v1937
        %v1951 = vsub.f32 %v1909, %v1939
        %v1952 = vsub.f32 %v1914, %v1941
        %v1953 = vsub.f32 %v1919, %v1943
        %v1954 = vsub.f32 %v1924, %v1945
        %v1955 = vsub.f32 %v1929, %v1947
        %v1956 = vmul.f32 %v1948, 1.442695
        %v1957 = vpow.pop %v1956
        %v1958 = vmul.f32 %v1949, 1.442695
        %v1959 = vpow.pop %v1958
        %v1960 = vmul.f32 %v1950, 1.442695
        %v1961 = vpow.pop %v1960
        %v1962 = vmul.f32 %v1951, 1.442695
        %v1963 = vpow.pop %v1962
        %v1964 = vmul.f32 %v1952, 1.442695
        %v1965 = vpow.pop %v1964
        %v1966 = vmul.f32 %v1953, 1.442695
        %v1967 = vpow.pop %v1966
        %v1968 = vmul.f32 %v1954, 1.442695
        %v1969 = vpow.pop %v1968
        %v1970 = vmul.f32 %v1955, 1.442695
        %v1971 = vpow.pop %v1970
        %1972 = vadd.xlane.f32.xlu0 %v1957
        %v1973 = vpop.xlane.xlu0 %1972
        %1974 = vadd.xlane.f32.xlu0 %v1959
        %v1975 = vpop.xlane.xlu0 %1974
        %1976 = vadd.xlane.f32.xlu0 %v1961
        %v1977 = vpop.xlane.xlu0 %1976
        %1978 = vadd.xlane.f32.xlu0 %v1963
        %v1979 = vpop.xlane.xlu0 %1978
        %1980 = vadd.xlane.f32.xlu0 %v1965
        %v1981 = vpop.xlane.xlu0 %1980
        %1982 = vadd.xlane.f32.xlu0 %v1967
        %v1983 = vpop.xlane.xlu0 %1982
        %1984 = vadd.xlane.f32.xlu0 %v1969
        %v1985 = vpop.xlane.xlu0 %1984
        %1986 = vadd.xlane.f32.xlu0 %v1971
        %v1987 = vpop.xlane.xlu0 %1986
        %v1988 = vrcp.pop %v1973
        %v1989 = vrcp.pop %v1975
        %v1990 = vrcp.pop %v1977
        %v1991 = vrcp.pop %v1979
        %v1992 = vrcp.pop %v1981
        %v1993 = vrcp.pop %v1983
        %v1994 = vrcp.pop %v1985
        %v1995 = vrcp.pop %v1987
        %v1996 = vmul.f32 %v1957, %v1988
        %v1997 = vmul.f32 %v1959, %v1989
        %v1998 = vmul.f32 %v1961, %v1990
        %v1999 = vmul.f32 %v1963, %v1991
        %v2000 = vmul.f32 %v1965, %v1992
        %v2001 = vmul.f32 %v1967, %v1993
        %v2002 = vmul.f32 %v1969, %v1994
        %v2003 = vmul.f32 %v1971, %v1995
        %2020 = vrot.lane.b32.xlu0 %v1282, 96
        %v2021 = vpop.permute.xlu0 %2020
        %2022 = vrot.lane.b32.xlu0 %v1287, 96
        %v2023 = vpop.permute.xlu0 %2022
        %2024 = vrot.lane.b32.xlu0 %v1292, 96
        %v2025 = vpop.permute.xlu0 %2024
        %2026 = vrot.lane.b32.xlu0 %v1297, 96
        %v2027 = vpop.permute.xlu0 %2026
        %2028 = vrot.lane.b32.xlu0 %v1302, 96
        %v2029 = vpop.permute.xlu0 %2028
        %2030 = vrot.lane.b32.xlu0 %v1307, 96
        %v2031 = vpop.permute.xlu0 %2030
        %2032 = vrot.lane.b32.xlu0 %v1312, 96
        %v2033 = vpop.permute.xlu0 %2032
        %2034 = vrot.lane.b32.xlu0 %v1317, 96
        %v2035 = vpop.permute.xlu0 %2034
        %2036 = vrot.lane.b32.xlu0 %v1322, 96
        %v2037 = vpop.permute.xlu0 %2036
        %2038 = vrot.lane.b32.xlu0 %v1327, 96
        %v2039 = vpop.permute.xlu0 %2038
        %2040 = vrot.lane.b32.xlu0 %v1332, 96
        %v2041 = vpop.permute.xlu0 %2040
        %2042 = vrot.lane.b32.xlu0 %v1337, 96
        %v2043 = vpop.permute.xlu0 %2042
        %2044 = vrot.lane.b32.xlu0 %v1342, 96
        %v2045 = vpop.permute.xlu0 %2044
        %2046 = vrot.lane.b32.xlu0 %v1347, 96
        %v2047 = vpop.permute.xlu0 %2046
        %2048 = vrot.lane.b32.xlu0 %v1352, 96
        %v2049 = vpop.permute.xlu0 %2048
        %2050 = vrot.lane.b32.xlu0 %v1357, 96
        %v2051 = vpop.permute.xlu0 %2050
        %2068 = vmatprep.subr.mxu0 0.0
        %2069 = vmatpush1.msra.mxu0 %v2051
        %2070 = vmatprep.subr.mxu0 0.0
        %2071 = vmatpush1.msra.mxu0 %v2049
        %2072 = vmatprep.subr.mxu0 0.0
        %2073 = vmatpush1.msra.mxu0 %v2047
        %2074 = vmatprep.subr.mxu0 0.0
        %2075 = vmatpush1.msra.mxu0 %v2045
        %2076 = vmatprep.subr.mxu0 0.0
        %2077 = vmatpush1.msra.mxu0 %v2043
        %2078 = vmatprep.subr.mxu0 0.0
        %2079 = vmatpush1.msra.mxu0 %v2041
        %2080 = vmatprep.subr.mxu0 0.0
        %2081 = vmatpush1.msra.mxu0 %v2039
        %2082 = vmatprep.subr.mxu0 0.0
        %2083 = vmatpush1.msra.mxu0 %v2037
        %2084 = vmatprep.subr.mxu0 0.0
        %2085 = vmatpush1.msra.mxu0 %v2035
        %2086 = vmatprep.subr.mxu0 0.0
        %2087 = vmatpush1.msra.mxu0 %v2033
        %2088 = vmatprep.subr.mxu0 0.0
        %2089 = vmatpush1.msra.mxu0 %v2031
        %2090 = vmatprep.subr.mxu0 0.0
        %2091 = vmatpush1.msra.mxu0 %v2029
        %2092 = vmatprep.subr.mxu0 0.0
        %2093 = vmatpush1.msra.mxu0 %v2027
        %2094 = vmatprep.subr.mxu0 0.0
        %2095 = vmatpush1.msra.mxu0 %v2025
        %2096 = vmatprep.subr.mxu0 0.0
        %2097 = vmatpush1.msra.mxu0 %v2023
        %2098 = vmatprep.subr.mxu0 0.0
        %2099 = vmatpush1.msra.mxu0 %v2021
        %2100 = vmatprep.subr.mxu0 0.0
        %2101 = vmatpush2.msra.mxu0 0.0
        %2102 = vmatprep.subr.mxu0 0.0
        %2103 = vmatpush2.msra.mxu0 0.0
        %2104 = vmatprep.subr.mxu0 0.0
        %2105 = vmatpush2.msra.mxu0 0.0
        %2106 = vmatprep.subr.mxu0 0.0
        %2107 = vmatpush2.msra.mxu0 0.0
        %2108 = vmatprep.subr.mxu0 0.0
        %2109 = vmatpush2.msra.mxu0 0.0
        %2110 = vmatprep.subr.mxu0 0.0
        %2111 = vmatpush2.msra.mxu0 0.0
        %2112 = vmatprep.subr.mxu0 0.0
        %2113 = vmatpush2.msra.mxu0 0.0
        %2114 = vmatprep.subr.mxu0 0.0
        %2115 = vmatpush2.msra.mxu0 0.0
        %2116 = vmatprep.subr.mxu0 0.0
        %2117 = vmatpush2.msra.mxu0 0.0
        %2118 = vmatprep.subr.mxu0 0.0
        %2119 = vmatpush2.msra.mxu0 0.0
        %2120 = vmatprep.subr.mxu0 0.0
        %2121 = vmatpush2.msra.mxu0 0.0
        %2122 = vmatprep.subr.mxu0 0.0
        %2123 = vmatpush2.msra.mxu0 0.0
        %2124 = vmatprep.subr.mxu0 0.0
        %2125 = vmatpush2.msra.mxu0 0.0
        %2126 = vmatprep.subr.mxu0 0.0
        %2127 = vmatpush2.msra.mxu0 0.0
        %2128 = vmatprep.subr.mxu0 0.0
        %2129 = vmatpush2.msra.mxu0 0.0
        %2130 = vmatprep.subr.mxu0 0.0
        %2131 = vmatpush2.msra.mxu0 0.0
        %2132 = vmatprep.mubr.f32.mxu0 0.0
        %2133 = vmatmul.mubr.f32.gmra.mxu0 %v1996
        %v2134 = vpop.f32.mrf.mxu0
        %v2135 = vadd.f32 0.0, %v2134
        %v2136 = vpop.f32.mrf.mxu0
        %2137 = vmatprep.mubr.f32.mxu0 0.0
        %2138 = vmatmul.mubr.f32.gmra.mxu0 %v1997
        %v2139 = vpop.f32.mrf.mxu0
        %v2140 = vadd.f32 0.0, %v2139
        %v2141 = vpop.f32.mrf.mxu0
        %2142 = vmatprep.mubr.f32.mxu0 0.0
        %2143 = vmatmul.mubr.f32.gmra.mxu0 %v1998
        %v2144 = vpop.f32.mrf.mxu0
        %v2145 = vadd.f32 0.0, %v2144
        %v2146 = vpop.f32.mrf.mxu0
        %2147 = vmatprep.mubr.f32.mxu0 0.0
        %2148 = vmatmul.mubr.f32.gmra.mxu0 %v1999
        %v2149 = vpop.f32.mrf.mxu0
        %v2150 = vadd.f32 0.0, %v2149
        %v2151 = vpop.f32.mrf.mxu0
        %2152 = vmatprep.mubr.f32.mxu0 0.0
        %2153 = vmatmul.mubr.f32.gmra.mxu0 %v2000
        %v2154 = vpop.f32.mrf.mxu0
        %v2155 = vadd.f32 0.0, %v2154
        %v2156 = vpop.f32.mrf.mxu0
        %2157 = vmatprep.mubr.f32.mxu0 0.0
        %2158 = vmatmul.mubr.f32.gmra.mxu0 %v2001
        %v2159 = vpop.f32.mrf.mxu0
        %v2160 = vadd.f32 0.0, %v2159
        %v2161 = vpop.f32.mrf.mxu0
        %2162 = vmatprep.mubr.f32.mxu0 0.0
        %2163 = vmatmul.mubr.f32.gmra.mxu0 %v2002
        %v2164 = vpop.f32.mrf.mxu0
        %v2165 = vadd.f32 0.0, %v2164
        %v2166 = vpop.f32.mrf.mxu0
        %2167 = vmatprep.mubr.f32.mxu0 0.0
        %2168 = vmatmul.mubr.f32.gmra.mxu0 %v2003
        %v2169 = vpop.f32.mrf.mxu0
        %v2170 = vadd.f32 0.0, %v2169
        %v2171 = vpop.f32.mrf.mxu0
        %2172 = vdwg.mxu0
        %2181 = vrot.lane.b32.xlu0 %v2135, 32
        %v2182 = vpop.permute.xlu0 %2181
        %2183 = vrot.lane.b32.xlu0 %v2140, 32
        %v2184 = vpop.permute.xlu0 %2183
        %2185 = vrot.lane.b32.xlu0 %v2145, 32
        %v2186 = vpop.permute.xlu0 %2185
        %2187 = vrot.lane.b32.xlu0 %v2150, 32
        %v2188 = vpop.permute.xlu0 %2187
        %2189 = vrot.lane.b32.xlu0 %v2155, 32
        %v2190 = vpop.permute.xlu0 %2189
        %2191 = vrot.lane.b32.xlu0 %v2160, 32
        %v2192 = vpop.permute.xlu0 %2191
        %2193 = vrot.lane.b32.xlu0 %v2165, 32
        %v2194 = vpop.permute.xlu0 %2193
        %2195 = vrot.lane.b32.xlu0 %v2170, 32
        %v2196 = vpop.permute.xlu0 %2195
        %vm2205 = vcmask 523520
        %2206 = vst.msk [vmem:[#allocation2] sm:$0xff] %vm2205, %v2182
        %2207 = vst.msk [vmem:[#allocation2 + $0x8] sm:$0xff] %vm2205, %v2184
        %2208 = vst.msk [vmem:[#allocation2 + $0x10] sm:$0xff] %vm2205, %v2186
        %2209 = vst.msk [vmem:[#allocation2 + $0x18] sm:$0xff] %vm2205, %v2188
        %2210 = vst.msk [vmem:[#allocation2 + $0x20] sm:$0xff] %vm2205, %v2190
        %2211 = vst.msk [vmem:[#allocation2 + $0x28] sm:$0xff] %vm2205, %v2192
        %2212 = vst.msk [vmem:[#allocation2 + $0x30] sm:$0xff] %vm2205, %v2194
        %2213 = vst.msk [vmem:[#allocation2 + $0x38] sm:$0xff] %vm2205, %v2196
        %2214 = vrot.lane.b32.xlu0 %v986, 64
        %v2215 = vpop.permute.xlu0 %2214
        %2216 = vrot.lane.b32.xlu0 %v991, 64
        %v2217 = vpop.permute.xlu0 %2216
        %2218 = vrot.lane.b32.xlu0 %v996, 64
        %v2219 = vpop.permute.xlu0 %2218
        %2220 = vrot.lane.b32.xlu0 %v1001, 64
        %v2221 = vpop.permute.xlu0 %2220
        %2222 = vrot.lane.b32.xlu0 %v1006, 64
        %v2223 = vpop.permute.xlu0 %2222
        %2224 = vrot.lane.b32.xlu0 %v1011, 64
        %v2225 = vpop.permute.xlu0 %2224
        %2226 = vrot.lane.b32.xlu0 %v1016, 64
        %v2227 = vpop.permute.xlu0 %2226
        %2228 = vrot.lane.b32.xlu0 %v1021, 64
        %v2229 = vpop.permute.xlu0 %2228
        %2230 = vrot.lane.b32.xlu0 %v1114, 64
        %v2231 = vpop.permute.xlu0 %2230
        %2232 = vrot.lane.b32.xlu0 %v1119, 64
        %v2233 = vpop.permute.xlu0 %2232
        %2234 = vrot.lane.b32.xlu0 %v1124, 64
        %v2235 = vpop.permute.xlu0 %2234
        %2236 = vrot.lane.b32.xlu0 %v1129, 64
        %v2237 = vpop.permute.xlu0 %2236
        %2238 = vrot.lane.b32.xlu0 %v1134, 64
        %v2239 = vpop.permute.xlu0 %2238
        %2240 = vrot.lane.b32.xlu0 %v1139, 64
        %v2241 = vpop.permute.xlu0 %2240
        %2242 = vrot.lane.b32.xlu0 %v1144, 64
        %v2243 = vpop.permute.xlu0 %2242
        %2244 = vrot.lane.b32.xlu0 %v1149, 64
        %v2245 = vpop.permute.xlu0 %2244
        %2246 = vrot.lane.b32.xlu0 %v1154, 64
        %v2247 = vpop.permute.xlu0 %2246
        %2248 = vrot.lane.b32.xlu0 %v1159, 64
        %v2249 = vpop.permute.xlu0 %2248
        %2250 = vrot.lane.b32.xlu0 %v1164, 64
        %v2251 = vpop.permute.xlu0 %2250
        %2252 = vrot.lane.b32.xlu0 %v1169, 64
        %v2253 = vpop.permute.xlu0 %2252
        %2254 = vrot.lane.b32.xlu0 %v1174, 64
        %v2255 = vpop.permute.xlu0 %2254
        %2256 = vrot.lane.b32.xlu0 %v1179, 64
        %v2257 = vpop.permute.xlu0 %2256
        %2258 = vrot.lane.b32.xlu0 %v1184, 64
        %v2259 = vpop.permute.xlu0 %2258
        %2260 = vrot.lane.b32.xlu0 %v1189, 64
        %v2261 = vpop.permute.xlu0 %2260
        %v2262 = vsel %vm1368, %v2215, 0
        %v2264 = vsel %vm1368, %v2217, 0
        %v2266 = vsel %vm1368, %v2219, 0
        %v2268 = vsel %vm1368, %v2221, 0
        %v2270 = vsel %vm1368, %v2223, 0
        %v2272 = vsel %vm1368, %v2225, 0
        %v2274 = vsel %vm1368, %v2227, 0
        %v2276 = vsel %vm1368, %v2229, 0
        %v2278 = vsel %vm1368, %v2231, 0
        %v2280 = vsel %vm1368, %v2233, 0
        %v2282 = vsel %vm1368, %v2235, 0
        %v2284 = vsel %vm1368, %v2237, 0
        %v2286 = vsel %vm1368, %v2239, 0
        %v2288 = vsel %vm1368, %v2241, 0
        %v2290 = vsel %vm1368, %v2243, 0
        %v2292 = vsel %vm1368, %v2245, 0
        %v2294 = vsel %vm1368, %v2247, 0
        %v2296 = vsel %vm1368, %v2249, 0
        %v2298 = vsel %vm1368, %v2251, 0
        %v2300 = vsel %vm1368, %v2253, 0
        %v2302 = vsel %vm1368, %v2255, 0
        %v2304 = vsel %vm1368, %v2257, 0
        %v2306 = vsel %vm1368, %v2259, 0
        %v2308 = vsel %vm1368, %v2261, 0
        %2310 = vmatprep.subr.mxu0 0.0
        %2311 = vmatpush1.xpose.msra.mxu0 %v2308
        %2312 = vmatprep.subr.mxu0 0.0
        %2313 = vmatpush1.xpose.msra.mxu0 %v2306
        %2314 = vmatprep.subr.mxu0 0.0
        %2315 = vmatpush1.xpose.msra.mxu0 %v2304
        %2316 = vmatprep.subr.mxu0 0.0
        %2317 = vmatpush1.xpose.msra.mxu0 %v2302
        %2318 = vmatprep.subr.mxu0 0.0
        %2319 = vmatpush1.xpose.msra.mxu0 %v2300
        %2320 = vmatprep.subr.mxu0 0.0
        %2321 = vmatpush1.xpose.msra.mxu0 %v2298
        %2322 = vmatprep.subr.mxu0 0.0
        %2323 = vmatpush1.xpose.msra.mxu0 %v2296
        %2324 = vmatprep.subr.mxu0 0.0
        %2325 = vmatpush1.xpose.msra.mxu0 %v2294
        %2326 = vmatprep.subr.mxu0 0.0
        %2327 = vmatpush1.xpose.msra.mxu0 %v2292
        %2328 = vmatprep.subr.mxu0 0.0
        %2329 = vmatpush1.xpose.msra.mxu0 %v2290
        %2330 = vmatprep.subr.mxu0 0.0
        %2331 = vmatpush1.xpose.msra.mxu0 %v2288
        %2332 = vmatprep.subr.mxu0 0.0
        %2333 = vmatpush1.xpose.msra.mxu0 %v2286
        %2334 = vmatprep.subr.mxu0 0.0
        %2335 = vmatpush1.xpose.msra.mxu0 %v2284
        %2336 = vmatprep.subr.mxu0 0.0
        %2337 = vmatpush1.xpose.msra.mxu0 %v2282
        %2338 = vmatprep.subr.mxu0 0.0
        %2339 = vmatpush1.xpose.msra.mxu0 %v2280
        %2340 = vmatprep.subr.mxu0 0.0
        %2341 = vmatpush1.xpose.msra.mxu0 %v2278
        %2342 = vmatprep.subr.mxu0 0.0
        %2343 = vmatpush2.xpose.msra.mxu0 0.0
        %2344 = vmatprep.subr.mxu0 0.0
        %2345 = vmatpush2.xpose.msra.mxu0 0.0
        %2346 = vmatprep.subr.mxu0 0.0
        %2347 = vmatpush2.xpose.msra.mxu0 0.0
        %2348 = vmatprep.subr.mxu0 0.0
        %2349 = vmatpush2.xpose.msra.mxu0 0.0
        %2350 = vmatprep.subr.mxu0 0.0
        %2351 = vmatpush2.xpose.msra.mxu0 0.0
        %2352 = vmatprep.subr.mxu0 0.0
        %2353 = vmatpush2.xpose.msra.mxu0 0.0
        %2354 = vmatprep.subr.mxu0 0.0
        %2355 = vmatpush2.xpose.msra.mxu0 0.0
        %2356 = vmatprep.subr.mxu0 0.0
        %2357 = vmatpush2.xpose.msra.mxu0 0.0
        %2358 = vmatprep.subr.mxu0 0.0
        %2359 = vmatpush2.xpose.msra.mxu0 0.0
        %2360 = vmatprep.subr.mxu0 0.0
        %2361 = vmatpush2.xpose.msra.mxu0 0.0
        %2362 = vmatprep.subr.mxu0 0.0
        %2363 = vmatpush2.xpose.msra.mxu0 0.0
        %2364 = vmatprep.subr.mxu0 0.0
        %2365 = vmatpush2.xpose.msra.mxu0 0.0
        %2366 = vmatprep.subr.mxu0 0.0
        %2367 = vmatpush2.xpose.msra.mxu0 0.0
        %2368 = vmatprep.subr.mxu0 0.0
        %2369 = vmatpush2.xpose.msra.mxu0 0.0
        %2370 = vmatprep.subr.mxu0 0.0
        %2371 = vmatpush2.xpose.msra.mxu0 0.0
        %2372 = vmatprep.subr.mxu0 0.0
        %2373 = vmatpush2.xpose.msra.mxu0 0.0
        %2374 = vmatprep.mubr.f32.mxu0 0.0
        %2375 = vmatmul.mubr.f32.gmra.mxu0 %v2262
        %v2376 = vpop.f32.mrf.mxu0
        %v2377 = vadd.f32 %v1366, %v2376
        %v2378 = vpop.f32.mrf.mxu0
        %2379 = vmatprep.mubr.f32.mxu0 0.0
        %2380 = vmatmul.mubr.f32.gmra.mxu0 %v2264
        %v2381 = vpop.f32.mrf.mxu0
        %v2382 = vadd.f32 %v1366, %v2381
        %v2383 = vpop.f32.mrf.mxu0
        %2384 = vmatprep.mubr.f32.mxu0 0.0
        %2385 = vmatmul.mubr.f32.gmra.mxu0 %v2266
        %v2386 = vpop.f32.mrf.mxu0
        %v2387 = vadd.f32 %v1366, %v2386
        %v2388 = vpop.f32.mrf.mxu0
        %2389 = vmatprep.mubr.f32.mxu0 0.0
        %2390 = vmatmul.mubr.f32.gmra.mxu0 %v2268
        %v2391 = vpop.f32.mrf.mxu0
        %v2392 = vadd.f32 %v1366, %v2391
        %v2393 = vpop.f32.mrf.mxu0
        %2394 = vmatprep.mubr.f32.mxu0 0.0
        %2395 = vmatmul.mubr.f32.gmra.mxu0 %v2270
        %v2396 = vpop.f32.mrf.mxu0
        %v2397 = vadd.f32 %v1366, %v2396
        %v2398 = vpop.f32.mrf.mxu0
        %2399 = vmatprep.mubr.f32.mxu0 0.0
        %2400 = vmatmul.mubr.f32.gmra.mxu0 %v2272
        %v2401 = vpop.f32.mrf.mxu0
        %v2402 = vadd.f32 %v1366, %v2401
        %v2403 = vpop.f32.mrf.mxu0
        %2404 = vmatprep.mubr.f32.mxu0 0.0
        %2405 = vmatmul.mubr.f32.gmra.mxu0 %v2274
        %v2406 = vpop.f32.mrf.mxu0
        %v2407 = vadd.f32 %v1366, %v2406
        %v2408 = vpop.f32.mrf.mxu0
        %2409 = vmatprep.mubr.f32.mxu0 0.0
        %2410 = vmatmul.mubr.f32.gmra.mxu0 %v2276
        %v2411 = vpop.f32.mrf.mxu0
        %v2412 = vadd.f32 %v1366, %v2411
        %v2413 = vpop.f32.mrf.mxu0
        %2414 = vdwg.mxu0
        %2415 = vmax.xlane.f32.xlu0 %v2377
        %v2416 = vpop.xlane.xlu0 %2415
        %2417 = vmax.xlane.f32.xlu0 %v2382
        %v2418 = vpop.xlane.xlu0 %2417
        %2419 = vmax.xlane.f32.xlu0 %v2387
        %v2420 = vpop.xlane.xlu0 %2419
        %2421 = vmax.xlane.f32.xlu0 %v2392
        %v2422 = vpop.xlane.xlu0 %2421
        %2423 = vmax.xlane.f32.xlu0 %v2397
        %v2424 = vpop.xlane.xlu0 %2423
        %2425 = vmax.xlane.f32.xlu0 %v2402
        %v2426 = vpop.xlane.xlu0 %2425
        %2427 = vmax.xlane.f32.xlu0 %v2407
        %v2428 = vpop.xlane.xlu0 %2427
        %2429 = vmax.xlane.f32.xlu0 %v2412
        %v2430 = vpop.xlane.xlu0 %2429
        %v2431 = vsub.f32 %v2377, %v2416
        %v2432 = vsub.f32 %v2382, %v2418
        %v2433 = vsub.f32 %v2387, %v2420
        %v2434 = vsub.f32 %v2392, %v2422
        %v2435 = vsub.f32 %v2397, %v2424
        %v2436 = vsub.f32 %v2402, %v2426
        %v2437 = vsub.f32 %v2407, %v2428
        %v2438 = vsub.f32 %v2412, %v2430
        %v2439 = vmul.f32 %v2431, 1.442695
        %v2440 = vpow.pop %v2439
        %v2441 = vmul.f32 %v2432, 1.442695
        %v2442 = vpow.pop %v2441
        %v2443 = vmul.f32 %v2433, 1.442695
        %v2444 = vpow.pop %v2443
        %v2445 = vmul.f32 %v2434, 1.442695
        %v2446 = vpow.pop %v2445
        %v2447 = vmul.f32 %v2435, 1.442695
        %v2448 = vpow.pop %v2447
        %v2449 = vmul.f32 %v2436, 1.442695
        %v2450 = vpow.pop %v2449
        %v2451 = vmul.f32 %v2437, 1.442695
        %v2452 = vpow.pop %v2451
        %v2453 = vmul.f32 %v2438, 1.442695
        %v2454 = vpow.pop %v2453
        %2455 = vadd.xlane.f32.xlu0 %v2440
        %v2456 = vpop.xlane.xlu0 %2455
        %2457 = vadd.xlane.f32.xlu0 %v2442
        %v2458 = vpop.xlane.xlu0 %2457
        %2459 = vadd.xlane.f32.xlu0 %v2444
        %v2460 = vpop.xlane.xlu0 %2459
        %2461 = vadd.xlane.f32.xlu0 %v2446
        %v2462 = vpop.xlane.xlu0 %2461
        %2463 = vadd.xlane.f32.xlu0 %v2448
        %v2464 = vpop.xlane.xlu0 %2463
        %2465 = vadd.xlane.f32.xlu0 %v2450
        %v2466 = vpop.xlane.xlu0 %2465
        %2467 = vadd.xlane.f32.xlu0 %v2452
        %v2468 = vpop.xlane.xlu0 %2467
        %2469 = vadd.xlane.f32.xlu0 %v2454
        %v2470 = vpop.xlane.xlu0 %2469
        %v2471 = vrcp.pop %v2456
        %v2472 = vrcp.pop %v2458
        %v2473 = vrcp.pop %v2460
        %v2474 = vrcp.pop %v2462
        %v2475 = vrcp.pop %v2464
        %v2476 = vrcp.pop %v2466
        %v2477 = vrcp.pop %v2468
        %v2478 = vrcp.pop %v2470
        %v2479 = vmul.f32 %v2440, %v2471
        %v2480 = vmul.f32 %v2442, %v2472
        %v2481 = vmul.f32 %v2444, %v2473
        %v2482 = vmul.f32 %v2446, %v2474
        %v2483 = vmul.f32 %v2448, %v2475
        %v2484 = vmul.f32 %v2450, %v2476
        %v2485 = vmul.f32 %v2452, %v2477
        %v2486 = vmul.f32 %v2454, %v2478
        %2487 = vrot.lane.b32.xlu0 %v1282, 64
        %v2488 = vpop.permute.xlu0 %2487
        %2489 = vrot.lane.b32.xlu0 %v1287, 64
        %v2490 = vpop.permute.xlu0 %2489
        %2491 = vrot.lane.b32.xlu0 %v1292, 64
        %v2492 = vpop.permute.xlu0 %2491
        %2493 = vrot.lane.b32.xlu0 %v1297, 64
        %v2494 = vpop.permute.xlu0 %2493
        %2495 = vrot.lane.b32.xlu0 %v1302, 64
        %v2496 = vpop.permute.xlu0 %2495
        %2497 = vrot.lane.b32.xlu0 %v1307, 64
        %v2498 = vpop.permute.xlu0 %2497
        %2499 = vrot.lane.b32.xlu0 %v1312, 64
        %v2500 = vpop.permute.xlu0 %2499
        %2501 = vrot.lane.b32.xlu0 %v1317, 64
        %v2502 = vpop.permute.xlu0 %2501
        %2503 = vrot.lane.b32.xlu0 %v1322, 64
        %v2504 = vpop.permute.xlu0 %2503
        %2505 = vrot.lane.b32.xlu0 %v1327, 64
        %v2506 = vpop.permute.xlu0 %2505
        %2507 = vrot.lane.b32.xlu0 %v1332, 64
        %v2508 = vpop.permute.xlu0 %2507
        %2509 = vrot.lane.b32.xlu0 %v1337, 64
        %v2510 = vpop.permute.xlu0 %2509
        %2511 = vrot.lane.b32.xlu0 %v1342, 64
        %v2512 = vpop.permute.xlu0 %2511
        %2513 = vrot.lane.b32.xlu0 %v1347, 64
        %v2514 = vpop.permute.xlu0 %2513
        %2515 = vrot.lane.b32.xlu0 %v1352, 64
        %v2516 = vpop.permute.xlu0 %2515
        %2517 = vrot.lane.b32.xlu0 %v1357, 64
        %v2518 = vpop.permute.xlu0 %2517
        %2535 = vmatprep.subr.mxu0 0.0
        %2536 = vmatpush1.msra.mxu0 %v2518
        %2537 = vmatprep.subr.mxu0 0.0
        %2538 = vmatpush1.msra.mxu0 %v2516
        %2539 = vmatprep.subr.mxu0 0.0
        %2540 = vmatpush1.msra.mxu0 %v2514
        %2541 = vmatprep.subr.mxu0 0.0
        %2542 = vmatpush1.msra.mxu0 %v2512
        %2543 = vmatprep.subr.mxu0 0.0
        %2544 = vmatpush1.msra.mxu0 %v2510
        %2545 = vmatprep.subr.mxu0 0.0
        %2546 = vmatpush1.msra.mxu0 %v2508
        %2547 = vmatprep.subr.mxu0 0.0
        %2548 = vmatpush1.msra.mxu0 %v2506
        %2549 = vmatprep.subr.mxu0 0.0
        %2550 = vmatpush1.msra.mxu0 %v2504
        %2551 = vmatprep.subr.mxu0 0.0
        %2552 = vmatpush1.msra.mxu0 %v2502
        %2553 = vmatprep.subr.mxu0 0.0
        %2554 = vmatpush1.msra.mxu0 %v2500
        %2555 = vmatprep.subr.mxu0 0.0
        %2556 = vmatpush1.msra.mxu0 %v2498
        %2557 = vmatprep.subr.mxu0 0.0
        %2558 = vmatpush1.msra.mxu0 %v2496
        %2559 = vmatprep.subr.mxu0 0.0
        %2560 = vmatpush1.msra.mxu0 %v2494
        %2561 = vmatprep.subr.mxu0 0.0
        %2562 = vmatpush1.msra.mxu0 %v2492
        %2563 = vmatprep.subr.mxu0 0.0
        %2564 = vmatpush1.msra.mxu0 %v2490
        %2565 = vmatprep.subr.mxu0 0.0
        %2566 = vmatpush1.msra.mxu0 %v2488
        %2567 = vmatprep.subr.mxu0 0.0
        %2568 = vmatpush2.msra.mxu0 0.0
        %2569 = vmatprep.subr.mxu0 0.0
        %2570 = vmatpush2.msra.mxu0 0.0
        %2571 = vmatprep.subr.mxu0 0.0
        %2572 = vmatpush2.msra.mxu0 0.0
        %2573 = vmatprep.subr.mxu0 0.0
        %2574 = vmatpush2.msra.mxu0 0.0
        %2575 = vmatprep.subr.mxu0 0.0
        %2576 = vmatpush2.msra.mxu0 0.0
        %2577 = vmatprep.subr.mxu0 0.0
        %2578 = vmatpush2.msra.mxu0 0.0
        %2579 = vmatprep.subr.mxu0 0.0
        %2580 = vmatpush2.msra.mxu0 0.0
        %2581 = vmatprep.subr.mxu0 0.0
        %2582 = vmatpush2.msra.mxu0 0.0
        %2583 = vmatprep.subr.mxu0 0.0
        %2584 = vmatpush2.msra.mxu0 0.0
        %2585 = vmatprep.subr.mxu0 0.0
        %2586 = vmatpush2.msra.mxu0 0.0
        %2587 = vmatprep.subr.mxu0 0.0
        %2588 = vmatpush2.msra.mxu0 0.0
        %2589 = vmatprep.subr.mxu0 0.0
        %2590 = vmatpush2.msra.mxu0 0.0
        %2591 = vmatprep.subr.mxu0 0.0
        %2592 = vmatpush2.msra.mxu0 0.0
        %2593 = vmatprep.subr.mxu0 0.0
        %2594 = vmatpush2.msra.mxu0 0.0
        %2595 = vmatprep.subr.mxu0 0.0
        %2596 = vmatpush2.msra.mxu0 0.0
        %2597 = vmatprep.subr.mxu0 0.0
        %2598 = vmatpush2.msra.mxu0 0.0
        %2599 = vmatprep.mubr.f32.mxu0 0.0
        %2600 = vmatmul.mubr.f32.gmra.mxu0 %v2479
        %v2601 = vpop.f32.mrf.mxu0
        %v2602 = vadd.f32 0.0, %v2601
        %v2603 = vpop.f32.mrf.mxu0
        %2604 = vmatprep.mubr.f32.mxu0 0.0
        %2605 = vmatmul.mubr.f32.gmra.mxu0 %v2480
        %v2606 = vpop.f32.mrf.mxu0
        %v2607 = vadd.f32 0.0, %v2606
        %v2608 = vpop.f32.mrf.mxu0
        %2609 = vmatprep.mubr.f32.mxu0 0.0
        %2610 = vmatmul.mubr.f32.gmra.mxu0 %v2481
        %v2611 = vpop.f32.mrf.mxu0
        %v2612 = vadd.f32 0.0, %v2611
        %v2613 = vpop.f32.mrf.mxu0
        %2614 = vmatprep.mubr.f32.mxu0 0.0
        %2615 = vmatmul.mubr.f32.gmra.mxu0 %v2482
        %v2616 = vpop.f32.mrf.mxu0
        %v2617 = vadd.f32 0.0, %v2616
        %v2618 = vpop.f32.mrf.mxu0
        %2619 = vmatprep.mubr.f32.mxu0 0.0
        %2620 = vmatmul.mubr.f32.gmra.mxu0 %v2483
        %v2621 = vpop.f32.mrf.mxu0
        %v2622 = vadd.f32 0.0, %v2621
        %v2623 = vpop.f32.mrf.mxu0
        %2624 = vmatprep.mubr.f32.mxu0 0.0
        %2625 = vmatmul.mubr.f32.gmra.mxu0 %v2484
        %v2626 = vpop.f32.mrf.mxu0
        %v2627 = vadd.f32 0.0, %v2626
        %v2628 = vpop.f32.mrf.mxu0
        %2629 = vmatprep.mubr.f32.mxu0 0.0
        %2630 = vmatmul.mubr.f32.gmra.mxu0 %v2485
        %v2631 = vpop.f32.mrf.mxu0
        %v2632 = vadd.f32 0.0, %v2631
        %v2633 = vpop.f32.mrf.mxu0
        %2634 = vmatprep.mubr.f32.mxu0 0.0
        %2635 = vmatmul.mubr.f32.gmra.mxu0 %v2486
        %v2636 = vpop.f32.mrf.mxu0
        %v2637 = vadd.f32 0.0, %v2636
        %v2638 = vpop.f32.mrf.mxu0
        %2639 = vdwg.mxu0
        %2648 = vrot.lane.b32.xlu0 %v2602, 64
        %v2649 = vpop.permute.xlu0 %2648
        %2650 = vrot.lane.b32.xlu0 %v2607, 64
        %v2651 = vpop.permute.xlu0 %2650
        %2652 = vrot.lane.b32.xlu0 %v2612, 64
        %v2653 = vpop.permute.xlu0 %2652
        %2654 = vrot.lane.b32.xlu0 %v2617, 64
        %v2655 = vpop.permute.xlu0 %2654
        %2656 = vrot.lane.b32.xlu0 %v2622, 64
        %v2657 = vpop.permute.xlu0 %2656
        %2658 = vrot.lane.b32.xlu0 %v2627, 64
        %v2659 = vpop.permute.xlu0 %2658
        %2660 = vrot.lane.b32.xlu0 %v2632, 64
        %v2661 = vpop.permute.xlu0 %2660
        %2662 = vrot.lane.b32.xlu0 %v2637, 64
        %v2663 = vpop.permute.xlu0 %2662
        %vm2672 = vcmask 785920
        %2673 = vst.msk [vmem:[#allocation2] sm:$0xff] %vm2672, %v2649
        %2674 = vst.msk [vmem:[#allocation2 + $0x8] sm:$0xff] %vm2672, %v2651
        %2675 = vst.msk [vmem:[#allocation2 + $0x10] sm:$0xff] %vm2672, %v2653
        %2676 = vst.msk [vmem:[#allocation2 + $0x18] sm:$0xff] %vm2672, %v2655
        %2677 = vst.msk [vmem:[#allocation2 + $0x20] sm:$0xff] %vm2672, %v2657
        %2678 = vst.msk [vmem:[#allocation2 + $0x28] sm:$0xff] %vm2672, %v2659
        %2679 = vst.msk [vmem:[#allocation2 + $0x30] sm:$0xff] %vm2672, %v2661
        %2680 = vst.msk [vmem:[#allocation2 + $0x38] sm:$0xff] %vm2672, %v2663
        %2681 = vrot.lane.b32.xlu0 %v986, 32
        %v2682 = vpop.permute.xlu0 %2681
        %2683 = vrot.lane.b32.xlu0 %v991, 32
        %v2684 = vpop.permute.xlu0 %2683
        %2685 = vrot.lane.b32.xlu0 %v996, 32
        %v2686 = vpop.permute.xlu0 %2685
        %2687 = vrot.lane.b32.xlu0 %v1001, 32
        %v2688 = vpop.permute.xlu0 %2687
        %2689 = vrot.lane.b32.xlu0 %v1006, 32
        %v2690 = vpop.permute.xlu0 %2689
        %2691 = vrot.lane.b32.xlu0 %v1011, 32
        %v2692 = vpop.permute.xlu0 %2691
        %2693 = vrot.lane.b32.xlu0 %v1016, 32
        %v2694 = vpop.permute.xlu0 %2693
        %2695 = vrot.lane.b32.xlu0 %v1021, 32
        %v2696 = vpop.permute.xlu0 %2695
        %2697 = vrot.lane.b32.xlu0 %v1114, 32
        %v2698 = vpop.permute.xlu0 %2697
        %2699 = vrot.lane.b32.xlu0 %v1119, 32
        %v2700 = vpop.permute.xlu0 %2699
        %2701 = vrot.lane.b32.xlu0 %v1124, 32
        %v2702 = vpop.permute.xlu0 %2701
        %2703 = vrot.lane.b32.xlu0 %v1129, 32
        %v2704 = vpop.permute.xlu0 %2703
        %2705 = vrot.lane.b32.xlu0 %v1134, 32
        %v2706 = vpop.permute.xlu0 %2705
        %2707 = vrot.lane.b32.xlu0 %v1139, 32
        %v2708 = vpop.permute.xlu0 %2707
        %2709 = vrot.lane.b32.xlu0 %v1144, 32
        %v2710 = vpop.permute.xlu0 %2709
        %2711 = vrot.lane.b32.xlu0 %v1149, 32
        %v2712 = vpop.permute.xlu0 %2711
        %2713 = vrot.lane.b32.xlu0 %v1154, 32
        %v2714 = vpop.permute.xlu0 %2713
        %2715 = vrot.lane.b32.xlu0 %v1159, 32
        %v2716 = vpop.permute.xlu0 %2715
        %2717 = vrot.lane.b32.xlu0 %v1164, 32
        %v2718 = vpop.permute.xlu0 %2717
        %2719 = vrot.lane.b32.xlu0 %v1169, 32
        %v2720 = vpop.permute.xlu0 %2719
        %2721 = vrot.lane.b32.xlu0 %v1174, 32
        %v2722 = vpop.permute.xlu0 %2721
        %2723 = vrot.lane.b32.xlu0 %v1179, 32
        %v2724 = vpop.permute.xlu0 %2723
        %2725 = vrot.lane.b32.xlu0 %v1184, 32
        %v2726 = vpop.permute.xlu0 %2725
        %2727 = vrot.lane.b32.xlu0 %v1189, 32
        %v2728 = vpop.permute.xlu0 %2727
        %v2729 = vsel %vm1368, %v2682, 0
        %v2731 = vsel %vm1368, %v2684, 0
        %v2733 = vsel %vm1368, %v2686, 0
        %v2735 = vsel %vm1368, %v2688, 0
        %v2737 = vsel %vm1368, %v2690, 0
        %v2739 = vsel %vm1368, %v2692, 0
        %v2741 = vsel %vm1368, %v2694, 0
        %v2743 = vsel %vm1368, %v2696, 0
        %v2745 = vsel %vm1368, %v2698, 0
        %v2747 = vsel %vm1368, %v2700, 0
        %v2749 = vsel %vm1368, %v2702, 0
        %v2751 = vsel %vm1368, %v2704, 0
        %v2753 = vsel %vm1368, %v2706, 0
        %v2755 = vsel %vm1368, %v2708, 0
        %v2757 = vsel %vm1368, %v2710, 0
        %v2759 = vsel %vm1368, %v2712, 0
        %v2761 = vsel %vm1368, %v2714, 0
        %v2763 = vsel %vm1368, %v2716, 0
        %v2765 = vsel %vm1368, %v2718, 0
        %v2767 = vsel %vm1368, %v2720, 0
        %v2769 = vsel %vm1368, %v2722, 0
        %v2771 = vsel %vm1368, %v2724, 0
        %v2773 = vsel %vm1368, %v2726, 0
        %v2775 = vsel %vm1368, %v2728, 0
        %2777 = vmatprep.subr.mxu0 0.0
        %2778 = vmatpush1.xpose.msra.mxu0 %v2775
        %2779 = vmatprep.subr.mxu0 0.0
        %2780 = vmatpush1.xpose.msra.mxu0 %v2773
        %2781 = vmatprep.subr.mxu0 0.0
        %2782 = vmatpush1.xpose.msra.mxu0 %v2771
        %2783 = vmatprep.subr.mxu0 0.0
        %2784 = vmatpush1.xpose.msra.mxu0 %v2769
        %2785 = vmatprep.subr.mxu0 0.0
        %2786 = vmatpush1.xpose.msra.mxu0 %v2767
        %2787 = vmatprep.subr.mxu0 0.0
        %2788 = vmatpush1.xpose.msra.mxu0 %v2765
        %2789 = vmatprep.subr.mxu0 0.0
        %2790 = vmatpush1.xpose.msra.mxu0 %v2763
        %2791 = vmatprep.subr.mxu0 0.0
        %2792 = vmatpush1.xpose.msra.mxu0 %v2761
        %2793 = vmatprep.subr.mxu0 0.0
        %2794 = vmatpush1.xpose.msra.mxu0 %v2759
        %2795 = vmatprep.subr.mxu0 0.0
        %2796 = vmatpush1.xpose.msra.mxu0 %v2757
        %2797 = vmatprep.subr.mxu0 0.0
        %2798 = vmatpush1.xpose.msra.mxu0 %v2755
        %2799 = vmatprep.subr.mxu0 0.0
        %2800 = vmatpush1.xpose.msra.mxu0 %v2753
        %2801 = vmatprep.subr.mxu0 0.0
        %2802 = vmatpush1.xpose.msra.mxu0 %v2751
        %2803 = vmatprep.subr.mxu0 0.0
        %2804 = vmatpush1.xpose.msra.mxu0 %v2749
        %2805 = vmatprep.subr.mxu0 0.0
        %2806 = vmatpush1.xpose.msra.mxu0 %v2747
        %2807 = vmatprep.subr.mxu0 0.0
        %2808 = vmatpush1.xpose.msra.mxu0 %v2745
        %2809 = vmatprep.subr.mxu0 0.0
        %2810 = vmatpush2.xpose.msra.mxu0 0.0
        %2811 = vmatprep.subr.mxu0 0.0
        %2812 = vmatpush2.xpose.msra.mxu0 0.0
        %2813 = vmatprep.subr.mxu0 0.0
        %2814 = vmatpush2.xpose.msra.mxu0 0.0
        %2815 = vmatprep.subr.mxu0 0.0
        %2816 = vmatpush2.xpose.msra.mxu0 0.0
        %2817 = vmatprep.subr.mxu0 0.0
        %2818 = vmatpush2.xpose.msra.mxu0 0.0
        %2819 = vmatprep.subr.mxu0 0.0
        %2820 = vmatpush2.xpose.msra.mxu0 0.0
        %2821 = vmatprep.subr.mxu0 0.0
        %2822 = vmatpush2.xpose.msra.mxu0 0.0
        %2823 = vmatprep.subr.mxu0 0.0
        %2824 = vmatpush2.xpose.msra.mxu0 0.0
        %2825 = vmatprep.subr.mxu0 0.0
        %2826 = vmatpush2.xpose.msra.mxu0 0.0
        %2827 = vmatprep.subr.mxu0 0.0
        %2828 = vmatpush2.xpose.msra.mxu0 0.0
        %2829 = vmatprep.subr.mxu0 0.0
        %2830 = vmatpush2.xpose.msra.mxu0 0.0
        %2831 = vmatprep.subr.mxu0 0.0
        %2832 = vmatpush2.xpose.msra.mxu0 0.0
        %2833 = vmatprep.subr.mxu0 0.0
        %2834 = vmatpush2.xpose.msra.mxu0 0.0
        %2835 = vmatprep.subr.mxu0 0.0
        %2836 = vmatpush2.xpose.msra.mxu0 0.0
        %2837 = vmatprep.subr.mxu0 0.0
        %2838 = vmatpush2.xpose.msra.mxu0 0.0
        %2839 = vmatprep.subr.mxu0 0.0
        %2840 = vmatpush2.xpose.msra.mxu0 0.0
        %2841 = vmatprep.mubr.f32.mxu0 0.0
        %2842 = vmatmul.mubr.f32.gmra.mxu0 %v2729
        %v2843 = vpop.f32.mrf.mxu0
        %v2844 = vadd.f32 %v1366, %v2843
        %v2845 = vpop.f32.mrf.mxu0
        %2846 = vmatprep.mubr.f32.mxu0 0.0
        %2847 = vmatmul.mubr.f32.gmra.mxu0 %v2731
        %v2848 = vpop.f32.mrf.mxu0
        %v2849 = vadd.f32 %v1366, %v2848
        %v2850 = vpop.f32.mrf.mxu0
        %2851 = vmatprep.mubr.f32.mxu0 0.0
        %2852 = vmatmul.mubr.f32.gmra.mxu0 %v2733
        %v2853 = vpop.f32.mrf.mxu0
        %v2854 = vadd.f32 %v1366, %v2853
        %v2855 = vpop.f32.mrf.mxu0
        %2856 = vmatprep.mubr.f32.mxu0 0.0
        %2857 = vmatmul.mubr.f32.gmra.mxu0 %v2735
        %v2858 = vpop.f32.mrf.mxu0
        %v2859 = vadd.f32 %v1366, %v2858
        %v2860 = vpop.f32.mrf.mxu0
        %2861 = vmatprep.mubr.f32.mxu0 0.0
        %2862 = vmatmul.mubr.f32.gmra.mxu0 %v2737
        %v2863 = vpop.f32.mrf.mxu0
        %v2864 = vadd.f32 %v1366, %v2863
        %v2865 = vpop.f32.mrf.mxu0
        %2866 = vmatprep.mubr.f32.mxu0 0.0
        %2867 = vmatmul.mubr.f32.gmra.mxu0 %v2739
        %v2868 = vpop.f32.mrf.mxu0
        %v2869 = vadd.f32 %v1366, %v2868
        %v2870 = vpop.f32.mrf.mxu0
        %2871 = vmatprep.mubr.f32.mxu0 0.0
        %2872 = vmatmul.mubr.f32.gmra.mxu0 %v2741
        %v2873 = vpop.f32.mrf.mxu0
        %v2874 = vadd.f32 %v1366, %v2873
        %v2875 = vpop.f32.mrf.mxu0
        %2876 = vmatprep.mubr.f32.mxu0 0.0
        %2877 = vmatmul.mubr.f32.gmra.mxu0 %v2743
        %v2878 = vpop.f32.mrf.mxu0
        %v2879 = vadd.f32 %v1366, %v2878
        %v2880 = vpop.f32.mrf.mxu0
        %2881 = vdwg.mxu0
        %2882 = vmax.xlane.f32.xlu0 %v2844
        %v2883 = vpop.xlane.xlu0 %2882
        %2884 = vmax.xlane.f32.xlu0 %v2849
        %v2885 = vpop.xlane.xlu0 %2884
        %2886 = vmax.xlane.f32.xlu0 %v2854
        %v2887 = vpop.xlane.xlu0 %2886
        %2888 = vmax.xlane.f32.xlu0 %v2859
        %v2889 = vpop.xlane.xlu0 %2888
        %2890 = vmax.xlane.f32.xlu0 %v2864
        %v2891 = vpop.xlane.xlu0 %2890
        %2892 = vmax.xlane.f32.xlu0 %v2869
        %v2893 = vpop.xlane.xlu0 %2892
        %2894 = vmax.xlane.f32.xlu0 %v2874
        %v2895 = vpop.xlane.xlu0 %2894
        %2896 = vmax.xlane.f32.xlu0 %v2879
        %v2897 = vpop.xlane.xlu0 %2896
        %v2898 = vsub.f32 %v2844, %v2883
        %v2899 = vsub.f32 %v2849, %v2885
        %v2900 = vsub.f32 %v2854, %v2887
        %v2901 = vsub.f32 %v2859, %v2889
        %v2902 = vsub.f32 %v2864, %v2891
        %v2903 = vsub.f32 %v2869, %v2893
        %v2904 = vsub.f32 %v2874, %v2895
        %v2905 = vsub.f32 %v2879, %v2897
        %v2906 = vmul.f32 %v2898, 1.442695
        %v2907 = vpow.pop %v2906
        %v2908 = vmul.f32 %v2899, 1.442695
        %v2909 = vpow.pop %v2908
        %v2910 = vmul.f32 %v2900, 1.442695
        %v2911 = vpow.pop %v2910
        %v2912 = vmul.f32 %v2901, 1.442695
        %v2913 = vpow.pop %v2912
        %v2914 = vmul.f32 %v2902, 1.442695
        %v2915 = vpow.pop %v2914
        %v2916 = vmul.f32 %v2903, 1.442695
        %v2917 = vpow.pop %v2916
        %v2918 = vmul.f32 %v2904, 1.442695
        %v2919 = vpow.pop %v2918
        %v2920 = vmul.f32 %v2905, 1.442695
        %v2921 = vpow.pop %v2920
        %2922 = vadd.xlane.f32.xlu0 %v2907
        %v2923 = vpop.xlane.xlu0 %2922
        %2924 = vadd.xlane.f32.xlu0 %v2909
        %v2925 = vpop.xlane.xlu0 %2924
        %2926 = vadd.xlane.f32.xlu0 %v2911
        %v2927 = vpop.xlane.xlu0 %2926
        %2928 = vadd.xlane.f32.xlu0 %v2913
        %v2929 = vpop.xlane.xlu0 %2928
        %2930 = vadd.xlane.f32.xlu0 %v2915
        %v2931 = vpop.xlane.xlu0 %2930
        %2932 = vadd.xlane.f32.xlu0 %v2917
        %v2933 = vpop.xlane.xlu0 %2932
        %2934 = vadd.xlane.f32.xlu0 %v2919
        %v2935 = vpop.xlane.xlu0 %2934
        %2936 = vadd.xlane.f32.xlu0 %v2921
        %v2937 = vpop.xlane.xlu0 %2936
        %v2938 = vrcp.pop %v2923
        %v2939 = vrcp.pop %v2925
        %v2940 = vrcp.pop %v2927
        %v2941 = vrcp.pop %v2929
        %v2942 = vrcp.pop %v2931
        %v2943 = vrcp.pop %v2933
        %v2944 = vrcp.pop %v2935
        %v2945 = vrcp.pop %v2937
        %v2946 = vmul.f32 %v2907, %v2938
        %v2947 = vmul.f32 %v2909, %v2939
        %v2948 = vmul.f32 %v2911, %v2940
        %v2949 = vmul.f32 %v2913, %v2941
        %v2950 = vmul.f32 %v2915, %v2942
        %v2951 = vmul.f32 %v2917, %v2943
        %v2952 = vmul.f32 %v2919, %v2944
        %v2953 = vmul.f32 %v2921, %v2945
        %2954 = vrot.lane.b32.xlu0 %v1282, 32
        %v2955 = vpop.permute.xlu0 %2954
        %2956 = vrot.lane.b32.xlu0 %v1287, 32
        %v2957 = vpop.permute.xlu0 %2956
        %2958 = vrot.lane.b32.xlu0 %v1292, 32
        %v2959 = vpop.permute.xlu0 %2958
        %2960 = vrot.lane.b32.xlu0 %v1297, 32
        %v2961 = vpop.permute.xlu0 %2960
        %2962 = vrot.lane.b32.xlu0 %v1302, 32
        %v2963 = vpop.permute.xlu0 %2962
        %2964 = vrot.lane.b32.xlu0 %v1307, 32
        %v2965 = vpop.permute.xlu0 %2964
        %2966 = vrot.lane.b32.xlu0 %v1312, 32
        %v2967 = vpop.permute.xlu0 %2966
        %2968 = vrot.lane.b32.xlu0 %v1317, 32
        %v2969 = vpop.permute.xlu0 %2968
        %2970 = vrot.lane.b32.xlu0 %v1322, 32
        %v2971 = vpop.permute.xlu0 %2970
        %2972 = vrot.lane.b32.xlu0 %v1327, 32
        %v2973 = vpop.permute.xlu0 %2972
        %2974 = vrot.lane.b32.xlu0 %v1332, 32
        %v2975 = vpop.permute.xlu0 %2974
        %2976 = vrot.lane.b32.xlu0 %v1337, 32
        %v2977 = vpop.permute.xlu0 %2976
        %2978 = vrot.lane.b32.xlu0 %v1342, 32
        %v2979 = vpop.permute.xlu0 %2978
        %2980 = vrot.lane.b32.xlu0 %v1347, 32
        %v2981 = vpop.permute.xlu0 %2980
        %2982 = vrot.lane.b32.xlu0 %v1352, 32
        %v2983 = vpop.permute.xlu0 %2982
        %2984 = vrot.lane.b32.xlu0 %v1357, 32
        %v2985 = vpop.permute.xlu0 %2984
        %3002 = vmatprep.subr.mxu0 0.0
        %3003 = vmatpush1.msra.mxu0 %v2985
        %3004 = vmatprep.subr.mxu0 0.0
        %3005 = vmatpush1.msra.mxu0 %v2983
        %3006 = vmatprep.subr.mxu0 0.0
        %3007 = vmatpush1.msra.mxu0 %v2981
        %3008 = vmatprep.subr.mxu0 0.0
        %3009 = vmatpush1.msra.mxu0 %v2979
        %3010 = vmatprep.subr.mxu0 0.0
        %3011 = vmatpush1.msra.mxu0 %v2977
        %3012 = vmatprep.subr.mxu0 0.0
        %3013 = vmatpush1.msra.mxu0 %v2975
        %3014 = vmatprep.subr.mxu0 0.0
        %3015 = vmatpush1.msra.mxu0 %v2973
        %3016 = vmatprep.subr.mxu0 0.0
        %3017 = vmatpush1.msra.mxu0 %v2971
        %3018 = vmatprep.subr.mxu0 0.0
        %3019 = vmatpush1.msra.mxu0 %v2969
        %3020 = vmatprep.subr.mxu0 0.0
        %3021 = vmatpush1.msra.mxu0 %v2967
        %3022 = vmatprep.subr.mxu0 0.0
        %3023 = vmatpush1.msra.mxu0 %v2965
        %3024 = vmatprep.subr.mxu0 0.0
        %3025 = vmatpush1.msra.mxu0 %v2963
        %3026 = vmatprep.subr.mxu0 0.0
        %3027 = vmatpush1.msra.mxu0 %v2961
        %3028 = vmatprep.subr.mxu0 0.0
        %3029 = vmatpush1.msra.mxu0 %v2959
        %3030 = vmatprep.subr.mxu0 0.0
        %3031 = vmatpush1.msra.mxu0 %v2957
        %3032 = vmatprep.subr.mxu0 0.0
        %3033 = vmatpush1.msra.mxu0 %v2955
        %3034 = vmatprep.subr.mxu0 0.0
        %3035 = vmatpush2.msra.mxu0 0.0
        %3036 = vmatprep.subr.mxu0 0.0
        %3037 = vmatpush2.msra.mxu0 0.0
        %3038 = vmatprep.subr.mxu0 0.0
        %3039 = vmatpush2.msra.mxu0 0.0
        %3040 = vmatprep.subr.mxu0 0.0
        %3041 = vmatpush2.msra.mxu0 0.0
        %3042 = vmatprep.subr.mxu0 0.0
        %3043 = vmatpush2.msra.mxu0 0.0
        %3044 = vmatprep.subr.mxu0 0.0
        %3045 = vmatpush2.msra.mxu0 0.0
        %3046 = vmatprep.subr.mxu0 0.0
        %3047 = vmatpush2.msra.mxu0 0.0
        %3048 = vmatprep.subr.mxu0 0.0
        %3049 = vmatpush2.msra.mxu0 0.0
        %3050 = vmatprep.subr.mxu0 0.0
        %3051 = vmatpush2.msra.mxu0 0.0
        %3052 = vmatprep.subr.mxu0 0.0
        %3053 = vmatpush2.msra.mxu0 0.0
        %3054 = vmatprep.subr.mxu0 0.0
        %3055 = vmatpush2.msra.mxu0 0.0
        %3056 = vmatprep.subr.mxu0 0.0
        %3057 = vmatpush2.msra.mxu0 0.0
        %3058 = vmatprep.subr.mxu0 0.0
        %3059 = vmatpush2.msra.mxu0 0.0
        %3060 = vmatprep.subr.mxu0 0.0
        %3061 = vmatpush2.msra.mxu0 0.0
        %3062 = vmatprep.subr.mxu0 0.0
        %3063 = vmatpush2.msra.mxu0 0.0
        %3064 = vmatprep.subr.mxu0 0.0
        %3065 = vmatpush2.msra.mxu0 0.0
        %3066 = vmatprep.mubr.f32.mxu0 0.0
        %3067 = vmatmul.mubr.f32.gmra.mxu0 %v2946
        %v3068 = vpop.f32.mrf.mxu0
        %v3069 = vadd.f32 0.0, %v3068
        %v3070 = vpop.f32.mrf.mxu0
        %3071 = vmatprep.mubr.f32.mxu0 0.0
        %3072 = vmatmul.mubr.f32.gmra.mxu0 %v2947
        %v3073 = vpop.f32.mrf.mxu0
        %v3074 = vadd.f32 0.0, %v3073
        %v3075 = vpop.f32.mrf.mxu0
        %3076 = vmatprep.mubr.f32.mxu0 0.0
        %3077 = vmatmul.mubr.f32.gmra.mxu0 %v2948
        %v3078 = vpop.f32.mrf.mxu0
        %v3079 = vadd.f32 0.0, %v3078
        %v3080 = vpop.f32.mrf.mxu0
        %3081 = vmatprep.mubr.f32.mxu0 0.0
        %3082 = vmatmul.mubr.f32.gmra.mxu0 %v2949
        %v3083 = vpop.f32.mrf.mxu0
        %v3084 = vadd.f32 0.0, %v3083
        %v3085 = vpop.f32.mrf.mxu0
        %3086 = vmatprep.mubr.f32.mxu0 0.0
        %3087 = vmatmul.mubr.f32.gmra.mxu0 %v2950
        %v3088 = vpop.f32.mrf.mxu0
        %v3089 = vadd.f32 0.0, %v3088
        %v3090 = vpop.f32.mrf.mxu0
        %3091 = vmatprep.mubr.f32.mxu0 0.0
        %3092 = vmatmul.mubr.f32.gmra.mxu0 %v2951
        %v3093 = vpop.f32.mrf.mxu0
        %v3094 = vadd.f32 0.0, %v3093
        %v3095 = vpop.f32.mrf.mxu0
        %3096 = vmatprep.mubr.f32.mxu0 0.0
        %3097 = vmatmul.mubr.f32.gmra.mxu0 %v2952
        %v3098 = vpop.f32.mrf.mxu0
        %v3099 = vadd.f32 0.0, %v3098
        %v3100 = vpop.f32.mrf.mxu0
        %3101 = vmatprep.mubr.f32.mxu0 0.0
        %3102 = vmatmul.mubr.f32.gmra.mxu0 %v2953
        %v3103 = vpop.f32.mrf.mxu0
        %v3104 = vadd.f32 0.0, %v3103
        %v3105 = vpop.f32.mrf.mxu0
        %3106 = vdwg.mxu0
        %3115 = vrot.lane.b32.xlu0 %v3069, 96
        %v3116 = vpop.permute.xlu0 %3115
        %3117 = vrot.lane.b32.xlu0 %v3074, 96
        %v3118 = vpop.permute.xlu0 %3117
        %3119 = vrot.lane.b32.xlu0 %v3079, 96
        %v3120 = vpop.permute.xlu0 %3119
        %3121 = vrot.lane.b32.xlu0 %v3084, 96
        %v3122 = vpop.permute.xlu0 %3121
        %3123 = vrot.lane.b32.xlu0 %v3089, 96
        %v3124 = vpop.permute.xlu0 %3123
        %3125 = vrot.lane.b32.xlu0 %v3094, 96
        %v3126 = vpop.permute.xlu0 %3125
        %3127 = vrot.lane.b32.xlu0 %v3099, 96
        %v3128 = vpop.permute.xlu0 %3127
        %3129 = vrot.lane.b32.xlu0 %v3104, 96
        %v3130 = vpop.permute.xlu0 %3129
        %vm3139 = vcmask 1048320
        %3140 = vst.msk [vmem:[#allocation2] sm:$0xff] %vm3139, %v3116
        %3141 = vst.msk [vmem:[#allocation2 + $0x8] sm:$0xff] %vm3139, %v3118
        %3142 = vst.msk [vmem:[#allocation2 + $0x10] sm:$0xff] %vm3139, %v3120
        %3143 = vst.msk [vmem:[#allocation2 + $0x18] sm:$0xff] %vm3139, %v3122
        %3144 = vst.msk [vmem:[#allocation2 + $0x20] sm:$0xff] %vm3139, %v3124
        %3145 = vst.msk [vmem:[#allocation2 + $0x28] sm:$0xff] %vm3139, %v3126
        %3146 = vst.msk [vmem:[#allocation2 + $0x30] sm:$0xff] %vm3139, %v3128
        %3147 = vst.msk [vmem:[#allocation2 + $0x38] sm:$0xff] %vm3139, %v3130
        %v3148 = vld [vmem:[#allocation2] sm:$0xff]
        %v3149 = vld [vmem:[#allocation2 + $0x8] sm:$0xff]
        %v3150 = vld [vmem:[#allocation2 + $0x10] sm:$0xff]
        %v3151 = vld [vmem:[#allocation2 + $0x18] sm:$0xff]
        %v3152 = vld [vmem:[#allocation2 + $0x20] sm:$0xff]
        %v3153 = vld [vmem:[#allocation2 + $0x28] sm:$0xff]
        %v3154 = vld [vmem:[#allocation2 + $0x30] sm:$0xff]
        %v3155 = vld [vmem:[#allocation2 + $0x38] sm:$0xff]
        %v3156 = vld [vmem:[%s11] sm:$0xff]
        %v3157 = vld [vmem:[%s11 + $0x8] sm:$0xff]
        %v3158 = vld [vmem:[%s11 + $0x10] sm:$0xff]
        %v3159 = vld [vmem:[%s11 + $0x18] sm:$0xff]
        %v3160 = vld [vmem:[%s11 + $0x20] sm:$0xff]
        %v3161 = vld [vmem:[%s11 + $0x28] sm:$0xff]
        %v3162 = vld [vmem:[%s11 + $0x30] sm:$0xff]
        %v3163 = vld [vmem:[%s11 + $0x38] sm:$0xff]
        %v3164 = vld [vmem:[%s11 + $0x40] sm:$0xff]
        %v3165 = vld [vmem:[%s11 + $0x48] sm:$0xff]
        %v3166 = vld [vmem:[%s11 + $0x50] sm:$0xff]
        %v3167 = vld [vmem:[%s11 + $0x58] sm:$0xff]
        %v3168 = vld [vmem:[%s11 + $0x60] sm:$0xff]
        %v3169 = vld [vmem:[%s11 + $0x68] sm:$0xff]
        %v3170 = vld [vmem:[%s11 + $0x70] sm:$0xff]
        %v3171 = vld [vmem:[%s11 + $0x78] sm:$0xff]
        %v3172 = vld [vmem:[%s12] sm:$0x1]
        %v3174 = vlaneseq
        %v3175 = vshrl.u32 %v3174, 7
        %v3176 = vsub.s32 0, %v3175
        %v3177 = vrot.slane %v3172, %v3176
        %3179 = vmatprep.subr.mxu0 0.0
        %3180 = vmatpush1.msra.mxu0 %v3171
        %3181 = vmatprep.subr.mxu0 0.0
        %3182 = vmatpush1.msra.mxu0 %v3170
        %3183 = vmatprep.subr.mxu0 0.0
        %3184 = vmatpush1.msra.mxu0 %v3169
        %3185 = vmatprep.subr.mxu0 0.0
        %3186 = vmatpush1.msra.mxu0 %v3168
        %3187 = vmatprep.subr.mxu0 0.0
        %3188 = vmatpush1.msra.mxu0 %v3167
        %3189 = vmatprep.subr.mxu0 0.0
        %3190 = vmatpush1.msra.mxu0 %v3166
        %3191 = vmatprep.subr.mxu0 0.0
        %3192 = vmatpush1.msra.mxu0 %v3165
        %3193 = vmatprep.subr.mxu0 0.0
        %3194 = vmatpush1.msra.mxu0 %v3164
        %3195 = vmatprep.subr.mxu0 0.0
        %3196 = vmatpush1.msra.mxu0 %v3163
        %3197 = vmatprep.subr.mxu0 0.0
        %3198 = vmatpush1.msra.mxu0 %v3162
        %3199 = vmatprep.subr.mxu0 0.0
        %3200 = vmatpush1.msra.mxu0 %v3161
        %3201 = vmatprep.subr.mxu0 0.0
        %3202 = vmatpush1.msra.mxu0 %v3160
        %3203 = vmatprep.subr.mxu0 0.0
        %3204 = vmatpush1.msra.mxu0 %v3159
        %3205 = vmatprep.subr.mxu0 0.0
        %3206 = vmatpush1.msra.mxu0 %v3158
        %3207 = vmatprep.subr.mxu0 0.0
        %3208 = vmatpush1.msra.mxu0 %v3157
        %3209 = vmatprep.subr.mxu0 0.0
        %3210 = vmatpush1.msra.mxu0 %v3156
        %3211 = vmatprep.subr.mxu0 0.0
        %3212 = vmatpush2.msra.mxu0 0.0
        %3213 = vmatprep.subr.mxu0 0.0
        %3214 = vmatpush2.msra.mxu0 0.0
        %3215 = vmatprep.subr.mxu0 0.0
        %3216 = vmatpush2.msra.mxu0 0.0
        %3217 = vmatprep.subr.mxu0 0.0
        %3218 = vmatpush2.msra.mxu0 0.0
        %3219 = vmatprep.subr.mxu0 0.0
        %3220 = vmatpush2.msra.mxu0 0.0
        %3221 = vmatprep.subr.mxu0 0.0
        %3222 = vmatpush2.msra.mxu0 0.0
        %3223 = vmatprep.subr.mxu0 0.0
        %3224 = vmatpush2.msra.mxu0 0.0
        %3225 = vmatprep.subr.mxu0 0.0
        %3226 = vmatpush2.msra.mxu0 0.0
        %3227 = vmatprep.subr.mxu0 0.0
        %3228 = vmatpush2.msra.mxu0 0.0
        %3229 = vmatprep.subr.mxu0 0.0
        %3230 = vmatpush2.msra.mxu0 0.0
        %3231 = vmatprep.subr.mxu0 0.0
        %3232 = vmatpush2.msra.mxu0 0.0
        %3233 = vmatprep.subr.mxu0 0.0
        %3234 = vmatpush2.msra.mxu0 0.0
        %3235 = vmatprep.subr.mxu0 0.0
        %3236 = vmatpush2.msra.mxu0 0.0
        %3237 = vmatprep.subr.mxu0 0.0
        %3238 = vmatpush2.msra.mxu0 0.0
        %3239 = vmatprep.subr.mxu0 0.0
        %3240 = vmatpush2.msra.mxu0 0.0
        %3241 = vmatprep.subr.mxu0 0.0
        %3242 = vmatpush2.msra.mxu0 0.0
        %3243 = vmatprep.mubr.f32.mxu0 0.0
        %3244 = vmatmul.mubr.f32.gmra.mxu0 %v3148
        %v3245 = vpop.f32.mrf.mxu0
        %v3246 = vadd.f32 %v3177, %v3245
        %v3247 = vpop.f32.mrf.mxu0
        %3248 = vmatprep.mubr.f32.mxu0 0.0
        %3249 = vmatmul.mubr.f32.gmra.mxu0 %v3149
        %v3250 = vpop.f32.mrf.mxu0
        %v3251 = vadd.f32 %v3177, %v3250
        %v3252 = vpop.f32.mrf.mxu0
        %3253 = vmatprep.mubr.f32.mxu0 0.0
        %3254 = vmatmul.mubr.f32.gmra.mxu0 %v3150
        %v3255 = vpop.f32.mrf.mxu0
        %v3256 = vadd.f32 %v3177, %v3255
        %v3257 = vpop.f32.mrf.mxu0
        %3258 = vmatprep.mubr.f32.mxu0 0.0
        %3259 = vmatmul.mubr.f32.gmra.mxu0 %v3151
        %v3260 = vpop.f32.mrf.mxu0
        %v3261 = vadd.f32 %v3177, %v3260
        %v3262 = vpop.f32.mrf.mxu0
        %3263 = vmatprep.mubr.f32.mxu0 0.0
        %3264 = vmatmul.mubr.f32.gmra.mxu0 %v3152
        %v3265 = vpop.f32.mrf.mxu0
        %v3266 = vadd.f32 %v3177, %v3265
        %v3267 = vpop.f32.mrf.mxu0
        %3268 = vmatprep.mubr.f32.mxu0 0.0
        %3269 = vmatmul.mubr.f32.gmra.mxu0 %v3153
        %v3270 = vpop.f32.mrf.mxu0
        %v3271 = vadd.f32 %v3177, %v3270
        %v3272 = vpop.f32.mrf.mxu0
        %3273 = vmatprep.mubr.f32.mxu0 0.0
        %3274 = vmatmul.mubr.f32.gmra.mxu0 %v3154
        %v3275 = vpop.f32.mrf.mxu0
        %v3276 = vadd.f32 %v3177, %v3275
        %v3277 = vpop.f32.mrf.mxu0
        %3278 = vmatprep.mubr.f32.mxu0 0.0
        %3279 = vmatmul.mubr.f32.gmra.mxu0 %v3155
        %v3280 = vpop.f32.mrf.mxu0
        %v3281 = vadd.f32 %v3177, %v3280
        %v3282 = vpop.f32.mrf.mxu0
        %3283 = vdwg.mxu0
        %v3284 = vadd.f32 %v824, %v3246
        %v3285 = vadd.f32 %v825, %v3251
        %v3286 = vadd.f32 %v826, %v3256
        %v3287 = vadd.f32 %v827, %v3261
        %v3288 = vadd.f32 %v828, %v3266
        %v3289 = vadd.f32 %v829, %v3271
        %v3290 = vadd.f32 %v830, %v3276
        %v3291 = vadd.f32 %v831, %v3281
        %3292 = vadd.xlane.f32.xlu0 %v3284
        %v3293 = vpop.xlane.xlu0 %3292
        %3294 = vadd.xlane.f32.xlu0 %v3285
        %v3295 = vpop.xlane.xlu0 %3294
        %3296 = vadd.xlane.f32.xlu0 %v3286
        %v3297 = vpop.xlane.xlu0 %3296
        %3298 = vadd.xlane.f32.xlu0 %v3287
        %v3299 = vpop.xlane.xlu0 %3298
        %3300 = vadd.xlane.f32.xlu0 %v3288
        %v3301 = vpop.xlane.xlu0 %3300
        %3302 = vadd.xlane.f32.xlu0 %v3289
        %v3303 = vpop.xlane.xlu0 %3302
        %3304 = vadd.xlane.f32.xlu0 %v3290
        %v3305 = vpop.xlane.xlu0 %3304
        %3306 = vadd.xlane.f32.xlu0 %v3291
        %v3307 = vpop.xlane.xlu0 %3306
        %v3308 = vrcp.pop 128.0
        %v3309 = vmul.f32 %v3293, %v3308
        %v3310 = vmul.f32 %v3295, %v3308
        %v3311 = vmul.f32 %v3297, %v3308
        %v3312 = vmul.f32 %v3299, %v3308
        %v3313 = vmul.f32 %v3301, %v3308
        %v3314 = vmul.f32 %v3303, %v3308
        %v3315 = vmul.f32 %v3305, %v3308
        %v3316 = vmul.f32 %v3307, %v3308
        %v3317 = vsub.f32 %v3284, %v3309
        %v3318 = vsub.f32 %v3285, %v3310
        %v3319 = vsub.f32 %v3286, %v3311
        %v3320 = vsub.f32 %v3287, %v3312
        %v3321 = vsub.f32 %v3288, %v3313
        %v3322 = vsub.f32 %v3289, %v3314
        %v3323 = vsub.f32 %v3290, %v3315
        %v3324 = vsub.f32 %v3291, %v3316
        %v3325 = vmul.f32 %v3317, %v3317
        %v3326 = vmul.f32 %v3318, %v3318
        %v3327 = vmul.f32 %v3319, %v3319
        %v3328 = vmul.f32 %v3320, %v3320
        %v3329 = vmul.f32 %v3321, %v3321
        %v3330 = vmul.f32 %v3322, %v3322
        %v3331 = vmul.f32 %v3323, %v3323
        %v3332 = vmul.f32 %v3324, %v3324
        %3333 = vadd.xlane.f32.xlu0 %v3325
        %v3334 = vpop.xlane.xlu0 %3333
        %3335 = vadd.xlane.f32.xlu0 %v3326
        %v3336 = vpop.xlane.xlu0 %3335
        %3337 = vadd.xlane.f32.xlu0 %v3327
        %v3338 = vpop.xlane.xlu0 %3337
        %3339 = vadd.xlane.f32.xlu0 %v3328
        %v3340 = vpop.xlane.xlu0 %3339
        %3341 = vadd.xlane.f32.xlu0 %v3329
        %v3342 = vpop.xlane.xlu0 %3341
        %3343 = vadd.xlane.f32.xlu0 %v3330
        %v3344 = vpop.xlane.xlu0 %3343
        %3345 = vadd.xlane.f32.xlu0 %v3331
        %v3346 = vpop.xlane.xlu0 %3345
        %3347 = vadd.xlane.f32.xlu0 %v3332
        %v3348 = vpop.xlane.xlu0 %3347
        %v3349 = vmul.f32 %v3334, %v3308
        %v3350 = vmul.f32 %v3336, %v3308
        %v3351 = vmul.f32 %v3338, %v3308
        %v3352 = vmul.f32 %v3340, %v3308
        %v3353 = vmul.f32 %v3342, %v3308
        %v3354 = vmul.f32 %v3344, %v3308
        %v3355 = vmul.f32 %v3346, %v3308
        %v3356 = vmul.f32 %v3348, %v3308
        %v3357 = vadd.f32 %v3349, 1e-05
        %v3358 = vadd.f32 %v3350, 1e-05
        %v3359 = vadd.f32 %v3351, 1e-05
        %v3360 = vadd.f32 %v3352, 1e-05
        %v3361 = vadd.f32 %v3353, 1e-05
        %v3362 = vadd.f32 %v3354, 1e-05
        %v3363 = vadd.f32 %v3355, 1e-05
        %v3364 = vadd.f32 %v3356, 1e-05
        %v3365 = vrsqrt.pop %v3357
        %v3366 = vrsqrt.pop %v3358
        %v3367 = vrsqrt.pop %v3359
        %v3368 = vrsqrt.pop %v3360
        %v3369 = vrsqrt.pop %v3361
        %v3370 = vrsqrt.pop %v3362
        %v3371 = vrsqrt.pop %v3363
        %v3372 = vrsqrt.pop %v3364
        %v3373 = vmul.f32 %v3317, %v3365
        %v3374 = vmul.f32 %v3318, %v3366
        %v3375 = vmul.f32 %v3319, %v3367
        %v3376 = vmul.f32 %v3320, %v3368
        %v3377 = vmul.f32 %v3321, %v3369
        %v3378 = vmul.f32 %v3322, %v3370
        %v3379 = vmul.f32 %v3323, %v3371
        %v3380 = vmul.f32 %v3324, %v3372
        %v3381 = vld [vmem:[%s13] sm:$0x1]
        %v3383 = vlaneseq
        %v3384 = vshrl.u32 %v3383, 7
        %v3385 = vsub.s32 0, %v3384
        %v3386 = vrot.slane %v3381, %v3385
        %v3388 = vmul.f32 %v3373, %v3386
        %v3389 = vmul.f32 %v3374, %v3386
        %v3390 = vmul.f32 %v3375, %v3386
        %v3391 = vmul.f32 %v3376, %v3386
        %v3392 = vmul.f32 %v3377, %v3386
        %v3393 = vmul.f32 %v3378, %v3386
        %v3394 = vmul.f32 %v3379, %v3386
        %v3395 = vmul.f32 %v3380, %v3386
        %v3396 = vld [vmem:[#allocation3] sm:$0x1]
        %v3398 = vlaneseq
        %v3399 = vshrl.u32 %v3398, 7
        %v3400 = vsub.s32 0, %v3399
        %v3401 = vrot.slane %v3396, %v3400
        %v3403 = vadd.f32 %v3388, %v3401
        %v3404 = vadd.f32 %v3389, %v3401
        %v3405 = vadd.f32 %v3390, %v3401
        %v3406 = vadd.f32 %v3391, %v3401
        %v3407 = vadd.f32 %v3392, %v3401
        %v3408 = vadd.f32 %v3393, %v3401
        %v3409 = vadd.f32 %v3394, %v3401
        %v3410 = vadd.f32 %v3395, %v3401
        %v3411 = vld [vmem:[%s15] sm:$0xff]
        %v3412 = vld [vmem:[%s15 + $0x8] sm:$0xff]
        %v3413 = vld [vmem:[%s15 + $0x10] sm:$0xff]
        %v3414 = vld [vmem:[%s15 + $0x18] sm:$0xff]
        %v3415 = vld [vmem:[%s15 + $0x20] sm:$0xff]
        %v3416 = vld [vmem:[%s15 + $0x28] sm:$0xff]
        %v3417 = vld [vmem:[%s15 + $0x30] sm:$0xff]
        %v3418 = vld [vmem:[%s15 + $0x38] sm:$0xff]
        %v3419 = vld [vmem:[%s15 + $0x40] sm:$0xff]
        %v3420 = vld [vmem:[%s15 + $0x48] sm:$0xff]
        %v3421 = vld [vmem:[%s15 + $0x50] sm:$0xff]
        %v3422 = vld [vmem:[%s15 + $0x58] sm:$0xff]
        %v3423 = vld [vmem:[%s15 + $0x60] sm:$0xff]
        %v3424 = vld [vmem:[%s15 + $0x68] sm:$0xff]
        %v3425 = vld [vmem:[%s15 + $0x70] sm:$0xff]
        %v3426 = vld [vmem:[%s15 + $0x78] sm:$0xff]
        %v3427 = vld [vmem:[%s15 + $0x80] sm:$0xff]
        %v3428 = vld [vmem:[%s15 + $0x88] sm:$0xff]
        %v3429 = vld [vmem:[%s15 + $0x90] sm:$0xff]
        %v3430 = vld [vmem:[%s15 + $0x98] sm:$0xff]
        %v3431 = vld [vmem:[%s15 + $0xa0] sm:$0xff]
        %v3432 = vld [vmem:[%s15 + $0xa8] sm:$0xff]
        %v3433 = vld [vmem:[%s15 + $0xb0] sm:$0xff]
        %v3434 = vld [vmem:[%s15 + $0xb8] sm:$0xff]
        %v3435 = vld [vmem:[%s15 + $0xc0] sm:$0xff]
        %v3436 = vld [vmem:[%s15 + $0xc8] sm:$0xff]
        %v3437 = vld [vmem:[%s15 + $0xd0] sm:$0xff]
        %v3438 = vld [vmem:[%s15 + $0xd8] sm:$0xff]
        %v3439 = vld [vmem:[%s15 + $0xe0] sm:$0xff]
        %v3440 = vld [vmem:[%s15 + $0xe8] sm:$0xff]
        %v3441 = vld [vmem:[%s15 + $0xf0] sm:$0xff]
        %v3442 = vld [vmem:[%s15 + $0xf8] sm:$0xff]
        %v3443 = vld [vmem:[%s16] sm:$0x3]
        %v3445 = vlaneseq
        %v3446 = vshrl.u32 %v3445, 7
        %v3447 = vsub.s32 0, %v3446
        %v3448 = vrot.slane %v3443, %v3447
        %v3449 = vlaneseq
        %v3450 = vshrl.u32 %v3449, 7
        %v3451 = vsub.s32 1, %v3450
        %v3452 = vrot.slane %v3443, %v3451
        %3455 = vmatprep.subr.mxu0 %v3442
        %3456 = vmatpush1.msra.mxu0 %v3441
        %3457 = vmatprep.subr.mxu0 %v3440
        %3458 = vmatpush1.msra.mxu0 %v3439
        %3459 = vmatprep.subr.mxu0 %v3438
        %3460 = vmatpush1.msra.mxu0 %v3437
        %3461 = vmatprep.subr.mxu0 %v3436
        %3462 = vmatpush1.msra.mxu0 %v3435
        %3463 = vmatprep.subr.mxu0 %v3434
        %3464 = vmatpush1.msra.mxu0 %v3433
        %3465 = vmatprep.subr.mxu0 %v3432
        %3466 = vmatpush1.msra.mxu0 %v3431
        %3467 = vmatprep.subr.mxu0 %v3430
        %3468 = vmatpush1.msra.mxu0 %v3429
        %3469 = vmatprep.subr.mxu0 %v3428
        %3470 = vmatpush1.msra.mxu0 %v3427
        %3471 = vmatprep.subr.mxu0 %v3426
        %3472 = vmatpush1.msra.mxu0 %v3425
        %3473 = vmatprep.subr.mxu0 %v3424
        %3474 = vmatpush1.msra.mxu0 %v3423
        %3475 = vmatprep.subr.mxu0 %v3422
        %3476 = vmatpush1.msra.mxu0 %v3421
        %3477 = vmatprep.subr.mxu0 %v3420
        %3478 = vmatpush1.msra.mxu0 %v3419
        %3479 = vmatprep.subr.mxu0 %v3418
        %3480 = vmatpush1.msra.mxu0 %v3417
        %3481 = vmatprep.subr.mxu0 %v3416
        %3482 = vmatpush1.msra.mxu0 %v3415
        %3483 = vmatprep.subr.mxu0 %v3414
        %3484 = vmatpush1.msra.mxu0 %v3413
        %3485 = vmatprep.subr.mxu0 %v3412
        %3486 = vmatpush1.msra.mxu0 %v3411
        %3487 = vmatprep.subr.mxu0 0.0
        %3488 = vmatpush2.msra.mxu0 0.0
        %3489 = vmatprep.subr.mxu0 0.0
        %3490 = vmatpush2.msra.mxu0 0.0
        %3491 = vmatprep.subr.mxu0 0.0
        %3492 = vmatpush2.msra.mxu0 0.0
        %3493 = vmatprep.subr.mxu0 0.0
        %3494 = vmatpush2.msra.mxu0 0.0
        %3495 = vmatprep.subr.mxu0 0.0
        %3496 = vmatpush2.msra.mxu0 0.0
        %3497 = vmatprep.subr.mxu0 0.0
        %3498 = vmatpush2.msra.mxu0 0.0
        %3499 = vmatprep.subr.mxu0 0.0
        %3500 = vmatpush2.msra.mxu0 0.0
        %3501 = vmatprep.subr.mxu0 0.0
        %3502 = vmatpush2.msra.mxu0 0.0
        %3503 = vmatprep.subr.mxu0 0.0
        %3504 = vmatpush2.msra.mxu0 0.0
        %3505 = vmatprep.subr.mxu0 0.0
        %3506 = vmatpush2.msra.mxu0 0.0
        %3507 = vmatprep.subr.mxu0 0.0
        %3508 = vmatpush2.msra.mxu0 0.0
        %3509 = vmatprep.subr.mxu0 0.0
        %3510 = vmatpush2.msra.mxu0 0.0
        %3511 = vmatprep.subr.mxu0 0.0
        %3512 = vmatpush2.msra.mxu0 0.0
        %3513 = vmatprep.subr.mxu0 0.0
        %3514 = vmatpush2.msra.mxu0 0.0
        %3515 = vmatprep.subr.mxu0 0.0
        %3516 = vmatpush2.msra.mxu0 0.0
        %3517 = vmatprep.subr.mxu0 0.0
        %3518 = vmatpush2.msra.mxu0 0.0
        %3519 = vmatprep.mubr.f32.mxu0 0.0
        %3520 = vmatmul.mubr.f32.gmra.mxu0 %v3403
        %v3521 = vpop.f32.mrf.mxu0
        %v3522 = vadd.f32 %v3448, %v3521
        %v3523 = vpop.f32.mrf.mxu0
        %v3524 = vadd.f32 %v3452, %v3523
        %3525 = vmatprep.mubr.f32.mxu0 0.0
        %3526 = vmatmul.mubr.f32.gmra.mxu0 %v3404
        %v3527 = vpop.f32.mrf.mxu0
        %v3528 = vadd.f32 %v3448, %v3527
        %v3529 = vpop.f32.mrf.mxu0
        %v3530 = vadd.f32 %v3452, %v3529
        %3531 = vmatprep.mubr.f32.mxu0 0.0
        %3532 = vmatmul.mubr.f32.gmra.mxu0 %v3405
        %v3533 = vpop.f32.mrf.mxu0
        %v3534 = vadd.f32 %v3448, %v3533
        %v3535 = vpop.f32.mrf.mxu0
        %v3536 = vadd.f32 %v3452, %v3535
        %3537 = vmatprep.mubr.f32.mxu0 0.0
        %3538 = vmatmul.mubr.f32.gmra.mxu0 %v3406
        %v3539 = vpop.f32.mrf.mxu0
        %v3540 = vadd.f32 %v3448, %v3539
        %v3541 = vpop.f32.mrf.mxu0
        %v3542 = vadd.f32 %v3452, %v3541
        %3543 = vmatprep.mubr.f32.mxu0 0.0
        %3544 = vmatmul.mubr.f32.gmra.mxu0 %v3407
        %v3545 = vpop.f32.mrf.mxu0
        %v3546 = vadd.f32 %v3448, %v3545
        %v3547 = vpop.f32.mrf.mxu0
        %v3548 = vadd.f32 %v3452, %v3547
        %3549 = vmatprep.mubr.f32.mxu0 0.0
        %3550 = vmatmul.mubr.f32.gmra.mxu0 %v3408
        %v3551 = vpop.f32.mrf.mxu0
        %v3552 = vadd.f32 %v3448, %v3551
        %v3553 = vpop.f32.mrf.mxu0
        %v3554 = vadd.f32 %v3452, %v3553
        %3555 = vmatprep.mubr.f32.mxu0 0.0
        %3556 = vmatmul.mubr.f32.gmra.mxu0 %v3409
        %v3557 = vpop.f32.mrf.mxu0
        %v3558 = vadd.f32 %v3448, %v3557
        %v3559 = vpop.f32.mrf.mxu0
        %v3560 = vadd.f32 %v3452, %v3559
        %3561 = vmatprep.mubr.f32.mxu0 0.0
        %3562 = vmatmul.mubr.f32.gmra.mxu0 %v3410
        %v3563 = vpop.f32.mrf.mxu0
        %v3564 = vadd.f32 %v3448, %v3563
        %v3565 = vpop.f32.mrf.mxu0
        %v3566 = vadd.f32 %v3452, %v3565
        %3567 = vdwg.mxu0
        %v3568 = vmax.f32 %v3522, 0.0
        %v3569 = vmax.f32 %v3524, 0.0
        %v3570 = vmax.f32 %v3528, 0.0
        %v3571 = vmax.f32 %v3530, 0.0
        %v3572 = vmax.f32 %v3534, 0.0
        %v3573 = vmax.f32 %v3536, 0.0
        %v3574 = vmax.f32 %v3540, 0.0
        %v3575 = vmax.f32 %v3542, 0.0
        %v3576 = vmax.f32 %v3546, 0.0
        %v3577 = vmax.f32 %v3548, 0.0
        %v3578 = vmax.f32 %v3552, 0.0
        %v3579 = vmax.f32 %v3554, 0.0
        %v3580 = vmax.f32 %v3558, 0.0
        %v3581 = vmax.f32 %v3560, 0.0
        %v3582 = vmax.f32 %v3564, 0.0
        %v3583 = vmax.f32 %v3566, 0.0
        %v3584 = vld [vmem:[%s17] sm:$0xff]
        %v3585 = vld [vmem:[%s17 + $0x8] sm:$0xff]
        %v3586 = vld [vmem:[%s17 + $0x10] sm:$0xff]
        %v3587 = vld [vmem:[%s17 + $0x18] sm:$0xff]
        %v3588 = vld [vmem:[%s17 + $0x20] sm:$0xff]
        %v3589 = vld [vmem:[%s17 + $0x28] sm:$0xff]
        %v3590 = vld [vmem:[%s17 + $0x30] sm:$0xff]
        %v3591 = vld [vmem:[%s17 + $0x38] sm:$0xff]
        %v3592 = vld [vmem:[%s17 + $0x40] sm:$0xff]
        %v3593 = vld [vmem:[%s17 + $0x48] sm:$0xff]
        %v3594 = vld [vmem:[%s17 + $0x50] sm:$0xff]
        %v3595 = vld [vmem:[%s17 + $0x58] sm:$0xff]
        %v3596 = vld [vmem:[%s17 + $0x60] sm:$0xff]
        %v3597 = vld [vmem:[%s17 + $0x68] sm:$0xff]
        %v3598 = vld [vmem:[%s17 + $0x70] sm:$0xff]
        %v3599 = vld [vmem:[%s17 + $0x78] sm:$0xff]
        %v3600 = vld [vmem:[%s17 + $0x80] sm:$0xff]
        %v3601 = vld [vmem:[%s17 + $0x88] sm:$0xff]
        %v3602 = vld [vmem:[%s17 + $0x90] sm:$0xff]
        %v3603 = vld [vmem:[%s17 + $0x98] sm:$0xff]
        %v3604 = vld [vmem:[%s17 + $0xa0] sm:$0xff]
        %v3605 = vld [vmem:[%s17 + $0xa8] sm:$0xff]
        %v3606 = vld [vmem:[%s17 + $0xb0] sm:$0xff]
        %v3607 = vld [vmem:[%s17 + $0xb8] sm:$0xff]
        %v3608 = vld [vmem:[%s17 + $0xc0] sm:$0xff]
        %v3609 = vld [vmem:[%s17 + $0xc8] sm:$0xff]
        %v3610 = vld [vmem:[%s17 + $0xd0] sm:$0xff]
        %v3611 = vld [vmem:[%s17 + $0xd8] sm:$0xff]
        %v3612 = vld [vmem:[%s17 + $0xe0] sm:$0xff]
        %v3613 = vld [vmem:[%s17 + $0xe8] sm:$0xff]
        %v3614 = vld [vmem:[%s17 + $0xf0] sm:$0xff]
        %v3615 = vld [vmem:[%s17 + $0xf8] sm:$0xff]
        %v3616 = vld [vmem:[#allocation5] sm:$0x1]
        %v3618 = vlaneseq
        %v3619 = vshrl.u32 %v3618, 7
        %v3620 = vsub.s32 0, %v3619
        %v3621 = vrot.slane %v3616, %v3620
        %3623 = vmatprep.subr.mxu0 0.0
        %3624 = vmatpush1.msra.mxu0 %v3599
        %3625 = vmatprep.subr.mxu0 0.0
        %3626 = vmatpush1.msra.mxu0 %v3598
        %3627 = vmatprep.subr.mxu0 0.0
        %3628 = vmatpush1.msra.mxu0 %v3597
        %3629 = vmatprep.subr.mxu0 0.0
        %3630 = vmatpush1.msra.mxu0 %v3596
        %3631 = vmatprep.subr.mxu0 0.0
        %3632 = vmatpush1.msra.mxu0 %v3595
        %3633 = vmatprep.subr.mxu0 0.0
        %3634 = vmatpush1.msra.mxu0 %v3594
        %3635 = vmatprep.subr.mxu0 0.0
        %3636 = vmatpush1.msra.mxu0 %v3593
        %3637 = vmatprep.subr.mxu0 0.0
        %3638 = vmatpush1.msra.mxu0 %v3592
        %3639 = vmatprep.subr.mxu0 0.0
        %3640 = vmatpush1.msra.mxu0 %v3591
        %3641 = vmatprep.subr.mxu0 0.0
        %3642 = vmatpush1.msra.mxu0 %v3590
        %3643 = vmatprep.subr.mxu0 0.0
        %3644 = vmatpush1.msra.mxu0 %v3589
        %3645 = vmatprep.subr.mxu0 0.0
        %3646 = vmatpush1.msra.mxu0 %v3588
        %3647 = vmatprep.subr.mxu0 0.0
        %3648 = vmatpush1.msra.mxu0 %v3587
        %3649 = vmatprep.subr.mxu0 0.0
        %3650 = vmatpush1.msra.mxu0 %v3586
        %3651 = vmatprep.subr.mxu0 0.0
        %3652 = vmatpush1.msra.mxu0 %v3585
        %3653 = vmatprep.subr.mxu0 0.0
        %3654 = vmatpush1.msra.mxu0 %v3584
        %3655 = vmatprep.subr.mxu0 0.0
        %3656 = vmatpush2.msra.mxu0 %v3615
        %3657 = vmatprep.subr.mxu0 0.0
        %3658 = vmatpush2.msra.mxu0 %v3614
        %3659 = vmatprep.subr.mxu0 0.0
        %3660 = vmatpush2.msra.mxu0 %v3613
        %3661 = vmatprep.subr.mxu0 0.0
        %3662 = vmatpush2.msra.mxu0 %v3612
        %3663 = vmatprep.subr.mxu0 0.0
        %3664 = vmatpush2.msra.mxu0 %v3611
        %3665 = vmatprep.subr.mxu0 0.0
        %3666 = vmatpush2.msra.mxu0 %v3610
        %3667 = vmatprep.subr.mxu0 0.0
        %3668 = vmatpush2.msra.mxu0 %v3609
        %3669 = vmatprep.subr.mxu0 0.0
        %3670 = vmatpush2.msra.mxu0 %v3608
        %3671 = vmatprep.subr.mxu0 0.0
        %3672 = vmatpush2.msra.mxu0 %v3607
        %3673 = vmatprep.subr.mxu0 0.0
        %3674 = vmatpush2.msra.mxu0 %v3606
        %3675 = vmatprep.subr.mxu0 0.0
        %3676 = vmatpush2.msra.mxu0 %v3605
        %3677 = vmatprep.subr.mxu0 0.0
        %3678 = vmatpush2.msra.mxu0 %v3604
        %3679 = vmatprep.subr.mxu0 0.0
        %3680 = vmatpush2.msra.mxu0 %v3603
        %3681 = vmatprep.subr.mxu0 0.0
        %3682 = vmatpush2.msra.mxu0 %v3602
        %3683 = vmatprep.subr.mxu0 0.0
        %3684 = vmatpush2.msra.mxu0 %v3601
        %3685 = vmatprep.subr.mxu0 0.0
        %3686 = vmatpush2.msra.mxu0 %v3600
        %3687 = vmatprep.mubr.f32.mxu0 %v3569
        %3688 = vmatmul.mubr.f32.gmra.mxu0 %v3568
        %v3689 = vpop.f32.mrf.mxu0
        %v3690 = vadd.f32 %v3621, %v3689
        %v3691 = vpop.f32.mrf.mxu0
        %3692 = vmatprep.mubr.f32.mxu0 %v3571
        %3693 = vmatmul.mubr.f32.gmra.mxu0 %v3570
        %v3694 = vpop.f32.mrf.mxu0
        %v3695 = vadd.f32 %v3621, %v3694
        %v3696 = vpop.f32.mrf.mxu0
        %3697 = vmatprep.mubr.f32.mxu0 %v3573
        %3698 = vmatmul.mubr.f32.gmra.mxu0 %v3572
        %v3699 = vpop.f32.mrf.mxu0
        %v3700 = vadd.f32 %v3621, %v3699
        %v3701 = vpop.f32.mrf.mxu0
        %3702 = vmatprep.mubr.f32.mxu0 %v3575
        %3703 = vmatmul.mubr.f32.gmra.mxu0 %v3574
        %v3704 = vpop.f32.mrf.mxu0
        %v3705 = vadd.f32 %v3621, %v3704
        %v3706 = vpop.f32.mrf.mxu0
        %3707 = vmatprep.mubr.f32.mxu0 %v3577
        %3708 = vmatmul.mubr.f32.gmra.mxu0 %v3576
        %v3709 = vpop.f32.mrf.mxu0
        %v3710 = vadd.f32 %v3621, %v3709
        %v3711 = vpop.f32.mrf.mxu0
        %3712 = vmatprep.mubr.f32.mxu0 %v3579
        %3713 = vmatmul.mubr.f32.gmra.mxu0 %v3578
        %v3714 = vpop.f32.mrf.mxu0
        %v3715 = vadd.f32 %v3621, %v3714
        %v3716 = vpop.f32.mrf.mxu0
        %3717 = vmatprep.mubr.f32.mxu0 %v3581
        %3718 = vmatmul.mubr.f32.gmra.mxu0 %v3580
        %v3719 = vpop.f32.mrf.mxu0
        %v3720 = vadd.f32 %v3621, %v3719
        %v3721 = vpop.f32.mrf.mxu0
        %3722 = vmatprep.mubr.f32.mxu0 %v3583
        %3723 = vmatmul.mubr.f32.gmra.mxu0 %v3582
        %v3724 = vpop.f32.mrf.mxu0
        %v3725 = vadd.f32 %v3621, %v3724
        %v3726 = vpop.f32.mrf.mxu0
        %3727 = vdwg.mxu0
        %v3728 = vadd.f32 %v3403, %v3690
        %v3729 = vadd.f32 %v3404, %v3695
        %v3730 = vadd.f32 %v3405, %v3700
        %v3731 = vadd.f32 %v3406, %v3705
        %v3732 = vadd.f32 %v3407, %v3710
        %v3733 = vadd.f32 %v3408, %v3715
        %v3734 = vadd.f32 %v3409, %v3720
        %v3735 = vadd.f32 %v3410, %v3725
        %3736 = vadd.xlane.f32.xlu0 %v3728
        %v3737 = vpop.xlane.xlu0 %3736
        %3738 = vadd.xlane.f32.xlu0 %v3729
        %v3739 = vpop.xlane.xlu0 %3738
        %3740 = vadd.xlane.f32.xlu0 %v3730
        %v3741 = vpop.xlane.xlu0 %3740
        %3742 = vadd.xlane.f32.xlu0 %v3731
        %v3743 = vpop.xlane.xlu0 %3742
        %3744 = vadd.xlane.f32.xlu0 %v3732
        %v3745 = vpop.xlane.xlu0 %3744
        %3746 = vadd.xlane.f32.xlu0 %v3733
        %v3747 = vpop.xlane.xlu0 %3746
        %3748 = vadd.xlane.f32.xlu0 %v3734
        %v3749 = vpop.xlane.xlu0 %3748
        %3750 = vadd.xlane.f32.xlu0 %v3735
        %v3751 = vpop.xlane.xlu0 %3750
        %v3752 = vmul.f32 %v3737, %v3308
        %v3753 = vmul.f32 %v3739, %v3308
        %v3754 = vmul.f32 %v3741, %v3308
        %v3755 = vmul.f32 %v3743, %v3308
        %v3756 = vmul.f32 %v3745, %v3308
        %v3757 = vmul.f32 %v3747, %v3308
        %v3758 = vmul.f32 %v3749, %v3308
        %v3759 = vmul.f32 %v3751, %v3308
        %v3760 = vsub.f32 %v3728, %v3752
        %v3761 = vsub.f32 %v3729, %v3753
        %v3762 = vsub.f32 %v3730, %v3754
        %v3763 = vsub.f32 %v3731, %v3755
        %v3764 = vsub.f32 %v3732, %v3756
        %v3765 = vsub.f32 %v3733, %v3757
        %v3766 = vsub.f32 %v3734, %v3758
        %v3767 = vsub.f32 %v3735, %v3759
        %v3768 = vmul.f32 %v3760, %v3760
        %v3769 = vmul.f32 %v3761, %v3761
        %v3770 = vmul.f32 %v3762, %v3762
        %v3771 = vmul.f32 %v3763, %v3763
        %v3772 = vmul.f32 %v3764, %v3764
        %v3773 = vmul.f32 %v3765, %v3765
        %v3774 = vmul.f32 %v3766, %v3766
        %v3775 = vmul.f32 %v3767, %v3767
        %3776 = vadd.xlane.f32.xlu0 %v3768
        %v3777 = vpop.xlane.xlu0 %3776
        %3778 = vadd.xlane.f32.xlu0 %v3769
        %v3779 = vpop.xlane.xlu0 %3778
        %3780 = vadd.xlane.f32.xlu0 %v3770
        %v3781 = vpop.xlane.xlu0 %3780
        %3782 = vadd.xlane.f32.xlu0 %v3771
        %v3783 = vpop.xlane.xlu0 %3782
        %3784 = vadd.xlane.f32.xlu0 %v3772
        %v3785 = vpop.xlane.xlu0 %3784
        %3786 = vadd.xlane.f32.xlu0 %v3773
        %v3787 = vpop.xlane.xlu0 %3786
        %3788 = vadd.xlane.f32.xlu0 %v3774
        %v3789 = vpop.xlane.xlu0 %3788
        %3790 = vadd.xlane.f32.xlu0 %v3775
        %v3791 = vpop.xlane.xlu0 %3790
        %v3792 = vmul.f32 %v3777, %v3308
        %v3793 = vmul.f32 %v3779, %v3308
        %v3794 = vmul.f32 %v3781, %v3308
        %v3795 = vmul.f32 %v3783, %v3308
        %v3796 = vmul.f32 %v3785, %v3308
        %v3797 = vmul.f32 %v3787, %v3308
        %v3798 = vmul.f32 %v3789, %v3308
        %v3799 = vmul.f32 %v3791, %v3308
        %v3800 = vadd.f32 %v3792, 1e-05
        %v3801 = vadd.f32 %v3793, 1e-05
        %v3802 = vadd.f32 %v3794, 1e-05
        %v3803 = vadd.f32 %v3795, 1e-05
        %v3804 = vadd.f32 %v3796, 1e-05
        %v3805 = vadd.f32 %v3797, 1e-05
        %v3806 = vadd.f32 %v3798, 1e-05
        %v3807 = vadd.f32 %v3799, 1e-05
        %v3808 = vrsqrt.pop %v3800
        %v3809 = vrsqrt.pop %v3801
        %v3810 = vrsqrt.pop %v3802
        %v3811 = vrsqrt.pop %v3803
        %v3812 = vrsqrt.pop %v3804
        %v3813 = vrsqrt.pop %v3805
        %v3814 = vrsqrt.pop %v3806
        %v3815 = vrsqrt.pop %v3807
        %v3816 = vmul.f32 %v3760, %v3808
        %v3817 = vmul.f32 %v3761, %v3809
        %v3818 = vmul.f32 %v3762, %v3810
        %v3819 = vmul.f32 %v3763, %v3811
        %v3820 = vmul.f32 %v3764, %v3812
        %v3821 = vmul.f32 %v3765, %v3813
        %v3822 = vmul.f32 %v3766, %v3814
        %v3823 = vmul.f32 %v3767, %v3815
        %v3824 = vld [vmem:[%s19] sm:$0x1]
        %v3826 = vlaneseq
        %v3827 = vshrl.u32 %v3826, 7
        %v3828 = vsub.s32 0, %v3827
        %v3829 = vrot.slane %v3824, %v3828
        %v3831 = vmul.f32 %v3816, %v3829
        %v3832 = vmul.f32 %v3817, %v3829
        %v3833 = vmul.f32 %v3818, %v3829
        %v3834 = vmul.f32 %v3819, %v3829
        %v3835 = vmul.f32 %v3820, %v3829
        %v3836 = vmul.f32 %v3821, %v3829
        %v3837 = vmul.f32 %v3822, %v3829
        %v3838 = vmul.f32 %v3823, %v3829
        %v3839 = vld [vmem:[#allocation7] sm:$0x1]
        %v3841 = vlaneseq
        %v3842 = vshrl.u32 %v3841, 7
        %v3843 = vsub.s32 0, %v3842
        %v3844 = vrot.slane %v3839, %v3843
        %v3846 = vadd.f32 %v3831, %v3844
        %v3847 = vadd.f32 %v3832, %v3844
        %v3848 = vadd.f32 %v3833, %v3844
        %v3849 = vadd.f32 %v3834, %v3844
        %v3850 = vadd.f32 %v3835, %v3844
        %v3851 = vadd.f32 %v3836, %v3844
        %v3852 = vadd.f32 %v3837, %v3844
        %v3853 = vadd.f32 %v3838, %v3844
        %3854 = vst [vmem:[%s822] sm:$0xff] %v3846
        %3855 = vst [vmem:[%s822 + $0x8] sm:$0xff] %v3847
        %3856 = vst [vmem:[%s822 + $0x10] sm:$0xff] %v3848
        %3857 = vst [vmem:[%s822 + $0x18] sm:$0xff] %v3849
        %3858 = vst [vmem:[%s822 + $0x20] sm:$0xff] %v3850
        %3859 = vst [vmem:[%s822 + $0x28] sm:$0xff] %v3851
        %3860 = vst [vmem:[%s822 + $0x30] sm:$0xff] %v3852
        %3861 = vst [vmem:[%s822 + $0x38] sm:$0xff] %v3853
        %s3862 = smul.u32 8, %s39
        %p3863 = scmp.lt.s32.totalorder %s38, 1
        %s3864 = scalar_select %p3863, %s38, 1
        %p3865 = scmp.lt.s32.totalorder %s3862, 15
        %s3866 = scalar_select %p3865, %s3862, 15
        %s3867 = smul.addr %s3864, 16
        %s3868 = sadd.s32 %s3866, %s3867
        %s3869 = smul.addr %s3868, 8
        %s3870 = scalar_lea.vmem %s21, %s3869
        // Predicated region
        $region117: #{encoder_layer_forward.1} parent=103 // pred_check
          %p3871 = pneg %p536
        $region118: #{encoder_layer_forward.1} parent=103 // pred_check_branch
          %3873 = sbr.rel (%p3871) target = $region120
        $region119: #{encoder_layer_forward.1} parent=103 // pred_region
          %s3874 = smul.u32 8, %s39
        $region120: #{encoder_layer_forward.1} parent=103 // pred_fallthru
          _
      $region104: #{encoder_layer_forward.1} parent=5 // pred_fallthru
        _
      %p3875 = scmp.le.s32.totalorder 2, %s29
      // Predicated region
      $region121: #{encoder_layer_forward.1} parent=5 // pred_check
        %p3876 = pneg %p3875
      $region122: #{encoder_layer_forward.1} parent=5 // pred_check_branch
        %3878 = sbr.rel (%p3876) target = $region124
      $region123: #{encoder_layer_forward.1} parent=5 // pred_region
        %s3879 = ssub.s32 %s29, 2
        // Predicated region
        $region125: #{encoder_layer_forward.1} parent=123 // pred_check
          %p3880 = pneg %p542
        $region126: #{encoder_layer_forward.1} parent=123 // pred_check_branch
          %3882 = sbr.rel (%p3880) target = $region128
        $region127: #{encoder_layer_forward.1} parent=123 // pred_region
          %s3883 = smul.u32 8, %s41
          %p3884 = scmp.lt.s32.totalorder %s40, 1
          %s3885 = scalar_select %p3884, %s40, 1
          %p3886 = scmp.lt.s32.totalorder %s3883, 15
          %s3887 = scalar_select %p3886, %s3883, 15
          %s3888 = smul.addr %s3885, 16
          %s3889 = sadd.s32 %s3887, %s3888
          %s3890 = smul.addr %s3889, 8
          %s3891 = scalar_lea.vmem %s21, %s3890
        $region128: #{encoder_layer_forward.1} parent=123 // pred_fallthru
          _
      $region124: #{encoder_layer_forward.1} parent=5 // pred_fallthru
        _
    $region6: #{encoder_layer_forward.1} parent=1 // loop_footer
      %s33 = sadd.s32 1, %s29
    $region7: #{encoder_layer_forward.1} parent=1 // loop_footer_branch
      %28 = sbr.rel target = $region3
    $region8: #{encoder_layer_forward.1} parent=1 // loop_exit
      _
    %3892 = vsyncpa [#allocation4], 1
    %s3893 = scalar_lea.sflag [#allocation4], 1
    %3894 = vsyncpa %s3893, 1
    %3895 = vsyncpa [#allocation6], 1

</llo_original>
